<compile_context>
chip_gen: v5e
topology: v5e:2x2
jax: 0.10.0
libtpu: 0.0.40
codegen_flags: <defaults>
</compile_context>

<pallas_src>
import functools

import jax
import jax.numpy as jnp
import numpy as np
from jax.experimental import pallas as pl
from jax.experimental.pallas import tpu as pltpu


# --------------------------------------------------------------------------
# Tiling helper: largest depth slab TD (divisor of D) that fits a small VMEM
# budget (safe for v5e/v6e/v7x default scoped VMEM), preferring >= 2 slabs so
# the depth grid axis can actually be pipelined / sharded across TensorCores.
# --------------------------------------------------------------------------
def _pick_td(D, H, W, Cin, Cout, budget_bytes=8 << 20):
    best = 1
    for td in range(1, D + 1):
        if D % td:
            continue
        in_blk = (td + 2) * H * W * Cin * 4 * 2            # halo'd inputs, 2x buffered
        out_blk = td * H * W * Cout * 4 * 2                # conv output, 2x buffered
        w_blk = 9 * (W + 2) * Cin * W * Cout * 2 * 2       # bf16 wide weights
        xbuf = (td + 2) * (H + 2) * (W + 2) * Cin * 4      # padded-slab scratch
        if in_blk + out_blk + w_blk + xbuf > budget_bytes:
            continue
        best = td
    if best == D and D >= 2:                               # keep >= 2 depth slabs
        for td in range(D // 2, 0, -1):
            if D % td == 0:
                return td
    return best


# --------------------------------------------------------------------------
# Banded "wide-W" weights:  ww[kd*3+kh, wp*Cin+ci, wo*Cout+co]
#     = w[kd, kh, wp-wo, ci, co]   if 0 <= wp-wo < 3 else 0.
# One matmul against the (TD*H, (W+2)*Cin) slab rows yields all W output
# columns at once, with the output minor dim already W*Cout (lane-dense).
# --------------------------------------------------------------------------
def _widen_weights(w, W):
    KD, KH, KW, Cin, Cout = w.shape
    kw = np.arange(W + 2)[:, None] - np.arange(W)[None, :]          # (W+2, W)
    valid = (kw >= 0) & (kw < KW)
    kw_c = np.clip(kw, 0, KW - 1)
    ww = w[:, :, kw_c, :, :]                                        # (KD,KH,W+2,W,Cin,Cout)
    ww = ww * jnp.asarray(valid, w.dtype)[None, None, :, :, None, None]
    ww = jnp.transpose(ww, (0, 1, 2, 4, 3, 5))                      # (KD,KH,W+2,Cin,W,Cout)
    return ww.reshape(KD * KH, (W + 2) * Cin, W * Cout)


# --------------------------------------------------------------------------
# Conv3d (3x3x3, SAME) kernel with fused GroupNorm statistics and an optional
# fused GroupNorm+ReLU applied to the *input* (the previous layer's GN+ReLU).
# Grid = (B, D // TD).
# --------------------------------------------------------------------------
def _conv_gn_stats_kernel(xp_ref, xc_ref, xn_ref, w_ref, b_ref, sc_ref, sh_ref,
                          y_ref, st_ref, xbuf, *, TD, H, W, Cin, Cout, pre_act):
    d = pl.program_id(1)
    nd = pl.num_programs(1)
    WCI = W * Cin

    def pre(v):
        v = v.astype(jnp.float32)
        if pre_act:  # fused GroupNorm + ReLU of the previous layer
            v = v * sc_ref[...].reshape(1, 1, WCI) + sh_ref[...].reshape(1, 1, WCI)
            v = jnp.maximum(v, 0.0)
        return v

    # Zero the padded slab buffer, then fill its interior.  Depth-halo planes
    # are masked to zero at the volume boundary; the H/W borders stay zero.
    xbuf[...] = jnp.zeros(xbuf.shape, xbuf.dtype)
    cur = pre(xc_ref[...])                                       # (TD, H, W*Cin)
    prv = pre(xp_ref[...]) * (d > 0).astype(jnp.float32)         # (1,  H, W*Cin)
    nxt = pre(xn_ref[...]) * (d < nd - 1).astype(jnp.float32)    # (1,  H, W*Cin)
    xbuf[1:TD + 1, 1:H + 1, Cin:Cin + WCI] = cur
    xbuf[0:1, 1:H + 1, Cin:Cin + WCI] = prv
    xbuf[TD + 1:TD + 2, 1:H + 1, Cin:Cin + WCI] = nxt

    # 9 banded MXU matmuls: K = (W+2)*Cin, N = W*Cout, bf16 operands / f32 acc.
    acc = jnp.zeros((TD * H, W * Cout), jnp.float32)
    for kd in range(3):
        for kh in range(3):
            piece = xbuf[kd:kd + TD, kh:kh + H, :].reshape(TD * H, (W + 2) * Cin)
            acc = acc + jnp.dot(piece.astype(jnp.bfloat16), w_ref[kd * 3 + kh],
                                preferred_element_type=jnp.float32)
    acc = acc + b_ref[...]                                       # (1, W*Cout) broadcast

    # GroupNorm statistics fused into the conv epilogue (per "wide" channel;
    # reduced over slabs / W outside the kernel).
    st_ref[0:1, :] = jnp.sum(acc, axis=0, keepdims=True)
    st_ref[1:2, :] = jnp.sum(acc * acc, axis=0, keepdims=True)

    y_ref[...] = acc.reshape(TD, H, W * Cout).astype(y_ref.dtype)  # lane-dense store


def conv3d_gn_stats(x, w, b, pre_scale=None, pre_shift=None):
    """x: (B, D, H, W, Cin) f32.  w: (3,3,3,Cin,Cout).  b: (Cout,).
    pre_scale/pre_shift: optional (B, Cin) per-channel affine applied as
    relu(x*scale + shift) before the conv (the previous layer's GN+ReLU).
    Returns y: (B, D, H, W*Cout) f32 and per-(batch, channel) sum / sumsq."""
    B, D, H, W, Cin = x.shape
    Cout = w.shape[-1]
    TD = _pick_td(D, H, W, Cin, Cout)
    nd = D // TD
    WCI, WCO = W * Cin, W * Cout
    KW = (W + 2) * Cin

    x4 = x.reshape(B, D, H, WCI)                        # fold (W, Cin) into lanes
    ww = _widen_weights(w, W).astype(jnp.bfloat16)      # (9, KW, WCO)
    bw = jnp.tile(b.astype(jnp.float32), W).reshape(1, WCO)

    pre_act = pre_scale is not None
    if pre_act:
        sc = jnp.tile(pre_scale.astype(jnp.float32), (1, W)).reshape(B, 1, WCI)
        sh = jnp.tile(pre_shift.astype(jnp.float32), (1, W)).reshape(B, 1, WCI)
    else:
        sc = jnp.zeros((B, 1, WCI), jnp.float32)
        sh = jnp.zeros((B, 1, WCI), jnp.float32)

    kernel = functools.partial(_conv_gn_stats_kernel, TD=TD, H=H, W=W,
                               Cin=Cin, Cout=Cout, pre_act=pre_act)

    y, st = pl.pallas_call(
        kernel,
        out_shape=(jax.ShapeDtypeStruct((B, D, H, WCO), jnp.float32),
                   jax.ShapeDtypeStruct((B, nd, 2, WCO), jnp.float32)),
        grid=(B, nd),
        in_specs=[
            # previous-halo plane / current TD-slab / next-halo plane of x
            # (depth indices clamped at the boundary; kernel masks them there).
            pl.BlockSpec((pl.Squeezed(), 1, H, WCI),
                         lambda bb, dd: (bb, jnp.maximum(dd * TD - 1, 0), 0, 0)),
            pl.BlockSpec((pl.Squeezed(), TD, H, WCI),
                         lambda bb, dd: (bb, dd, 0, 0)),
            pl.BlockSpec((pl.Squeezed(), 1, H, WCI),
                         lambda bb, dd: (bb, jnp.minimum(dd * TD + TD, D - 1), 0, 0)),
            pl.BlockSpec((9, KW, WCO), lambda bb, dd: (0, 0, 0)),
            pl.BlockSpec((1, WCO), lambda bb, dd: (0, 0)),
            pl.BlockSpec((pl.Squeezed(), 1, WCI), lambda bb, dd: (bb, 0, 0)),
            pl.BlockSpec((pl.Squeezed(), 1, WCI), lambda bb, dd: (bb, 0, 0)),
        ],
        out_specs=(
            pl.BlockSpec((pl.Squeezed(), TD, H, WCO), lambda bb, dd: (bb, dd, 0, 0)),
            pl.BlockSpec((pl.Squeezed(), pl.Squeezed(), 2, WCO),
                         lambda bb, dd: (bb, dd, 0, 0)),
        ),
        scratch_shapes=[pltpu.VMEM((TD + 2, H + 2, (W + 2) * Cin), jnp.float32)],
        compiler_params=pltpu.CompilerParams(
            dimension_semantics=("parallel", "parallel")),
    )(x4, x4, x4, ww, bw, sc, sh)

    st = st.reshape(B, nd, 2, W, Cout).sum(axis=(1, 3))   # (B, 2, Cout)
    return y, st[:, 0, :], st[:, 1, :]


# --------------------------------------------------------------------------
# GroupNorm folded into a per-(batch, channel) affine, plus the final
# elementwise GN+ReLU kernel (fully lane-dense on (TD, H, W*C) blocks).
# --------------------------------------------------------------------------
def _gn_scale_shift(ch_sum, ch_sq, gamma, beta, n_spatial, groups, eps):
    B, C = ch_sum.shape
    cpg = C // groups
    n = float(n_spatial * cpg)
    sg = ch_sum.reshape(B, groups, cpg).sum(-1)
    sq = ch_sq.reshape(B, groups, cpg).sum(-1)
    mean = sg / n
    var = jnp.maximum(sq / n - mean * mean, 0.0)
    inv = jax.lax.rsqrt(var + eps)
    mean_c = jnp.repeat(mean, cpg, axis=1)
    inv_c = jnp.repeat(inv, cpg, axis=1)
    scale = gamma[None, :] * inv_c
    shift = beta[None, :] - mean_c * scale
    return scale, shift                       # (B, C) each


def _gn_apply_kernel(y_ref, sc_ref, sh_ref, o_ref):
    y = y_ref[...]
    sc = sc_ref[...].reshape(1, 1, -1)
    sh = sh_ref[...].reshape(1, 1, -1)
    o_ref[...] = jnp.maximum(y * sc + sh, 0.0).astype(o_ref.dtype)


def gn_relu_apply(y4, scale, shift):
    B, D, H, WC = y4.shape
    C = scale.shape[1]
    W = WC // C
    TD = _pick_td(D, H, W, C, C)
    nd = D // TD
    sc = jnp.tile(scale.astype(jnp.float32), (1, W)).reshape(B, 1, WC)
    sh = jnp.tile(shift.astype(jnp.float32), (1, W)).reshape(B, 1, WC)
    return pl.pallas_call(
        _gn_apply_kernel,
        out_shape=jax.ShapeDtypeStruct((B, D, H, WC), jnp.float32),
        grid=(B, nd),
        in_specs=[
            pl.BlockSpec((pl.Squeezed(), TD, H, WC), lambda bb, dd: (bb, dd, 0, 0)),
            pl.BlockSpec((pl.Squeezed(), 1, WC), lambda bb, dd: (bb, 0, 0)),
            pl.BlockSpec((pl.Squeezed(), 1, WC), lambda bb, dd: (bb, 0, 0)),
        ],
        out_specs=pl.BlockSpec((pl.Squeezed(), TD, H, WC),
                               lambda bb, dd: (bb, dd, 0, 0)),
        compiler_params=pltpu.CompilerParams(
            dimension_semantics=("parallel", "parallel")),
    )(y4, sc, sh)


# --------------------------------------------------------------------------
# Full ConvBlock3D forward (Pallas) and a pure-JAX reference for validation.
# --------------------------------------------------------------------------
def conv_block3d_forward(x_ncdhw, params, groups=8, eps=1e-5):
    x = jnp.transpose(x_ncdhw, (0, 2, 3, 4, 1))                  # NCDHW -> NDHWC
    B, D, H, W, _ = x.shape
    C = params["w1"].shape[-1]

    # conv1 (+ fused GN1 statistics)
    y1, s1, q1 = conv3d_gn_stats(x, params["w1"], params["b1"])
    sc1, sh1 = _gn_scale_shift(s1, q1, params["g1"], params["be1"],
                               D * H * W, groups, eps)

    # conv2 with GN1+ReLU fused into its input path (+ fused GN2 statistics)
    y2, s2, q2 = conv3d_gn_stats(y1.reshape(B, D, H, W, C),
                                 params["w2"], params["b2"],
                                 pre_scale=sc1, pre_shift=sh1)
    sc2, sh2 = _gn_scale_shift(s2, q2, params["g2"], params["be2"],
                               D * H * W, groups, eps)

    # final GN2 + ReLU (elementwise, lane-dense)
    z = gn_relu_apply(y2, sc2, sh2).reshape(B, D, H, W, C)
    # TODO(synk): activations could be stored as bf16 between layers to halve
    # HBM traffic (largest lever on v5e); kept f32 to stay close to PyTorch f32.
    return jnp.transpose(z, (0, 4, 1, 2, 3))                     # NDHWC -> NCDHW


def conv_block3d_reference(x_ncdhw, params, groups=8, eps=1e-5):
    x = jnp.transpose(x_ncdhw, (0, 2, 3, 4, 1))

    def conv(x, w, b):
        y = jax.lax.conv_general_dilated(
            x, w, window_strides=(1, 1, 1), padding="SAME",
            dimension_numbers=("NDHWC", "DHWIO", "NDHWC"))
        return y + b.reshape(1, 1, 1, 1, -1)

    def gn_relu(x, g, be):
        B, D, H, W, C = x.shape
        cpg = C // groups
        xr = x.reshape(B, D * H * W, groups, cpg)
        mean = xr.mean(axis=(1, 3), keepdims=True)
        var = ((xr - mean) ** 2).mean(axis=(1, 3), keepdims=True)
        yn = (xr - mean) / jnp.sqrt(var + eps)
        yn = yn.reshape(B, D, H, W, C) * g.reshape(1, 1, 1, 1, C) + be.reshape(1, 1, 1, 1, C)
        return jnp.maximum(yn, 0.0)

    y = gn_relu(conv(x, params["w1"], params["b1"]), params["g1"], params["be1"])
    y = gn_relu(conv(y, params["w2"], params["b2"]), params["g2"], params["be2"])
    return jnp.transpose(y, (0, 4, 1, 2, 3))


def init_params(key, in_channels, out_channels):
    k1, k2, k3, k4 = jax.random.split(key, 4)
    fan1 = in_channels * 27
    fan2 = out_channels * 27
    return {
        "w1": jax.random.normal(k1, (3, 3, 3, in_channels, out_channels), jnp.float32)
              * (1.0 / np.sqrt(fan1)),
        "b1": jax.random.normal(k2, (out_channels,), jnp.float32) * 0.01,
        "g1": jnp.ones((out_channels,), jnp.float32),
        "be1": jnp.zeros((out_channels,), jnp.float32),
        "w2": jax.random.normal(k3, (3, 3, 3, out_channels, out_channels), jnp.float32)
              * (1.0 / np.sqrt(fan2)),
        "b2": jax.random.normal(k4, (out_channels,), jnp.float32) * 0.01,
        "g2": jnp.ones((out_channels,), jnp.float32),
        "be2": jnp.zeros((out_channels,), jnp.float32),
    }


if __name__ == "__main__":
    key = jax.random.PRNGKey(0)
    kx, kp = jax.random.split(key)

    B, Cin, Cout = 2, 4, 16          # GroupNorm(8, Cout) needs Cout % 8 == 0
    D = H = W = 8                    # -> W*Cout = 128 (exactly one lane tile)

    x = jax.random.normal(kx, (B, Cin, D, H, W), jnp.float32)   # NCDHW like PyTorch
    params = init_params(kp, Cin, Cout)

    out = jax.jit(conv_block3d_forward)(x, params)
    out = jax.block_until_ready(out)
    assert out.shape == (B, Cout, D, H, W), out.shape

    ref = jax.block_until_ready(conv_block3d_reference(x, params))
    # bf16 MXU operands in the kernel vs. XLA's default-precision conv:
    # tolerance loosened from 1e-4 accordingly (see perf review).
    np.testing.assert_allclose(np.asarray(out), np.asarray(ref), rtol=2e-2, atol=2e-2)

    print("KERNEL_OK")
</pallas_src>

<mosaic_0001>
module attributes {stable_mosaic.version = 11 : i64} {
  func.func @_conv_gn_stats_kernel(%arg0: i32, %arg1: i32, %arg2: memref<1x1x8x32xf32, #tpu.memory_space<vmem>>, %arg3: memref<1x4x8x32xf32, #tpu.memory_space<vmem>>, %arg4: memref<1x1x8x32xf32, #tpu.memory_space<vmem>>, %arg5: memref<9x40x128xbf16, #tpu.memory_space<vmem>>, %arg6: memref<1x128xf32, #tpu.memory_space<vmem>>, %arg7: memref<1x1x32xf32, #tpu.memory_space<vmem>>, %arg8: memref<1x1x32xf32, #tpu.memory_space<vmem>>, %arg9: memref<1x4x8x128xf32, #tpu.memory_space<vmem>>, %arg10: memref<1x1x2x128xf32, #tpu.memory_space<vmem>>, %arg11: memref<6x10x40xf32, #tpu.memory_space<vmem>>) attributes {dimension_semantics = [#tpu.dimension_semantics<parallel>, #tpu.dimension_semantics<parallel>], iteration_bounds = array<i64: 2, 2>, scalar_prefetch = 0 : i64, scratch_operands = 1 : i64, tpu.core_type = #tpu.core_type<tc>, window_params = [{transform_indices = @transform_0, window_bounds = array<i64: 1, 1, 8, 32>}, {transform_indices = @transform_1, window_bounds = array<i64: 1, 4, 8, 32>}, {transform_indices = @transform_2, window_bounds = array<i64: 1, 1, 8, 32>}, {pipeline_mode = #tpu.pipeline_mode<synchronous>, transform_indices = @transform_3, window_bounds = array<i64: 9, 40, 128>}, {pipeline_mode = #tpu.pipeline_mode<synchronous>, transform_indices = @transform_4, window_bounds = array<i64: 1, 128>}, {transform_indices = @transform_5, window_bounds = array<i64: 1, 1, 32>}, {transform_indices = @transform_6, window_bounds = array<i64: 1, 1, 32>}, {transform_indices = @transform_7, window_bounds = array<i64: 1, 4, 8, 128>}, {transform_indices = @transform_8, window_bounds = array<i64: 1, 1, 2, 128>}]} {
    %cst = arith.constant 0.000000e+00 : f32
    %0 = vector.broadcast %cst : f32 to vector<6x10x40xf32>
    %c0 = arith.constant 0 : index
    %c0_0 = arith.constant 0 : index
    %c0_1 = arith.constant 0 : index
    %1 = vector.load %arg11[%c0, %c0_0, %c0_1] : memref<6x10x40xf32, #tpu.memory_space<vmem>>, vector<6x10x40xf32>
    tpu.vector_store %arg11[%c0, %c0_0, %c0_1], %0 {strides = array<i32>} : memref<6x10x40xf32, #tpu.memory_space<vmem>>, vector<6x10x40xf32>,
    %c0_2 = arith.constant 0 : index
    %c0_3 = arith.constant 0 : index
    %c0_4 = arith.constant 0 : index
    %c0_5 = arith.constant 0 : index
    %2 = vector.load %arg3[%c0_2, %c0_3, %c0_4, %c0_5] : memref<1x4x8x32xf32, #tpu.memory_space<vmem>>, vector<1x4x8x32xf32>
    %3 = vector.shape_cast %2 : vector<1x4x8x32xf32> to vector<4x8x32xf32>
    %c0_6 = arith.constant 0 : index
    %c0_7 = arith.constant 0 : index
    %c0_8 = arith.constant 0 : index
    %c0_9 = arith.constant 0 : index
    %4 = vector.load %arg2[%c0_6, %c0_7, %c0_8, %c0_9] : memref<1x1x8x32xf32, #tpu.memory_space<vmem>>, vector<1x1x8x32xf32>
    %5 = vector.shape_cast %4 : vector<1x1x8x32xf32> to vector<1x8x32xf32>
    %c0_i32 = arith.constant 0 : i32
    %6 = arith.cmpi sgt, %arg1, %c0_i32 : i32
    %7 = arith.extui %6 : i1 to i32
    %8 = arith.sitofp %7 : i32 to f32
    %9 = vector.broadcast %8 : f32 to vector<1x8x32xf32>
    %10 = arith.mulf %5, %9 : vector<1x8x32xf32>
    %c0_10 = arith.constant 0 : index
    %c0_11 = arith.constant 0 : index
    %c0_12 = arith.constant 0 : index
    %c0_13 = arith.constant 0 : index
    %11 = vector.load %arg4[%c0_10, %c0_11, %c0_12, %c0_13] : memref<1x1x8x32xf32, #tpu.memory_space<vmem>>, vector<1x1x8x32xf32>
    %12 = vector.shape_cast %11 : vector<1x1x8x32xf32> to vector<1x8x32xf32>
    %c1_i32 = arith.constant 1 : i32
    %13 = arith.cmpi slt, %arg1, %c1_i32 : i32
    %14 = arith.extui %13 : i1 to i32
    %15 = arith.sitofp %14 : i32 to f32
    %16 = vector.broadcast %15 : f32 to vector<1x8x32xf32>
    %17 = arith.mulf %12, %16 : vector<1x8x32xf32>
    %c1 = arith.constant 1 : index
    %c1_14 = arith.constant 1 : index
    %c4 = arith.constant 4 : index
    %18 = vector.load %arg11[%c1, %c1_14, %c4] : memref<6x10x40xf32, #tpu.memory_space<vmem>>, vector<4x8x32xf32>
    tpu.vector_store %arg11[%c1, %c1_14, %c4], %3 {strides = array<i32>} : memref<6x10x40xf32, #tpu.memory_space<vmem>>, vector<4x8x32xf32>,
    %c0_15 = arith.constant 0 : index
    %c1_16 = arith.constant 1 : index
    %c4_17 = arith.constant 4 : index
    %19 = vector.load %arg11[%c0_15, %c1_16, %c4_17] : memref<6x10x40xf32, #tpu.memory_space<vmem>>, vector<1x8x32xf32>
    tpu.vector_store %arg11[%c0_15, %c1_16, %c4_17], %10 {strides = array<i32>} : memref<6x10x40xf32, #tpu.memory_space<vmem>>, vector<1x8x32xf32>,
    %c5 = arith.constant 5 : index
    %c1_18 = arith.constant 1 : index
    %c4_19 = arith.constant 4 : index
    %20 = vector.load %arg11[%c5, %c1_18, %c4_19] : memref<6x10x40xf32, #tpu.memory_space<vmem>>, vector<1x8x32xf32>
    tpu.vector_store %arg11[%c5, %c1_18, %c4_19], %17 {strides = array<i32>} : memref<6x10x40xf32, #tpu.memory_space<vmem>>, vector<1x8x32xf32>,
    %cst_20 = arith.constant 0.000000e+00 : f32
    %21 = vector.broadcast %cst_20 : f32 to vector<32x128xf32>
    %c0_21 = arith.constant 0 : index
    %c0_22 = arith.constant 0 : index
    %c0_23 = arith.constant 0 : index
    %22 = vector.load %arg11[%c0_21, %c0_22, %c0_23] : memref<6x10x40xf32, #tpu.memory_space<vmem>>, vector<4x8x40xf32>
    %23 = vector.shape_cast %22 : vector<4x8x40xf32> to vector<32x40xf32>
    %24 = arith.truncf %23 : vector<32x40xf32> to vector<32x40xbf16>
    %c0_24 = arith.constant 0 : index
    %c0_25 = arith.constant 0 : index
    %c0_26 = arith.constant 0 : index
    %25 = vector.load %arg5[%c0_24, %c0_25, %c0_26] : memref<9x40x128xbf16, #tpu.memory_space<vmem>>, vector<1x40x128xbf16>
    %26 = vector.shape_cast %25 : vector<1x40x128xbf16> to vector<40x128xbf16>
    %cst_27 = arith.constant dense<0.000000e+00> : vector<32x128xf32>
    %27 = tpu.matmul %24, %26, %cst_27 {dimension_numbers = #tpu.dot_dimension_numbers<[1], [0], [0], [1], [0, 0, 1, 1], [], []>} : vector<32x40xbf16>, vector<40x128xbf16>, vector<32x128xf32> -> vector<32x128xf32>
    %28 = arith.addf %21, %27 : vector<32x128xf32>
    %c0_28 = arith.constant 0 : index
    %c1_29 = arith.constant 1 : index
    %c0_30 = arith.constant 0 : index
    %29 = vector.load %arg11[%c0_28, %c1_29, %c0_30] : memref<6x10x40xf32, #tpu.memory_space<vmem>>, vector<4x8x40xf32>
    %30 = vector.shape_cast %29 : vector<4x8x40xf32> to vector<32x40xf32>
    %31 = arith.truncf %30 : vector<32x40xf32> to vector<32x40xbf16>
    %c1_31 = arith.constant 1 : index
    %c0_32 = arith.constant 0 : index
    %c0_33 = arith.constant 0 : index
    %32 = vector.load %arg5[%c1_31, %c0_32, %c0_33] : memref<9x40x128xbf16, #tpu.memory_space<vmem>>, vector<1x40x128xbf16>
    %33 = vector.shape_cast %32 : vector<1x40x128xbf16> to vector<40x128xbf16>
    %cst_34 = arith.constant dense<0.000000e+00> : vector<32x128xf32>
    %34 = tpu.matmul %31, %33, %cst_34 {dimension_numbers = #tpu.dot_dimension_numbers<[1], [0], [0], [1], [0, 0, 1, 1], [], []>} : vector<32x40xbf16>, vector<40x128xbf16>, vector<32x128xf32> -> vector<32x128xf32>
    %35 = arith.addf %28, %34 : vector<32x128xf32>
    %c0_35 = arith.constant 0 : index
    %c2 = arith.constant 2 : index
    %c0_36 = arith.constant 0 : index
    %36 = vector.load %arg11[%c0_35, %c2, %c0_36] : memref<6x10x40xf32, #tpu.memory_space<vmem>>, vector<4x8x40xf32>
    %37 = vector.shape_cast %36 : vector<4x8x40xf32> to vector<32x40xf32>
    %38 = arith.truncf %37 : vector<32x40xf32> to vector<32x40xbf16>
    %c2_37 = arith.constant 2 : index
    %c0_38 = arith.constant 0 : index
    %c0_39 = arith.constant 0 : index
    %39 = vector.load %arg5[%c2_37, %c0_38, %c0_39] : memref<9x40x128xbf16, #tpu.memory_space<vmem>>, vector<1x40x128xbf16>
    %40 = vector.shape_cast %39 : vector<1x40x128xbf16> to vector<40x128xbf16>
    %cst_40 = arith.constant dense<0.000000e+00> : vector<32x128xf32>
    %41 = tpu.matmul %38, %40, %cst_40 {dimension_numbers = #tpu.dot_dimension_numbers<[1], [0], [0], [1], [0, 0, 1, 1], [], []>} : vector<32x40xbf16>, vector<40x128xbf16>, vector<32x128xf32> -> vector<32x128xf32>
    %42 = arith.addf %35, %41 : vector<32x128xf32>
    %c1_41 = arith.constant 1 : index
    %c0_42 = arith.constant 0 : index
    %c0_43 = arith.constant 0 : index
    %43 = vector.load %arg11[%c1_41, %c0_42, %c0_43] : memref<6x10x40xf32, #tpu.memory_space<vmem>>, vector<4x8x40xf32>
    %44 = vector.shape_cast %43 : vector<4x8x40xf32> to vector<32x40xf32>
    %45 = arith.truncf %44 : vector<32x40xf32> to vector<32x40xbf16>
    %c3 = arith.constant 3 : index
    %c0_44 = arith.constant 0 : index
    %c0_45 = arith.constant 0 : index
    %46 = vector.load %arg5[%c3, %c0_44, %c0_45] : memref<9x40x128xbf16, #tpu.memory_space<vmem>>, vector<1x40x128xbf16>
    %47 = vector.shape_cast %46 : vector<1x40x128xbf16> to vector<40x128xbf16>
    %cst_46 = arith.constant dense<0.000000e+00> : vector<32x128xf32>
    %48 = tpu.matmul %45, %47, %cst_46 {dimension_numbers = #tpu.dot_dimension_numbers<[1], [0], [0], [1], [0, 0, 1, 1], [], []>} : vector<32x40xbf16>, vector<40x128xbf16>, vector<32x128xf32> -> vector<32x128xf32>
    %49 = arith.addf %42, %48 : vector<32x128xf32>
    %c1_47 = arith.constant 1 : index
    %c1_48 = arith.constant 1 : index
    %c0_49 = arith.constant 0 : index
    %50 = vector.load %arg11[%c1_47, %c1_48, %c0_49] : memref<6x10x40xf32, #tpu.memory_space<vmem>>, vector<4x8x40xf32>
    %51 = vector.shape_cast %50 : vector<4x8x40xf32> to vector<32x40xf32>
    %52 = arith.truncf %51 : vector<32x40xf32> to vector<32x40xbf16>
    %c4_50 = arith.constant 4 : index
    %c0_51 = arith.constant 0 : index
    %c0_52 = arith.constant 0 : index
    %53 = vector.load %arg5[%c4_50, %c0_51, %c0_52] : memref<9x40x128xbf16, #tpu.memory_space<vmem>>, vector<1x40x128xbf16>
    %54 = vector.shape_cast %53 : vector<1x40x128xbf16> to vector<40x128xbf16>
    %cst_53 = arith.constant dense<0.000000e+00> : vector<32x128xf32>
    %55 = tpu.matmul %52, %54, %cst_53 {dimension_numbers = #tpu.dot_dimension_numbers<[1], [0], [0], [1], [0, 0, 1, 1], [], []>} : vector<32x40xbf16>, vector<40x128xbf16>, vector<32x128xf32> -> vector<32x128xf32>
    %56 = arith.addf %49, %55 : vector<32x128xf32>
    %c1_54 = arith.constant 1 : index
    %c2_55 = arith.constant 2 : index
    %c0_56 = arith.constant 0 : index
    %57 = vector.load %arg11[%c1_54, %c2_55, %c0_56] : memref<6x10x40xf32, #tpu.memory_space<vmem>>, vector<4x8x40xf32>
    %58 = vector.shape_cast %57 : vector<4x8x40xf32> to vector<32x40xf32>
    %59 = arith.truncf %58 : vector<32x40xf32> to vector<32x40xbf16>
    %c5_57 = arith.constant 5 : index
    %c0_58 = arith.constant 0 : index
    %c0_59 = arith.constant 0 : index
    %60 = vector.load %arg5[%c5_57, %c0_58, %c0_59] : memref<9x40x128xbf16, #tpu.memory_space<vmem>>, vector<1x40x128xbf16>
    %61 = vector.shape_cast %60 : vector<1x40x128xbf16> to vector<40x128xbf16>
    %cst_60 = arith.constant dense<0.000000e+00> : vector<32x128xf32>
    %62 = tpu.matmul %59, %61, %cst_60 {dimension_numbers = #tpu.dot_dimension_numbers<[1], [0], [0], [1], [0, 0, 1, 1], [], []>} : vector<32x40xbf16>, vector<40x128xbf16>, vector<32x128xf32> -> vector<32x128xf32>
    %63 = arith.addf %56, %62 : vector<32x128xf32>
    %c2_61 = arith.constant 2 : index
    %c0_62 = arith.constant 0 : index
    %c0_63 = arith.constant 0 : index
    %64 = vector.load %arg11[%c2_61, %c0_62, %c0_63] : memref<6x10x40xf32, #tpu.memory_space<vmem>>, vector<4x8x40xf32>
    %65 = vector.shape_cast %64 : vector<4x8x40xf32> to vector<32x40xf32>
    %66 = arith.truncf %65 : vector<32x40xf32> to vector<32x40xbf16>
    %c6 = arith.constant 6 : index
    %c0_64 = arith.constant 0 : index
    %c0_65 = arith.constant 0 : index
    %67 = vector.load %arg5[%c6, %c0_64, %c0_65] : memref<9x40x128xbf16, #tpu.memory_space<vmem>>, vector<1x40x128xbf16>
    %68 = vector.shape_cast %67 : vector<1x40x128xbf16> to vector<40x128xbf16>
    %cst_66 = arith.constant dense<0.000000e+00> : vector<32x128xf32>
    %69 = tpu.matmul %66, %68, %cst_66 {dimension_numbers = #tpu.dot_dimension_numbers<[1], [0], [0], [1], [0, 0, 1, 1], [], []>} : vector<32x40xbf16>, vector<40x128xbf16>, vector<32x128xf32> -> vector<32x128xf32>
    %70 = arith.addf %63, %69 : vector<32x128xf32>
    %c2_67 = arith.constant 2 : index
    %c1_68 = arith.constant 1 : index
    %c0_69 = arith.constant 0 : index
    %71 = vector.load %arg11[%c2_67, %c1_68, %c0_69] : memref<6x10x40xf32, #tpu.memory_space<vmem>>, vector<4x8x40xf32>
    %72 = vector.shape_cast %71 : vector<4x8x40xf32> to vector<32x40xf32>
    %73 = arith.truncf %72 : vector<32x40xf32> to vector<32x40xbf16>
    %c7 = arith.constant 7 : index
    %c0_70 = arith.constant 0 : index
    %c0_71 = arith.constant 0 : index
    %74 = vector.load %arg5[%c7, %c0_70, %c0_71] : memref<9x40x128xbf16, #tpu.memory_space<vmem>>, vector<1x40x128xbf16>
    %75 = vector.shape_cast %74 : vector<1x40x128xbf16> to vector<40x128xbf16>
    %cst_72 = arith.constant dense<0.000000e+00> : vector<32x128xf32>
    %76 = tpu.matmul %73, %75, %cst_72 {dimension_numbers = #tpu.dot_dimension_numbers<[1], [0], [0], [1], [0, 0, 1, 1], [], []>} : vector<32x40xbf16>, vector<40x128xbf16>, vector<32x128xf32> -> vector<32x128xf32>
    %77 = arith.addf %70, %76 : vector<32x128xf32>
    %c2_73 = arith.constant 2 : index
    %c2_74 = arith.constant 2 : index
    %c0_75 = arith.constant 0 : index
    %78 = vector.load %arg11[%c2_73, %c2_74, %c0_75] : memref<6x10x40xf32, #tpu.memory_space<vmem>>, vector<4x8x40xf32>
    %79 = vector.shape_cast %78 : vector<4x8x40xf32> to vector<32x40xf32>
    %80 = arith.truncf %79 : vector<32x40xf32> to vector<32x40xbf16>
    %c8 = arith.constant 8 : index
    %c0_76 = arith.constant 0 : index
    %c0_77 = arith.constant 0 : index
    %81 = vector.load %arg5[%c8, %c0_76, %c0_77] : memref<9x40x128xbf16, #tpu.memory_space<vmem>>, vector<1x40x128xbf16>
    %82 = vector.shape_cast %81 : vector<1x40x128xbf16> to vector<40x128xbf16>
    %cst_78 = arith.constant dense<0.000000e+00> : vector<32x128xf32>
    %83 = tpu.matmul %80, %82, %cst_78 {dimension_numbers = #tpu.dot_dimension_numbers<[1], [0], [0], [1], [0, 0, 1, 1], [], []>} : vector<32x40xbf16>, vector<40x128xbf16>, vector<32x128xf32> -> vector<32x128xf32>
    %84 = arith.addf %77, %83 : vector<32x128xf32>
    %c0_79 = arith.constant 0 : index
    %c0_80 = arith.constant 0 : index
    %85 = vector.load %arg6[%c0_79, %c0_80] : memref<1x128xf32, #tpu.memory_space<vmem>>, vector<1x128xf32>
    %86 = vector.broadcast %85 : vector<1x128xf32> to vector<32x128xf32>
    %87 = arith.addf %84, %86 : vector<32x128xf32>
    %cst_81 = arith.constant dense<0.000000e+00> : vector<128xf32>
    %88 = vector.multi_reduction <add>, %87, %cst_81 [0] : vector<32x128xf32> to vector<128xf32>
    %89 = vector.shape_cast %88 : vector<128xf32> to vector<1x128xf32>
    %c0_82 = arith.constant 0 : index
    %c0_83 = arith.constant 0 : index
    %c0_84 = arith.constant 0 : index
    %c0_85 = arith.constant 0 : index
    %90 = vector.load %arg10[%c0_82, %c0_83, %c0_84, %c0_85] : memref<1x1x2x128xf32, #tpu.memory_space<vmem>>, vector<1x1x1x128xf32>
    %91 = vector.shape_cast %90 : vector<1x1x1x128xf32> to vector<1x128xf32>
    %92 = vector.shape_cast %89 : vector<1x128xf32> to vector<1x1x1x128xf32>
    tpu.vector_store %arg10[%c0_82, %c0_83, %c0_84, %c0_85], %92 {strides = array<i32>} : memref<1x1x2x128xf32, #tpu.memory_space<vmem>>, vector<1x1x1x128xf32>,
    %93 = arith.mulf %87, %87 : vector<32x128xf32>
    %cst_86 = arith.constant dense<0.000000e+00> : vector<128xf32>
    %94 = vector.multi_reduction <add>, %93, %cst_86 [0] : vector<32x128xf32> to vector<128xf32>
    %95 = vector.shape_cast %94 : vector<128xf32> to vector<1x128xf32>
    %c0_87 = arith.constant 0 : index
    %c0_88 = arith.constant 0 : index
    %c1_89 = arith.constant 1 : index
    %c0_90 = arith.constant 0 : index
    %96 = vector.load %arg10[%c0_87, %c0_88, %c1_89, %c0_90] : memref<1x1x2x128xf32, #tpu.memory_space<vmem>>, vector<1x1x1x128xf32>
    %97 = vector.shape_cast %96 : vector<1x1x1x128xf32> to vector<1x128xf32>
    %98 = vector.shape_cast %95 : vector<1x128xf32> to vector<1x1x1x128xf32>
    tpu.vector_store %arg10[%c0_87, %c0_88, %c1_89, %c0_90], %98 {strides = array<i32>} : memref<1x1x2x128xf32, #tpu.memory_space<vmem>>, vector<1x1x1x128xf32>,
    %99 = vector.shape_cast %87 : vector<32x128xf32> to vector<4x8x128xf32>
    %c0_91 = arith.constant 0 : index
    %c0_92 = arith.constant 0 : index
    %c0_93 = arith.constant 0 : index
    %c0_94 = arith.constant 0 : index
    %100 = vector.load %arg9[%c0_91, %c0_92, %c0_93, %c0_94] : memref<1x4x8x128xf32, #tpu.memory_space<vmem>>, vector<1x4x8x128xf32>
    %101 = vector.shape_cast %100 : vector<1x4x8x128xf32> to vector<4x8x128xf32>
    %102 = vector.shape_cast %99 : vector<4x8x128xf32> to vector<1x4x8x128xf32>
    tpu.vector_store %arg9[%c0_91, %c0_92, %c0_93, %c0_94], %102 {strides = array<i32>} : memref<1x4x8x128xf32, #tpu.memory_space<vmem>>, vector<1x4x8x128xf32>,
    return
  }
  func.func @transform_0(%arg0: i32, %arg1: i32) -> (i32, i32, i32, i32) {
    %c4_i32 = arith.constant 4 : i32
    %0 = arith.muli %arg1, %c4_i32 : i32
    %c1_i32 = arith.constant 1 : i32
    %1 = arith.subi %0, %c1_i32 : i32
    %c0_i32 = arith.constant 0 : i32
    %2 = arith.maxsi %1, %c0_i32 : i32
    %c0_i32_0 = arith.constant 0 : i32
    %c0_i32_1 = arith.constant 0 : i32
    %c0_i32_2 = arith.constant 0 : i32
    return %arg0, %2, %c0_i32_0, %c0_i32_1 : i32, i32, i32, i32
  }
  func.func @transform_1(%arg0: i32, %arg1: i32) -> (i32, i32, i32, i32) {
    %c0_i32 = arith.constant 0 : i32
    %c0_i32_0 = arith.constant 0 : i32
    %c0_i32_1 = arith.constant 0 : i32
    return %arg0, %arg1, %c0_i32, %c0_i32_0 : i32, i32, i32, i32
  }
  func.func @transform_2(%arg0: i32, %arg1: i32) -> (i32, i32, i32, i32) {
    %c4_i32 = arith.constant 4 : i32
    %0 = arith.muli %arg1, %c4_i32 : i32
    %c4_i32_0 = arith.constant 4 : i32
    %1 = arith.addi %0, %c4_i32_0 : i32
    %c7_i32 = arith.constant 7 : i32
    %2 = arith.minsi %1, %c7_i32 : i32
    %c0_i32 = arith.constant 0 : i32
    %c0_i32_1 = arith.constant 0 : i32
    %c0_i32_2 = arith.constant 0 : i32
    return %arg0, %2, %c0_i32, %c0_i32_1 : i32, i32, i32, i32
  }
  func.func @transform_3(%arg0: i32, %arg1: i32) -> (i32, i32, i32) {
    %c0_i32 = arith.constant 0 : i32
    %c0_i32_0 = arith.constant 0 : i32
    %c0_i32_1 = arith.constant 0 : i32
    %c0_i32_2 = arith.constant 0 : i32
    return %c0_i32, %c0_i32_0, %c0_i32_1 : i32, i32, i32
  }
  func.func @transform_4(%arg0: i32, %arg1: i32) -> (i32, i32) {
    %c0_i32 = arith.constant 0 : i32
    %c0_i32_0 = arith.constant 0 : i32
    %c0_i32_1 = arith.constant 0 : i32
    return %c0_i32, %c0_i32_0 : i32, i32
  }
  func.func @transform_5(%arg0: i32, %arg1: i32) -> (i32, i32, i32) {
    %c0_i32 = arith.constant 0 : i32
    %c0_i32_0 = arith.constant 0 : i32
    %c0_i32_1 = arith.constant 0 : i32
    return %arg0, %c0_i32, %c0_i32_0 : i32, i32, i32
  }
  func.func @transform_6(%arg0: i32, %arg1: i32) -> (i32, i32, i32) {
    %c0_i32 = arith.constant 0 : i32
    %c0_i32_0 = arith.constant 0 : i32
    %c0_i32_1 = arith.constant 0 : i32
    return %arg0, %c0_i32, %c0_i32_0 : i32, i32, i32
  }
  func.func @transform_7(%arg0: i32, %arg1: i32) -> (i32, i32, i32, i32) {
    %c0_i32 = arith.constant 0 : i32
    %c0_i32_0 = arith.constant 0 : i32
    %c0_i32_1 = arith.constant 0 : i32
    return %arg0, %arg1, %c0_i32, %c0_i32_0 : i32, i32, i32, i32
  }
  func.func @transform_8(%arg0: i32, %arg1: i32) -> (i32, i32, i32, i32) {
    %c0_i32 = arith.constant 0 : i32
    %c0_i32_0 = arith.constant 0 : i32
    %c0_i32_1 = arith.constant 0 : i32
    return %arg0, %arg1, %c0_i32, %c0_i32_0 : i32, i32, i32, i32
  }
}

module attributes {stable_mosaic.version = 11 : i64} {
  func.func @_conv_gn_stats_kernel(%arg0: i32, %arg1: i32, %arg2: memref<1x1x8x128xf32, #tpu.memory_space<vmem>>, %arg3: memref<1x4x8x128xf32, #tpu.memory_space<vmem>>, %arg4: memref<1x1x8x128xf32, #tpu.memory_space<vmem>>, %arg5: memref<9x160x128xbf16, #tpu.memory_space<vmem>>, %arg6: memref<1x128xf32, #tpu.memory_space<vmem>>, %arg7: memref<1x1x128xf32, #tpu.memory_space<vmem>>, %arg8: memref<1x1x128xf32, #tpu.memory_space<vmem>>, %arg9: memref<1x4x8x128xf32, #tpu.memory_space<vmem>>, %arg10: memref<1x1x2x128xf32, #tpu.memory_space<vmem>>, %arg11: memref<6x10x160xf32, #tpu.memory_space<vmem>>) attributes {dimension_semantics = [#tpu.dimension_semantics<parallel>, #tpu.dimension_semantics<parallel>], iteration_bounds = array<i64: 2, 2>, scalar_prefetch = 0 : i64, scratch_operands = 1 : i64, tpu.core_type = #tpu.core_type<tc>, window_params = [{transform_indices = @transform_0, window_bounds = array<i64: 1, 1, 8, 128>}, {transform_indices = @transform_1, window_bounds = array<i64: 1, 4, 8, 128>}, {transform_indices = @transform_2, window_bounds = array<i64: 1, 1, 8, 128>}, {pipeline_mode = #tpu.pipeline_mode<synchronous>, transform_indices = @transform_3, window_bounds = array<i64: 9, 160, 128>}, {pipeline_mode = #tpu.pipeline_mode<synchronous>, transform_indices = @transform_4, window_bounds = array<i64: 1, 128>}, {transform_indices = @transform_5, window_bounds = array<i64: 1, 1, 128>}, {transform_indices = @transform_6, window_bounds = array<i64: 1, 1, 128>}, {transform_indices = @transform_7, window_bounds = array<i64: 1, 4, 8, 128>}, {transform_indices = @transform_8, window_bounds = array<i64: 1, 1, 2, 128>}]} {
    %cst = arith.constant 0.000000e+00 : f32
    %0 = vector.broadcast %cst : f32 to vector<6x10x160xf32>
    %c0 = arith.constant 0 : index
    %c0_0 = arith.constant 0 : index
    %c0_1 = arith.constant 0 : index
    %1 = vector.load %arg11[%c0, %c0_0, %c0_1] : memref<6x10x160xf32, #tpu.memory_space<vmem>>, vector<6x10x160xf32>
    tpu.vector_store %arg11[%c0, %c0_0, %c0_1], %0 {strides = array<i32>} : memref<6x10x160xf32, #tpu.memory_space<vmem>>, vector<6x10x160xf32>,
    %c0_2 = arith.constant 0 : index
    %c0_3 = arith.constant 0 : index
    %c0_4 = arith.constant 0 : index
    %c0_5 = arith.constant 0 : index
    %2 = vector.load %arg3[%c0_2, %c0_3, %c0_4, %c0_5] : memref<1x4x8x128xf32, #tpu.memory_space<vmem>>, vector<1x4x8x128xf32>
    %3 = vector.shape_cast %2 : vector<1x4x8x128xf32> to vector<4x8x128xf32>
    %c0_6 = arith.constant 0 : index
    %c0_7 = arith.constant 0 : index
    %c0_8 = arith.constant 0 : index
    %4 = vector.load %arg7[%c0_6, %c0_7, %c0_8] : memref<1x1x128xf32, #tpu.memory_space<vmem>>, vector<1x1x128xf32>
    %5 = vector.shape_cast %4 : vector<1x1x128xf32> to vector<1x128xf32>
    %6 = vector.shape_cast %5 : vector<1x128xf32> to vector<1x1x128xf32>
    %7 = vector.broadcast %6 : vector<1x1x128xf32> to vector<4x8x128xf32>
    %8 = arith.mulf %3, %7 : vector<4x8x128xf32>
    %c0_9 = arith.constant 0 : index
    %c0_10 = arith.constant 0 : index
    %c0_11 = arith.constant 0 : index
    %9 = vector.load %arg8[%c0_9, %c0_10, %c0_11] : memref<1x1x128xf32, #tpu.memory_space<vmem>>, vector<1x1x128xf32>
    %10 = vector.shape_cast %9 : vector<1x1x128xf32> to vector<1x128xf32>
    %11 = vector.shape_cast %10 : vector<1x128xf32> to vector<1x1x128xf32>
    %12 = vector.broadcast %11 : vector<1x1x128xf32> to vector<4x8x128xf32>
    %13 = arith.addf %8, %12 : vector<4x8x128xf32>
    %cst_12 = arith.constant 0.000000e+00 : f32
    %14 = vector.broadcast %cst_12 : f32 to vector<4x8x128xf32>
    %15 = arith.maximumf %13, %14 : vector<4x8x128xf32>
    %c0_13 = arith.constant 0 : index
    %c0_14 = arith.constant 0 : index
    %c0_15 = arith.constant 0 : index
    %c0_16 = arith.constant 0 : index
    %16 = vector.load %arg2[%c0_13, %c0_14, %c0_15, %c0_16] : memref<1x1x8x128xf32, #tpu.memory_space<vmem>>, vector<1x1x8x128xf32>
    %17 = vector.shape_cast %16 : vector<1x1x8x128xf32> to vector<1x8x128xf32>
    %c0_17 = arith.constant 0 : index
    %c0_18 = arith.constant 0 : index
    %c0_19 = arith.constant 0 : index
    %18 = vector.load %arg7[%c0_17, %c0_18, %c0_19] : memref<1x1x128xf32, #tpu.memory_space<vmem>>, vector<1x1x128xf32>
    %19 = vector.shape_cast %18 : vector<1x1x128xf32> to vector<1x128xf32>
    %20 = vector.shape_cast %19 : vector<1x128xf32> to vector<1x1x128xf32>
    %21 = vector.broadcast %20 : vector<1x1x128xf32> to vector<1x8x128xf32>
    %22 = arith.mulf %17, %21 : vector<1x8x128xf32>
    %c0_20 = arith.constant 0 : index
    %c0_21 = arith.constant 0 : index
    %c0_22 = arith.constant 0 : index
    %23 = vector.load %arg8[%c0_20, %c0_21, %c0_22] : memref<1x1x128xf32, #tpu.memory_space<vmem>>, vector<1x1x128xf32>
    %24 = vector.shape_cast %23 : vector<1x1x128xf32> to vector<1x128xf32>
    %25 = vector.shape_cast %24 : vector<1x128xf32> to vector<1x1x128xf32>
    %26 = vector.broadcast %25 : vector<1x1x128xf32> to vector<1x8x128xf32>
    %27 = arith.addf %22, %26 : vector<1x8x128xf32>
    %cst_23 = arith.constant 0.000000e+00 : f32
    %28 = vector.broadcast %cst_23 : f32 to vector<1x8x128xf32>
    %29 = arith.maximumf %27, %28 : vector<1x8x128xf32>
    %c0_i32 = arith.constant 0 : i32
    %30 = arith.cmpi sgt, %arg1, %c0_i32 : i32
    %31 = arith.extui %30 : i1 to i32
    %32 = arith.sitofp %31 : i32 to f32
    %33 = vector.broadcast %32 : f32 to vector<1x8x128xf32>
    %34 = arith.mulf %29, %33 : vector<1x8x128xf32>
    %c0_24 = arith.constant 0 : index
    %c0_25 = arith.constant 0 : index
    %c0_26 = arith.constant 0 : index
    %c0_27 = arith.constant 0 : index
    %35 = vector.load %arg4[%c0_24, %c0_25, %c0_26, %c0_27] : memref<1x1x8x128xf32, #tpu.memory_space<vmem>>, vector<1x1x8x128xf32>
    %36 = vector.shape_cast %35 : vector<1x1x8x128xf32> to vector<1x8x128xf32>
    %c0_28 = arith.constant 0 : index
    %c0_29 = arith.constant 0 : index
    %c0_30 = arith.constant 0 : index
    %37 = vector.load %arg7[%c0_28, %c0_29, %c0_30] : memref<1x1x128xf32, #tpu.memory_space<vmem>>, vector<1x1x128xf32>
    %38 = vector.shape_cast %37 : vector<1x1x128xf32> to vector<1x128xf32>
    %39 = vector.shape_cast %38 : vector<1x128xf32> to vector<1x1x128xf32>
    %40 = vector.broadcast %39 : vector<1x1x128xf32> to vector<1x8x128xf32>
    %41 = arith.mulf %36, %40 : vector<1x8x128xf32>
    %c0_31 = arith.constant 0 : index
    %c0_32 = arith.constant 0 : index
    %c0_33 = arith.constant 0 : index
    %42 = vector.load %arg8[%c0_31, %c0_32, %c0_33] : memref<1x1x128xf32, #tpu.memory_space<vmem>>, vector<1x1x128xf32>
    %43 = vector.shape_cast %42 : vector<1x1x128xf32> to vector<1x128xf32>
    %44 = vector.shape_cast %43 : vector<1x128xf32> to vector<1x1x128xf32>
    %45 = vector.broadcast %44 : vector<1x1x128xf32> to vector<1x8x128xf32>
    %46 = arith.addf %41, %45 : vector<1x8x128xf32>
    %cst_34 = arith.constant 0.000000e+00 : f32
    %47 = vector.broadcast %cst_34 : f32 to vector<1x8x128xf32>
    %48 = arith.maximumf %46, %47 : vector<1x8x128xf32>
    %c1_i32 = arith.constant 1 : i32
    %49 = arith.cmpi slt, %arg1, %c1_i32 : i32
    %50 = arith.extui %49 : i1 to i32
    %51 = arith.sitofp %50 : i32 to f32
    %52 = vector.broadcast %51 : f32 to vector<1x8x128xf32>
    %53 = arith.mulf %48, %52 : vector<1x8x128xf32>
    %c1 = arith.constant 1 : index
    %c1_35 = arith.constant 1 : index
    %c16 = arith.constant 16 : index
    %54 = vector.load %arg11[%c1, %c1_35, %c16] : memref<6x10x160xf32, #tpu.memory_space<vmem>>, vector<4x8x128xf32>
    tpu.vector_store %arg11[%c1, %c1_35, %c16], %15 {strides = array<i32>} : memref<6x10x160xf32, #tpu.memory_space<vmem>>, vector<4x8x128xf32>,
    %c0_36 = arith.constant 0 : index
    %c1_37 = arith.constant 1 : index
    %c16_38 = arith.constant 16 : index
    %55 = vector.load %arg11[%c0_36, %c1_37, %c16_38] : memref<6x10x160xf32, #tpu.memory_space<vmem>>, vector<1x8x128xf32>
    tpu.vector_store %arg11[%c0_36, %c1_37, %c16_38], %34 {strides = array<i32>} : memref<6x10x160xf32, #tpu.memory_space<vmem>>, vector<1x8x128xf32>,
    %c5 = arith.constant 5 : index
    %c1_39 = arith.constant 1 : index
    %c16_40 = arith.constant 16 : index
    %56 = vector.load %arg11[%c5, %c1_39, %c16_40] : memref<6x10x160xf32, #tpu.memory_space<vmem>>, vector<1x8x128xf32>
    tpu.vector_store %arg11[%c5, %c1_39, %c16_40], %53 {strides = array<i32>} : memref<6x10x160xf32, #tpu.memory_space<vmem>>, vector<1x8x128xf32>,
    %cst_41 = arith.constant 0.000000e+00 : f32
    %57 = vector.broadcast %cst_41 : f32 to vector<32x128xf32>
    %c0_42 = arith.constant 0 : index
    %c0_43 = arith.constant 0 : index
    %c0_44 = arith.constant 0 : index
    %58 = vector.load %arg11[%c0_42, %c0_43, %c0_44] : memref<6x10x160xf32, #tpu.memory_space<vmem>>, vector<4x8x160xf32>
    %59 = vector.shape_cast %58 : vector<4x8x160xf32> to vector<32x160xf32>
    %60 = arith.truncf %59 : vector<32x160xf32> to vector<32x160xbf16>
    %c0_45 = arith.constant 0 : index
    %c0_46 = arith.constant 0 : index
    %c0_47 = arith.constant 0 : index
    %61 = vector.load %arg5[%c0_45, %c0_46, %c0_47] : memref<9x160x128xbf16, #tpu.memory_space<vmem>>, vector<1x160x128xbf16>
    %62 = vector.shape_cast %61 : vector<1x160x128xbf16> to vector<160x128xbf16>
    %cst_48 = arith.constant dense<0.000000e+00> : vector<32x128xf32>
    %63 = tpu.matmul %60, %62, %cst_48 {dimension_numbers = #tpu.dot_dimension_numbers<[1], [0], [0], [1], [0, 0, 1, 1], [], []>} : vector<32x160xbf16>, vector<160x128xbf16>, vector<32x128xf32> -> vector<32x128xf32>
    %64 = arith.addf %57, %63 : vector<32x128xf32>
    %c0_49 = arith.constant 0 : index
    %c1_50 = arith.constant 1 : index
    %c0_51 = arith.constant 0 : index
    %65 = vector.load %arg11[%c0_49, %c1_50, %c0_51] : memref<6x10x160xf32, #tpu.memory_space<vmem>>, vector<4x8x160xf32>
    %66 = vector.shape_cast %65 : vector<4x8x160xf32> to vector<32x160xf32>
    %67 = arith.truncf %66 : vector<32x160xf32> to vector<32x160xbf16>
    %c1_52 = arith.constant 1 : index
    %c0_53 = arith.constant 0 : index
    %c0_54 = arith.constant 0 : index
    %68 = vector.load %arg5[%c1_52, %c0_53, %c0_54] : memref<9x160x128xbf16, #tpu.memory_space<vmem>>, vector<1x160x128xbf16>
    %69 = vector.shape_cast %68 : vector<1x160x128xbf16> to vector<160x128xbf16>
    %cst_55 = arith.constant dense<0.000000e+00> : vector<32x128xf32>
    %70 = tpu.matmul %67, %69, %cst_55 {dimension_numbers = #tpu.dot_dimension_numbers<[1], [0], [0], [1], [0, 0, 1, 1], [], []>} : vector<32x160xbf16>, vector<160x128xbf16>, vector<32x128xf32> -> vector<32x128xf32>
    %71 = arith.addf %64, %70 : vector<32x128xf32>
    %c0_56 = arith.constant 0 : index
    %c2 = arith.constant 2 : index
    %c0_57 = arith.constant 0 : index
    %72 = vector.load %arg11[%c0_56, %c2, %c0_57] : memref<6x10x160xf32, #tpu.memory_space<vmem>>, vector<4x8x160xf32>
    %73 = vector.shape_cast %72 : vector<4x8x160xf32> to vector<32x160xf32>
    %74 = arith.truncf %73 : vector<32x160xf32> to vector<32x160xbf16>
    %c2_58 = arith.constant 2 : index
    %c0_59 = arith.constant 0 : index
    %c0_60 = arith.constant 0 : index
    %75 = vector.load %arg5[%c2_58, %c0_59, %c0_60] : memref<9x160x128xbf16, #tpu.memory_space<vmem>>, vector<1x160x128xbf16>
    %76 = vector.shape_cast %75 : vector<1x160x128xbf16> to vector<160x128xbf16>
    %cst_61 = arith.constant dense<0.000000e+00> : vector<32x128xf32>
    %77 = tpu.matmul %74, %76, %cst_61 {dimension_numbers = #tpu.dot_dimension_numbers<[1], [0], [0], [1], [0, 0, 1, 1], [], []>} : vector<32x160xbf16>, vector<160x128xbf16>, vector<32x128xf32> -> vector<32x128xf32>
    %78 = arith.addf %71, %77 : vector<32x128xf32>
    %c1_62 = arith.constant 1 : index
    %c0_63 = arith.constant 0 : index
    %c0_64 = arith.constant 0 : index
    %79 = vector.load %arg11[%c1_62, %c0_63, %c0_64] : memref<6x10x160xf32, #tpu.memory_space<vmem>>, vector<4x8x160xf32>
    %80 = vector.shape_cast %79 : vector<4x8x160xf32> to vector<32x160xf32>
    %81 = arith.truncf %80 : vector<32x160xf32> to vector<32x160xbf16>
    %c3 = arith.constant 3 : index
    %c0_65 = arith.constant 0 : index
    %c0_66 = arith.constant 0 : index
    %82 = vector.load %arg5[%c3, %c0_65, %c0_66] : memref<9x160x128xbf16, #tpu.memory_space<vmem>>, vector<1x160x128xbf16>
    %83 = vector.shape_cast %82 : vector<1x160x128xbf16> to vector<160x128xbf16>
    %cst_67 = arith.constant dense<0.000000e+00> : vector<32x128xf32>
    %84 = tpu.matmul %81, %83, %cst_67 {dimension_numbers = #tpu.dot_dimension_numbers<[1], [0], [0], [1], [0, 0, 1, 1], [], []>} : vector<32x160xbf16>, vector<160x128xbf16>, vector<32x128xf32> -> vector<32x128xf32>
    %85 = arith.addf %78, %84 : vector<32x128xf32>
    %c1_68 = arith.constant 1 : index
    %c1_69 = arith.constant 1 : index
    %c0_70 = arith.constant 0 : index
    %86 = vector.load %arg11[%c1_68, %c1_69, %c0_70] : memref<6x10x160xf32, #tpu.memory_space<vmem>>, vector<4x8x160xf32>
    %87 = vector.shape_cast %86 : vector<4x8x160xf32> to vector<32x160xf32>
    %88 = arith.truncf %87 : vector<32x160xf32> to vector<32x160xbf16>
    %c4 = arith.constant 4 : index
    %c0_71 = arith.constant 0 : index
    %c0_72 = arith.constant 0 : index
    %89 = vector.load %arg5[%c4, %c0_71, %c0_72] : memref<9x160x128xbf16, #tpu.memory_space<vmem>>, vector<1x160x128xbf16>
    %90 = vector.shape_cast %89 : vector<1x160x128xbf16> to vector<160x128xbf16>
    %cst_73 = arith.constant dense<0.000000e+00> : vector<32x128xf32>
    %91 = tpu.matmul %88, %90, %cst_73 {dimension_numbers = #tpu.dot_dimension_numbers<[1], [0], [0], [1], [0, 0, 1, 1], [], []>} : vector<32x160xbf16>, vector<160x128xbf16>, vector<32x128xf32> -> vector<32x128xf32>
    %92 = arith.addf %85, %91 : vector<32x128xf32>
    %c1_74 = arith.constant 1 : index
    %c2_75 = arith.constant 2 : index
    %c0_76 = arith.constant 0 : index
    %93 = vector.load %arg11[%c1_74, %c2_75, %c0_76] : memref<6x10x160xf32, #tpu.memory_space<vmem>>, vector<4x8x160xf32>
    %94 = vector.shape_cast %93 : vector<4x8x160xf32> to vector<32x160xf32>
    %95 = arith.truncf %94 : vector<32x160xf32> to vector<32x160xbf16>
    %c5_77 = arith.constant 5 : index
    %c0_78 = arith.constant 0 : index
    %c0_79 = arith.constant 0 : index
    %96 = vector.load %arg5[%c5_77, %c0_78, %c0_79] : memref<9x160x128xbf16, #tpu.memory_space<vmem>>, vector<1x160x128xbf16>
    %97 = vector.shape_cast %96 : vector<1x160x128xbf16> to vector<160x128xbf16>
    %cst_80 = arith.constant dense<0.000000e+00> : vector<32x128xf32>
    %98 = tpu.matmul %95, %97, %cst_80 {dimension_numbers = #tpu.dot_dimension_numbers<[1], [0], [0], [1], [0, 0, 1, 1], [], []>} : vector<32x160xbf16>, vector<160x128xbf16>, vector<32x128xf32> -> vector<32x128xf32>
    %99 = arith.addf %92, %98 : vector<32x128xf32>
    %c2_81 = arith.constant 2 : index
    %c0_82 = arith.constant 0 : index
    %c0_83 = arith.constant 0 : index
    %100 = vector.load %arg11[%c2_81, %c0_82, %c0_83] : memref<6x10x160xf32, #tpu.memory_space<vmem>>, vector<4x8x160xf32>
    %101 = vector.shape_cast %100 : vector<4x8x160xf32> to vector<32x160xf32>
    %102 = arith.truncf %101 : vector<32x160xf32> to vector<32x160xbf16>
    %c6 = arith.constant 6 : index
    %c0_84 = arith.constant 0 : index
    %c0_85 = arith.constant 0 : index
    %103 = vector.load %arg5[%c6, %c0_84, %c0_85] : memref<9x160x128xbf16, #tpu.memory_space<vmem>>, vector<1x160x128xbf16>
    %104 = vector.shape_cast %103 : vector<1x160x128xbf16> to vector<160x128xbf16>
    %cst_86 = arith.constant dense<0.000000e+00> : vector<32x128xf32>
    %105 = tpu.matmul %102, %104, %cst_86 {dimension_numbers = #tpu.dot_dimension_numbers<[1], [0], [0], [1], [0, 0, 1, 1], [], []>} : vector<32x160xbf16>, vector<160x128xbf16>, vector<32x128xf32> -> vector<32x128xf32>
    %106 = arith.addf %99, %105 : vector<32x128xf32>
    %c2_87 = arith.constant 2 : index
    %c1_88 = arith.constant 1 : index
    %c0_89 = arith.constant 0 : index
    %107 = vector.load %arg11[%c2_87, %c1_88, %c0_89] : memref<6x10x160xf32, #tpu.memory_space<vmem>>, vector<4x8x160xf32>
    %108 = vector.shape_cast %107 : vector<4x8x160xf32> to vector<32x160xf32>
    %109 = arith.truncf %108 : vector<32x160xf32> to vector<32x160xbf16>
    %c7 = arith.constant 7 : index
    %c0_90 = arith.constant 0 : index
    %c0_91 = arith.constant 0 : index
    %110 = vector.load %arg5[%c7, %c0_90, %c0_91] : memref<9x160x128xbf16, #tpu.memory_space<vmem>>, vector<1x160x128xbf16>
    %111 = vector.shape_cast %110 : vector<1x160x128xbf16> to vector<160x128xbf16>
    %cst_92 = arith.constant dense<0.000000e+00> : vector<32x128xf32>
    %112 = tpu.matmul %109, %111, %cst_92 {dimension_numbers = #tpu.dot_dimension_numbers<[1], [0], [0], [1], [0, 0, 1, 1], [], []>} : vector<32x160xbf16>, vector<160x128xbf16>, vector<32x128xf32> -> vector<32x128xf32>
    %113 = arith.addf %106, %112 : vector<32x128xf32>
    %c2_93 = arith.constant 2 : index
    %c2_94 = arith.constant 2 : index
    %c0_95 = arith.constant 0 : index
    %114 = vector.load %arg11[%c2_93, %c2_94, %c0_95] : memref<6x10x160xf32, #tpu.memory_space<vmem>>, vector<4x8x160xf32>
    %115 = vector.shape_cast %114 : vector<4x8x160xf32> to vector<32x160xf32>
    %116 = arith.truncf %115 : vector<32x160xf32> to vector<32x160xbf16>
    %c8 = arith.constant 8 : index
    %c0_96 = arith.constant 0 : index
    %c0_97 = arith.constant 0 : index
    %117 = vector.load %arg5[%c8, %c0_96, %c0_97] : memref<9x160x128xbf16, #tpu.memory_space<vmem>>, vector<1x160x128xbf16>
    %118 = vector.shape_cast %117 : vector<1x160x128xbf16> to vector<160x128xbf16>
    %cst_98 = arith.constant dense<0.000000e+00> : vector<32x128xf32>
    %119 = tpu.matmul %116, %118, %cst_98 {dimension_numbers = #tpu.dot_dimension_numbers<[1], [0], [0], [1], [0, 0, 1, 1], [], []>} : vector<32x160xbf16>, vector<160x128xbf16>, vector<32x128xf32> -> vector<32x128xf32>
    %120 = arith.addf %113, %119 : vector<32x128xf32>
    %c0_99 = arith.constant 0 : index
    %c0_100 = arith.constant 0 : index
    %121 = vector.load %arg6[%c0_99, %c0_100] : memref<1x128xf32, #tpu.memory_space<vmem>>, vector<1x128xf32>
    %122 = vector.broadcast %121 : vector<1x128xf32> to vector<32x128xf32>
    %123 = arith.addf %120, %122 : vector<32x128xf32>
    %cst_101 = arith.constant dense<0.000000e+00> : vector<128xf32>
    %124 = vector.multi_reduction <add>, %123, %cst_101 [0] : vector<32x128xf32> to vector<128xf32>
    %125 = vector.shape_cast %124 : vector<128xf32> to vector<1x128xf32>
    %c0_102 = arith.constant 0 : index
    %c0_103 = arith.constant 0 : index
    %c0_104 = arith.constant 0 : index
    %c0_105 = arith.constant 0 : index
    %126 = vector.load %arg10[%c0_102, %c0_103, %c0_104, %c0_105] : memref<1x1x2x128xf32, #tpu.memory_space<vmem>>, vector<1x1x1x128xf32>
    %127 = vector.shape_cast %126 : vector<1x1x1x128xf32> to vector<1x128xf32>
    %128 = vector.shape_cast %125 : vector<1x128xf32> to vector<1x1x1x128xf32>
    tpu.vector_store %arg10[%c0_102, %c0_103, %c0_104, %c0_105], %128 {strides = array<i32>} : memref<1x1x2x128xf32, #tpu.memory_space<vmem>>, vector<1x1x1x128xf32>,
    %129 = arith.mulf %123, %123 : vector<32x128xf32>
    %cst_106 = arith.constant dense<0.000000e+00> : vector<128xf32>
    %130 = vector.multi_reduction <add>, %129, %cst_106 [0] : vector<32x128xf32> to vector<128xf32>
    %131 = vector.shape_cast %130 : vector<128xf32> to vector<1x128xf32>
    %c0_107 = arith.constant 0 : index
    %c0_108 = arith.constant 0 : index
    %c1_109 = arith.constant 1 : index
    %c0_110 = arith.constant 0 : index
    %132 = vector.load %arg10[%c0_107, %c0_108, %c1_109, %c0_110] : memref<1x1x2x128xf32, #tpu.memory_space<vmem>>, vector<1x1x1x128xf32>
    %133 = vector.shape_cast %132 : vector<1x1x1x128xf32> to vector<1x128xf32>
    %134 = vector.shape_cast %131 : vector<1x128xf32> to vector<1x1x1x128xf32>
    tpu.vector_store %arg10[%c0_107, %c0_108, %c1_109, %c0_110], %134 {strides = array<i32>} : memref<1x1x2x128xf32, #tpu.memory_space<vmem>>, vector<1x1x1x128xf32>,
    %135 = vector.shape_cast %123 : vector<32x128xf32> to vector<4x8x128xf32>
    %c0_111 = arith.constant 0 : index
    %c0_112 = arith.constant 0 : index
    %c0_113 = arith.constant 0 : index
    %c0_114 = arith.constant 0 : index
    %136 = vector.load %arg9[%c0_111, %c0_112, %c0_113, %c0_114] : memref<1x4x8x128xf32, #tpu.memory_space<vmem>>, vector<1x4x8x128xf32>
    %137 = vector.shape_cast %136 : vector<1x4x8x128xf32> to vector<4x8x128xf32>
    %138 = vector.shape_cast %135 : vector<4x8x128xf32> to vector<1x4x8x128xf32>
    tpu.vector_store %arg9[%c0_111, %c0_112, %c0_113, %c0_114], %138 {strides = array<i32>} : memref<1x4x8x128xf32, #tpu.memory_space<vmem>>, vector<1x4x8x128xf32>,
    return
  }
  func.func @transform_0(%arg0: i32, %arg1: i32) -> (i32, i32, i32, i32) {
    %c4_i32 = arith.constant 4 : i32
    %0 = arith.muli %arg1, %c4_i32 : i32
    %c1_i32 = arith.constant 1 : i32
    %1 = arith.subi %0, %c1_i32 : i32
    %c0_i32 = arith.constant 0 : i32
    %2 = arith.maxsi %1, %c0_i32 : i32
    %c0_i32_0 = arith.constant 0 : i32
    %c0_i32_1 = arith.constant 0 : i32
    %c0_i32_2 = arith.constant 0 : i32
    return %arg0, %2, %c0_i32_0, %c0_i32_1 : i32, i32, i32, i32
  }
  func.func @transform_1(%arg0: i32, %arg1: i32) -> (i32, i32, i32, i32) {
    %c0_i32 = arith.constant 0 : i32
    %c0_i32_0 = arith.constant 0 : i32
    %c0_i32_1 = arith.constant 0 : i32
    return %arg0, %arg1, %c0_i32, %c0_i32_0 : i32, i32, i32, i32
  }
  func.func @transform_2(%arg0: i32, %arg1: i32) -> (i32, i32, i32, i32) {
    %c4_i32 = arith.constant 4 : i32
    %0 = arith.muli %arg1, %c4_i32 : i32
    %c4_i32_0 = arith.constant 4 : i32
    %1 = arith.addi %0, %c4_i32_0 : i32
    %c7_i32 = arith.constant 7 : i32
    %2 = arith.minsi %1, %c7_i32 : i32
    %c0_i32 = arith.constant 0 : i32
    %c0_i32_1 = arith.constant 0 : i32
    %c0_i32_2 = arith.constant 0 : i32
    return %arg0, %2, %c0_i32, %c0_i32_1 : i32, i32, i32, i32
  }
  func.func @transform_3(%arg0: i32, %arg1: i32) -> (i32, i32, i32) {
    %c0_i32 = arith.constant 0 : i32
    %c0_i32_0 = arith.constant 0 : i32
    %c0_i32_1 = arith.constant 0 : i32
    %c0_i32_2 = arith.constant 0 : i32
    return %c0_i32, %c0_i32_0, %c0_i32_1 : i32, i32, i32
  }
  func.func @transform_4(%arg0: i32, %arg1: i32) -> (i32, i32) {
    %c0_i32 = arith.constant 0 : i32
    %c0_i32_0 = arith.constant 0 : i32
    %c0_i32_1 = arith.constant 0 : i32
    return %c0_i32, %c0_i32_0 : i32, i32
  }
  func.func @transform_5(%arg0: i32, %arg1: i32) -> (i32, i32, i32) {
    %c0_i32 = arith.constant 0 : i32
    %c0_i32_0 = arith.constant 0 : i32
    %c0_i32_1 = arith.constant 0 : i32
    return %arg0, %c0_i32, %c0_i32_0 : i32, i32, i32
  }
  func.func @transform_6(%arg0: i32, %arg1: i32) -> (i32, i32, i32) {
    %c0_i32 = arith.constant 0 : i32
    %c0_i32_0 = arith.constant 0 : i32
    %c0_i32_1 = arith.constant 0 : i32
    return %arg0, %c0_i32, %c0_i32_0 : i32, i32, i32
  }
  func.func @transform_7(%arg0: i32, %arg1: i32) -> (i32, i32, i32, i32) {
    %c0_i32 = arith.constant 0 : i32
    %c0_i32_0 = arith.constant 0 : i32
    %c0_i32_1 = arith.constant 0 : i32
    return %arg0, %arg1, %c0_i32, %c0_i32_0 : i32, i32, i32, i32
  }
  func.func @transform_8(%arg0: i32, %arg1: i32) -> (i32, i32, i32, i32) {
    %c0_i32 = arith.constant 0 : i32
    %c0_i32_0 = arith.constant 0 : i32
    %c0_i32_1 = arith.constant 0 : i32
    return %arg0, %arg1, %c0_i32, %c0_i32_0 : i32, i32, i32, i32
  }
}

module attributes {stable_mosaic.version = 11 : i64} {
  func.func @_gn_apply_kernel(%arg0: i32, %arg1: i32, %arg2: memref<1x4x8x128xf32, #tpu.memory_space<vmem>>, %arg3: memref<1x1x128xf32, #tpu.memory_space<vmem>>, %arg4: memref<1x1x128xf32, #tpu.memory_space<vmem>>, %arg5: memref<1x4x8x128xf32, #tpu.memory_space<vmem>>) attributes {dimension_semantics = [#tpu.dimension_semantics<parallel>, #tpu.dimension_semantics<parallel>], iteration_bounds = array<i64: 2, 2>, scalar_prefetch = 0 : i64, scratch_operands = 0 : i64, tpu.core_type = #tpu.core_type<tc>, window_params = [{transform_indices = @transform_0, window_bounds = array<i64: 1, 4, 8, 128>}, {transform_indices = @transform_1, window_bounds = array<i64: 1, 1, 128>}, {transform_indices = @transform_2, window_bounds = array<i64: 1, 1, 128>}, {transform_indices = @transform_3, window_bounds = array<i64: 1, 4, 8, 128>}]} {
    %c0 = arith.constant 0 : index
    %c0_0 = arith.constant 0 : index
    %c0_1 = arith.constant 0 : index
    %c0_2 = arith.constant 0 : index
    %0 = vector.load %arg2[%c0, %c0_0, %c0_1, %c0_2] : memref<1x4x8x128xf32, #tpu.memory_space<vmem>>, vector<1x4x8x128xf32>
    %1 = vector.shape_cast %0 : vector<1x4x8x128xf32> to vector<4x8x128xf32>
    %c0_3 = arith.constant 0 : index
    %c0_4 = arith.constant 0 : index
    %c0_5 = arith.constant 0 : index
    %2 = vector.load %arg3[%c0_3, %c0_4, %c0_5] : memref<1x1x128xf32, #tpu.memory_space<vmem>>, vector<1x1x128xf32>
    %3 = vector.shape_cast %2 : vector<1x1x128xf32> to vector<1x128xf32>
    %4 = vector.shape_cast %3 : vector<1x128xf32> to vector<1x1x128xf32>
    %c0_6 = arith.constant 0 : index
    %c0_7 = arith.constant 0 : index
    %c0_8 = arith.constant 0 : index
    %5 = vector.load %arg4[%c0_6, %c0_7, %c0_8] : memref<1x1x128xf32, #tpu.memory_space<vmem>>, vector<1x1x128xf32>
    %6 = vector.shape_cast %5 : vector<1x1x128xf32> to vector<1x128xf32>
    %7 = vector.shape_cast %6 : vector<1x128xf32> to vector<1x1x128xf32>
    %8 = vector.broadcast %4 : vector<1x1x128xf32> to vector<4x8x128xf32>
    %9 = arith.mulf %1, %8 : vector<4x8x128xf32>
    %10 = vector.broadcast %7 : vector<1x1x128xf32> to vector<4x8x128xf32>
    %11 = arith.addf %9, %10 : vector<4x8x128xf32>
    %cst = arith.constant 0.000000e+00 : f32
    %12 = vector.broadcast %cst : f32 to vector<4x8x128xf32>
    %13 = arith.maximumf %11, %12 : vector<4x8x128xf32>
    %c0_9 = arith.constant 0 : index
    %c0_10 = arith.constant 0 : index
    %c0_11 = arith.constant 0 : index
    %c0_12 = arith.constant 0 : index
    %14 = vector.load %arg5[%c0_9, %c0_10, %c0_11, %c0_12] : memref<1x4x8x128xf32, #tpu.memory_space<vmem>>, vector<1x4x8x128xf32>
    %15 = vector.shape_cast %14 : vector<1x4x8x128xf32> to vector<4x8x128xf32>
    %16 = vector.shape_cast %13 : vector<4x8x128xf32> to vector<1x4x8x128xf32>
    tpu.vector_store %arg5[%c0_9, %c0_10, %c0_11, %c0_12], %16 {strides = array<i32>} : memref<1x4x8x128xf32, #tpu.memory_space<vmem>>, vector<1x4x8x128xf32>,
    return
  }
  func.func @transform_0(%arg0: i32, %arg1: i32) -> (i32, i32, i32, i32) {
    %c0_i32 = arith.constant 0 : i32
    %c0_i32_0 = arith.constant 0 : i32
    %c0_i32_1 = arith.constant 0 : i32
    return %arg0, %arg1, %c0_i32, %c0_i32_0 : i32, i32, i32, i32
  }
  func.func @transform_1(%arg0: i32, %arg1: i32) -> (i32, i32, i32) {
    %c0_i32 = arith.constant 0 : i32
    %c0_i32_0 = arith.constant 0 : i32
    %c0_i32_1 = arith.constant 0 : i32
    return %arg0, %c0_i32, %c0_i32_0 : i32, i32, i32
  }
  func.func @transform_2(%arg0: i32, %arg1: i32) -> (i32, i32, i32) {
    %c0_i32 = arith.constant 0 : i32
    %c0_i32_0 = arith.constant 0 : i32
    %c0_i32_1 = arith.constant 0 : i32
    return %arg0, %c0_i32, %c0_i32_0 : i32, i32, i32
  }
  func.func @transform_3(%arg0: i32, %arg1: i32) -> (i32, i32, i32, i32) {
    %c0_i32 = arith.constant 0 : i32
    %c0_i32_0 = arith.constant 0 : i32
    %c0_i32_1 = arith.constant 0 : i32
    return %arg0, %arg1, %c0_i32, %c0_i32_0 : i32, i32, i32, i32
  }
}

</mosaic_0001>

<llo_original>
// kernel: tile.33
$region0: #{tile.33}
  #allocation0 [shape = 's32[1]{0}', space=sflag, size = 0x4, scoped, tag = 'scoped memory for tile.33']
  %s0 = inlined_call_operand.vmem [shape: f32[16], index: 0, kind: input, shape index: {}]
  %s1 = inlined_call_operand.vmem [shape: f32[8,16], index: 1, kind: output, shape index: {}]
  // Predicated region
  $region2: #{tile.33} parent=0 // pred_check
    _
  $region3: #{tile.33} parent=0 // pred_check_branch
    %3 = sbr.rel (0) target = $region5
  $region4: #{tile.33} parent=0 // pred_region
    _
  $region5: #{tile.33} parent=0 // pred_fallthru
    _
  %v4 = vld [vmem:[%s0] ss:$0 sm:$0xff]
  %5 = vst [vmem:[%s1] sm:$0xff] %v4

// kernel: tile.34
$region0: #{tile.34}
  %s0 = inlined_call_operand.vmem [shape: f32[8,16], index: 0, kind: input, shape index: {}]
  %s1 = inlined_call_operand.vmem [shape: f32[1,128], index: 1, kind: output, shape index: {}]
  $region1: #{tile.34} parent=0
    #allocation0 [shape = 'u8[4096]{0}', space=vmem, size = 0x1000, scoped, tag = 'scoped mem for output reshape']
    %v2 = vld [vmem:[%s0] sm:$0x1]
    %vm3 = vcmask 130048
    %4 = vst.msk [vmem:[#allocation0] sm:$0x1] %vm3, %v2
    %s5 = scalar_lea.vmem %s0, 7
    %v6 = vld [vmem:[%s5] sm:$0x1]
    %7 = vrot.lane.b32.xlu0 %v6, 112
    %v8 = vpop.permute.xlu0 %7
    %vm9 = vcmask 1048448
    %10 = vst.msk [vmem:[#allocation0] sm:$0x1] %vm9, %v8
    %s11 = scalar_lea.vmem %s0, 6
    %v12 = vld [vmem:[%s11] sm:$0x1]
    %13 = vrot.lane.b32.xlu0 %v12, 96
    %v14 = vpop.permute.xlu0 %13
    %vm15 = vcmask 917248
    %16 = vst.msk [vmem:[#allocation0] sm:$0x1] %vm15, %v14
    %s17 = scalar_lea.vmem %s0, 5
    %v18 = vld [vmem:[%s17] sm:$0x1]
    %19 = vrot.lane.b32.xlu0 %v18, 80
    %v20 = vpop.permute.xlu0 %19
    %vm21 = vcmask 786048
    %22 = vst.msk [vmem:[#allocation0] sm:$0x1] %vm21, %v20
    %s23 = scalar_lea.vmem %s0, 4
    %v24 = vld [vmem:[%s23] sm:$0x1]
    %25 = vrot.lane.b32.xlu0 %v24, 64
    %v26 = vpop.permute.xlu0 %25
    %vm27 = vcmask 654848
    %28 = vst.msk [vmem:[#allocation0] sm:$0x1] %vm27, %v26
    %s29 = scalar_lea.vmem %s0, 3
    %v30 = vld [vmem:[%s29] sm:$0x1]
    %31 = vrot.lane.b32.xlu0 %v30, 48
    %v32 = vpop.permute.xlu0 %31
    %vm33 = vcmask 523648
    %34 = vst.msk [vmem:[#allocation0] sm:$0x1] %vm33, %v32
    %s35 = scalar_lea.vmem %s0, 2
    %v36 = vld [vmem:[%s35] sm:$0x1]
    %37 = vrot.lane.b32.xlu0 %v36, 32
    %v38 = vpop.permute.xlu0 %37
    %vm39 = vcmask 392448
    %40 = vst.msk [vmem:[#allocation0] sm:$0x1] %vm39, %v38
    %s41 = scalar_lea.vmem %s0, 1
    %v42 = vld [vmem:[%s41] sm:$0x1]
    %43 = vrot.lane.b32.xlu0 %v42, 16
    %v44 = vpop.permute.xlu0 %43
    %vm45 = vcmask 261248
    %46 = vst.msk [vmem:[#allocation0] sm:$0x1] %vm45, %v44
    %s48 = ssub.s32 2, 1
    %v49 = vld [vmem:[#allocation0] sm:%s48]
    %s51 = ssub.s32 2, 1
    %52 = vst [vmem:[%s1] sm:%s51] %v49

// kernel: squeeze.4
$region0: #{squeeze.4}
  %s0 = inlined_call_operand.vmem [shape: f32[2,16], index: 0, kind: input, shape index: {}]
  %s1 = inlined_call_operand.vmem [shape: f32[2,8,2], index: 1, kind: output, shape index: {}]
  $region1: #{squeeze.4} parent=0
    #allocation0 [shape = 'u8[4096]{0}', space=vmem, size = 0x1000, scoped, tag = 'scoped mem for input reshape']
    %s3 = ssub.s32 4, 1
    %v4 = vld [vmem:[%s0] sm:%s3]
    %5 = vst [vmem:[#allocation0] sm:%s3] %v4
    %v6 = vld [vmem:[#allocation0] sm:$0x3]
    %vm7 = vcmask 15360
    %8 = vst.msk [vmem:[%s1] ss:$8 sm:$0x3] %vm7, %v6
    %v9 = vld [vmem:[#allocation0] sm:$0x3]
    %10 = vrot.lane.b32.xlu0 %v9, 126
    %v11 = vpop.permute.xlu0 %10
    %vm12 = vcmask 15360
    %s13 = scalar_lea.vmem %s1, 1
    %14 = vst.msk [vmem:[%s13] ss:$8 sm:$0x3] %vm12, %v11
    %v15 = vld [vmem:[#allocation0] sm:$0x3]
    %16 = vrot.lane.b32.xlu0 %v15, 124
    %v17 = vpop.permute.xlu0 %16
    %vm18 = vcmask 15360
    %s19 = scalar_lea.vmem %s1, 2
    %20 = vst.msk [vmem:[%s19] ss:$8 sm:$0x3] %vm18, %v17
    %v21 = vld [vmem:[#allocation0] sm:$0x3]
    %22 = vrot.lane.b32.xlu0 %v21, 122
    %v23 = vpop.permute.xlu0 %22
    %vm24 = vcmask 15360
    %s25 = scalar_lea.vmem %s1, 3
    %26 = vst.msk [vmem:[%s25] ss:$8 sm:$0x3] %vm24, %v23
    %v27 = vld [vmem:[#allocation0] sm:$0x3]
    %28 = vrot.lane.b32.xlu0 %v27, 120
    %v29 = vpop.permute.xlu0 %28
    %vm30 = vcmask 15360
    %s31 = scalar_lea.vmem %s1, 4
    %32 = vst.msk [vmem:[%s31] ss:$8 sm:$0x3] %vm30, %v29
    %v33 = vld [vmem:[#allocation0] sm:$0x3]
    %34 = vrot.lane.b32.xlu0 %v33, 118
    %v35 = vpop.permute.xlu0 %34
    %vm36 = vcmask 15360
    %s37 = scalar_lea.vmem %s1, 5
    %38 = vst.msk [vmem:[%s37] ss:$8 sm:$0x3] %vm36, %v35
    %v39 = vld [vmem:[#allocation0] sm:$0x3]
    %40 = vrot.lane.b32.xlu0 %v39, 116
    %v41 = vpop.permute.xlu0 %40
    %vm42 = vcmask 15360
    %s43 = scalar_lea.vmem %s1, 6
    %44 = vst.msk [vmem:[%s43] ss:$8 sm:$0x3] %vm42, %v41
    %v45 = vld [vmem:[#allocation0] sm:$0x3]
    %46 = vrot.lane.b32.xlu0 %v45, 114
    %v47 = vpop.permute.xlu0 %46
    %vm48 = vcmask 15360
    %s49 = scalar_lea.vmem %s1, 7
    %50 = vst.msk [vmem:[%s49] ss:$8 sm:$0x3] %vm48, %v47

// kernel: conv_block3d_forward.3
$region0: #{conv_block3d_forward.3}
  #allocation0 [shape = 'u32[]', space=smem, size = 0x4, offset = 0x4, fixed_abs, tag = 'smem constant byte address 0x4 - core index']
  #allocation1 [shape = 'u32[72,128]{1,0:T(1,128)}', space=vmem, size = 0x9000, scoped, tag = 'internal scratch']
  #allocation2 [shape = 'f32[6,10,40]{2,1,0:T(8,128)}', space=vmem, size = 0xc000, scoped, tag = 'scratch operand']
  %s0 = inlined_call_operand.vmem [shape: f32[2,8,8,32], index: 0, kind: input, shape index: {}, may-alias: {0,1,2}]
  %s1 = inlined_call_operand.vmem [shape: f32[2,8,8,32], index: 1, kind: input, shape index: {}, may-alias: {0,1,2}]
  %s2 = inlined_call_operand.vmem [shape: f32[2,8,8,32], index: 2, kind: input, shape index: {}, may-alias: {0,1,2}]
  %s3 = inlined_call_operand.vmem [shape: bf16[9,40,128], index: 3, kind: input, shape index: {}]
  %s4 = inlined_call_operand.vmem [shape: f32[1,128], index: 4, kind: input, shape index: {}]
  %s5 = inlined_call_operand.vmem [shape: f32[2,1,32], index: 5, kind: input, shape index: {}, may-alias: {5,6}]
  %s6 = inlined_call_operand.vmem [shape: f32[2,1,32], index: 6, kind: input, shape index: {}, may-alias: {5,6}]
  %s7 = inlined_call_operand.vmem [shape: f32[2,8,8,128], index: 7, kind: output, shape index: {0}]
  %s8 = inlined_call_operand.vmem [shape: f32[2,2,2,128], index: 8, kind: output, shape index: {1}]
  %9 = xla_tuple %s7, %s8
  %s10 = sld [smem:[#allocation0]]
  $region69: #{conv_block3d_forward.3} parent=0
    _
  %s12 = ssub.s32 1, %s10
  %s13 = scalar_select 0, %s12, %s10
  loop: start=0, step=1, limit=6
  $region2: #{conv_block3d_forward.3} parent=0 // loop_pre_header
    _
  $region3: #{conv_block3d_forward.3} parent=0 // loop_header
    %s15 = sphi 0, %s19
    %p16 = scmp.ge.s32.totalorder %s15, 6
    %s22 = sphi 0, %s34
    %s23 = sphi 0, %s30
    %s24 = sphi 0, %s22
    %s25 = sphi 0, %s23
    %s26 = sphi 0, %s24
    %s27 = sphi 0, %s25
    %s47 = sphi 0, %s49
    %s50 = sphi 0, %s47
    %s51 = sphi 0, %s50
    %s67 = sphi 0, %s51
    %s75 = sphi 0, %s77
    %s78 = sphi 0, %s75
    %s79 = sphi 0, %s78
    %s95 = sphi 0, %s79
    %s111 = sphi 0, %s113
    %s114 = sphi 0, %s111
    %s115 = sphi 0, %s114
    %s131 = sphi 0, %s115
    %s135 = sphi 0, %s135
    %s137 = sphi 0, %s135
    %s138 = sphi 0, %s137
    %s152 = sphi 0, %s138
    %s156 = sphi 0, %s156
    %s158 = sphi 0, %s156
    %s159 = sphi 0, %s158
    %s173 = sphi 0, %s159
    %s179 = sphi 0, %s181
    %s182 = sphi 0, %s179
    %s183 = sphi 0, %s182
    %s199 = sphi 0, %s183
    %s205 = sphi 0, %s207
    %s208 = sphi 0, %s205
    %s209 = sphi 0, %s208
    %s225 = sphi 0, %s209
    %s233 = sphi 0, %s235
    %s236 = sphi 0, %s233
    %s237 = sphi 0, %s236
    %s253 = sphi 0, %s237
    %s261 = sphi 0, %s263
    %s264 = sphi 0, %s261
    %s265 = sphi 0, %s264
    %s281 = sphi 0, %s265
  $region4: #{conv_block3d_forward.3} parent=0 // loop_header_branch
    %18 = sbr.rel (%p16) target = $region8
  $region5: #{conv_block3d_forward.3} parent=0 // loop_body
    %s20 = ssub.s32 %s15, 1
    %s21 = ssub.s32 %s15, 2
    %s28 = sadd.s32 1, %s23
    %p29 = scmp.ge.s32.totalorder %s28, 2
    %s30 = scalar_select %p29, 0, %s28
    %s31 = sadd.s32 1, %s22
    %s32 = scalar_select %p29, %s31, %s22
    %p33 = scmp.ge.s32.totalorder %s32, 2
    %s34 = scalar_select %p33, 0, %s32
    %s35 = smul.u32 %s23, 4
    %s36 = ssub.s32 %s35, 1
    %p37 = scmp.gt.s32.totalorder %s36, 0
    %s38 = scalar_select %p37, %s36, 0
    %s39 = smul.u32 %s30, 4
    %s40 = ssub.s32 %s39, 1
    %p41 = scmp.gt.s32.totalorder %s40, 0
    %s42 = scalar_select %p41, %s40, 0
    %s43 = ssub.s32 %s22, %s34
    %s44 = ssub.s32 %s38, %s42
    %s45 = sor.u32 %s43, %s44
    %p46 = scmp.eq.s32.totalorder %s45, 0
    %s48 = sadd.s32 %s47, 1
    %s49 = scalar_select %p46, %s47, %s48
    %p52 = pneg %p46
    %p53 = scmp.eq.s32.totalorder %s15, 3
    %p54 = por %p52, %p53
    %p55 = scmp.ne.s32.totalorder %s47, %s50
    %p56 = scmp.eq.s32.totalorder %s15, 0
    %p57 = por %p55, %p56
    %p58 = scmp.ne.s32.totalorder %s47, %s50
    %p59 = scmp.eq.s32.totalorder %s20, 3
    %p60 = por %p58, %p59
    %p61 = scmp.ne.s32.totalorder %s50, %s51
    %p62 = scmp.eq.s32.totalorder %s20, 0
    %p63 = por %p61, %p62
    %p64 = scmp.ne.s32.totalorder %s50, %s51
    %p65 = scmp.eq.s32.totalorder %s21, 3
    %p66 = por %p64, %p65
    %p68 = scmp.ne.s32.totalorder %s51, %s67
    %p69 = scmp.eq.s32.totalorder %s21, 0
    %p70 = por %p68, %p69
    %s71 = ssub.s32 %s22, %s34
    %s72 = ssub.s32 %s23, %s30
    %s73 = sor.u32 %s71, %s72
    %p74 = scmp.eq.s32.totalorder %s73, 0
    %s76 = sadd.s32 %s75, 1
    %s77 = scalar_select %p74, %s75, %s76
    %p80 = pneg %p74
    %p81 = scmp.eq.s32.totalorder %s15, 3
    %p82 = por %p80, %p81
    %p83 = scmp.ne.s32.totalorder %s75, %s78
    %p84 = scmp.eq.s32.totalorder %s15, 0
    %p85 = por %p83, %p84
    %p86 = scmp.ne.s32.totalorder %s75, %s78
    %p87 = scmp.eq.s32.totalorder %s20, 3
    %p88 = por %p86, %p87
    %p89 = scmp.ne.s32.totalorder %s78, %s79
    %p90 = scmp.eq.s32.totalorder %s20, 0
    %p91 = por %p89, %p90
    %p92 = scmp.ne.s32.totalorder %s78, %s79
    %p93 = scmp.eq.s32.totalorder %s21, 3
    %p94 = por %p92, %p93
    %p96 = scmp.ne.s32.totalorder %s79, %s95
    %p97 = scmp.eq.s32.totalorder %s21, 0
    %p98 = por %p96, %p97
    %s99 = smul.u32 %s23, 4
    %s100 = sadd.s32 %s99, 4
    %p101 = scmp.lt.s32.totalorder %s100, 7
    %s102 = scalar_select %p101, %s100, 7
    %s103 = smul.u32 %s30, 4
    %s104 = sadd.s32 %s103, 4
    %p105 = scmp.lt.s32.totalorder %s104, 7
    %s106 = scalar_select %p105, %s104, 7
    %s107 = ssub.s32 %s22, %s34
    %s108 = ssub.s32 %s102, %s106
    %s109 = sor.u32 %s107, %s108
    %p110 = scmp.eq.s32.totalorder %s109, 0
    %s112 = sadd.s32 %s111, 1
    %s113 = scalar_select %p110, %s111, %s112
    %p116 = pneg %p110
    %p117 = scmp.eq.s32.totalorder %s15, 3
    %p118 = por %p116, %p117
    %p119 = scmp.ne.s32.totalorder %s111, %s114
    %p120 = scmp.eq.s32.totalorder %s15, 0
    %p121 = por %p119, %p120
    %p122 = scmp.ne.s32.totalorder %s111, %s114
    %p123 = scmp.eq.s32.totalorder %s20, 3
    %p124 = por %p122, %p123
    %p125 = scmp.ne.s32.totalorder %s114, %s115
    %p126 = scmp.eq.s32.totalorder %s20, 0
    %p127 = por %p125, %p126
    %p128 = scmp.ne.s32.totalorder %s114, %s115
    %p129 = scmp.eq.s32.totalorder %s21, 3
    %p130 = por %p128, %p129
    %p132 = scmp.ne.s32.totalorder %s115, %s131
    %p133 = scmp.eq.s32.totalorder %s21, 0
    %p134 = por %p132, %p133
    %s136 = sadd.s32 %s135, 1
    %p139 = scmp.eq.s32.totalorder %s15, 3
    %p140 = scmp.ne.s32.totalorder %s135, %s137
    %p141 = scmp.eq.s32.totalorder %s15, 0
    %p142 = por %p140, %p141
    %p143 = scmp.ne.s32.totalorder %s135, %s137
    %p144 = scmp.eq.s32.totalorder %s20, 3
    %p145 = por %p143, %p144
    %p146 = scmp.ne.s32.totalorder %s137, %s138
    %p147 = scmp.eq.s32.totalorder %s20, 0
    %p148 = por %p146, %p147
    %p149 = scmp.ne.s32.totalorder %s137, %s138
    %p150 = scmp.eq.s32.totalorder %s21, 3
    %p151 = por %p149, %p150
    %p153 = scmp.ne.s32.totalorder %s138, %s152
    %p154 = scmp.eq.s32.totalorder %s21, 0
    %p155 = por %p153, %p154
    %s157 = sadd.s32 %s156, 1
    %p160 = scmp.eq.s32.totalorder %s15, 3
    %p161 = scmp.ne.s32.totalorder %s156, %s158
    %p162 = scmp.eq.s32.totalorder %s15, 0
    %p163 = por %p161, %p162
    %p164 = scmp.ne.s32.totalorder %s156, %s158
    %p165 = scmp.eq.s32.totalorder %s20, 3
    %p166 = por %p164, %p165
    %p167 = scmp.ne.s32.totalorder %s158, %s159
    %p168 = scmp.eq.s32.totalorder %s20, 0
    %p169 = por %p167, %p168
    %p170 = scmp.ne.s32.totalorder %s158, %s159
    %p171 = scmp.eq.s32.totalorder %s21, 3
    %p172 = por %p170, %p171
    %p174 = scmp.ne.s32.totalorder %s159, %s173
    %p175 = scmp.eq.s32.totalorder %s21, 0
    %p176 = por %p174, %p175
    %s177 = ssub.s32 %s22, %s34
    %p178 = scmp.eq.s32.totalorder %s177, 0
    %s180 = sadd.s32 %s179, 1
    %s181 = scalar_select %p178, %s179, %s180
    %p184 = pneg %p178
    %p185 = scmp.eq.s32.totalorder %s15, 3
    %p186 = por %p184, %p185
    %p187 = scmp.ne.s32.totalorder %s179, %s182
    %p188 = scmp.eq.s32.totalorder %s15, 0
    %p189 = por %p187, %p188
    %p190 = scmp.ne.s32.totalorder %s179, %s182
    %p191 = scmp.eq.s32.totalorder %s20, 3
    %p192 = por %p190, %p191
    %p193 = scmp.ne.s32.totalorder %s182, %s183
    %p194 = scmp.eq.s32.totalorder %s20, 0
    %p195 = por %p193, %p194
    %p196 = scmp.ne.s32.totalorder %s182, %s183
    %p197 = scmp.eq.s32.totalorder %s21, 3
    %p198 = por %p196, %p197
    %p200 = scmp.ne.s32.totalorder %s183, %s199
    %p201 = scmp.eq.s32.totalorder %s21, 0
    %p202 = por %p200, %p201
    %s203 = ssub.s32 %s22, %s34
    %p204 = scmp.eq.s32.totalorder %s203, 0
    %s206 = sadd.s32 %s205, 1
    %s207 = scalar_select %p204, %s205, %s206
    %p210 = pneg %p204
    %p211 = scmp.eq.s32.totalorder %s15, 3
    %p212 = por %p210, %p211
    %p213 = scmp.ne.s32.totalorder %s205, %s208
    %p214 = scmp.eq.s32.totalorder %s15, 0
    %p215 = por %p213, %p214
    %p216 = scmp.ne.s32.totalorder %s205, %s208
    %p217 = scmp.eq.s32.totalorder %s20, 3
    %p218 = por %p216, %p217
    %p219 = scmp.ne.s32.totalorder %s208, %s209
    %p220 = scmp.eq.s32.totalorder %s20, 0
    %p221 = por %p219, %p220
    %p222 = scmp.ne.s32.totalorder %s208, %s209
    %p223 = scmp.eq.s32.totalorder %s21, 3
    %p224 = por %p222, %p223
    %p226 = scmp.ne.s32.totalorder %s209, %s225
    %p227 = scmp.eq.s32.totalorder %s21, 0
    %p228 = por %p226, %p227
    %s229 = ssub.s32 %s22, %s34
    %s230 = ssub.s32 %s23, %s30
    %s231 = sor.u32 %s229, %s230
    %p232 = scmp.eq.s32.totalorder %s231, 0
    %s234 = sadd.s32 %s233, 1
    %s235 = scalar_select %p232, %s233, %s234
    %p238 = pneg %p232
    %p239 = scmp.eq.s32.totalorder %s15, 3
    %p240 = por %p238, %p239
    %p241 = scmp.ne.s32.totalorder %s233, %s236
    %p242 = scmp.eq.s32.totalorder %s15, 0
    %p243 = por %p241, %p242
    %p244 = scmp.ne.s32.totalorder %s233, %s236
    %p245 = scmp.eq.s32.totalorder %s20, 3
    %p246 = por %p244, %p245
    %p247 = scmp.ne.s32.totalorder %s236, %s237
    %p248 = scmp.eq.s32.totalorder %s20, 0
    %p249 = por %p247, %p248
    %p250 = scmp.ne.s32.totalorder %s236, %s237
    %p251 = scmp.eq.s32.totalorder %s21, 3
    %p252 = por %p250, %p251
    %p254 = scmp.ne.s32.totalorder %s237, %s253
    %p255 = scmp.eq.s32.totalorder %s21, 0
    %p256 = por %p254, %p255
    %s257 = ssub.s32 %s22, %s34
    %s258 = ssub.s32 %s23, %s30
    %s259 = sor.u32 %s257, %s258
    %p260 = scmp.eq.s32.totalorder %s259, 0
    %s262 = sadd.s32 %s261, 1
    %s263 = scalar_select %p260, %s261, %s262
    %p266 = pneg %p260
    %p267 = scmp.eq.s32.totalorder %s15, 3
    %p268 = por %p266, %p267
    %p269 = scmp.ne.s32.totalorder %s261, %s264
    %p270 = scmp.eq.s32.totalorder %s15, 0
    %p271 = por %p269, %p270
    %p272 = scmp.ne.s32.totalorder %s261, %s264
    %p273 = scmp.eq.s32.totalorder %s20, 3
    %p274 = por %p272, %p273
    %p275 = scmp.ne.s32.totalorder %s264, %s265
    %p276 = scmp.eq.s32.totalorder %s20, 0
    %p277 = por %p275, %p276
    %p278 = scmp.ne.s32.totalorder %s264, %s265
    %p279 = scmp.eq.s32.totalorder %s21, 3
    %p280 = por %p278, %p279
    %p282 = scmp.ne.s32.totalorder %s265, %s281
    %p283 = scmp.eq.s32.totalorder %s21, 0
    %p284 = por %p282, %p283
    %p285 = scmp.le.s32.totalorder 1, %s15
    %p286 = scmp.lt.s32.totalorder %s15, 5
    %p287 = pnand %p285, %p286
    %p288 = pneg %p287
    // Predicated region
    $region9: #{conv_block3d_forward.3} parent=5 // pred_check
      _
    $region10: #{conv_block3d_forward.3} parent=5 // pred_check_branch
      %290 = sbr.rel (%p287) target = $region12
    $region11: #{conv_block3d_forward.3} parent=5 // pred_region
      %s291 = ssub.s32 %s15, 1
      // Predicated region
      $region13: #{conv_block3d_forward.3} parent=11 // pred_check
        %p292 = pneg %p148
      $region14: #{conv_block3d_forward.3} parent=11 // pred_check_branch
        %294 = sbr.rel (%p292) target = $region16
      $region15: #{conv_block3d_forward.3} parent=11 // pred_region
        _
      $region16: #{conv_block3d_forward.3} parent=11 // pred_fallthru
        _
      // Predicated region
      $region17: #{conv_block3d_forward.3} parent=11 // pred_check
        %p295 = pneg %p169
      $region18: #{conv_block3d_forward.3} parent=11 // pred_check_branch
        %297 = sbr.rel (%p295) target = $region20
      $region19: #{conv_block3d_forward.3} parent=11 // pred_region
        _
      $region20: #{conv_block3d_forward.3} parent=11 // pred_fallthru
        _
    $region12: #{conv_block3d_forward.3} parent=5 // pred_fallthru
      _
    %p298 = scmp.lt.s32.totalorder %s15, 4
    // Predicated region
    $region21: #{conv_block3d_forward.3} parent=5 // pred_check
      %p299 = pneg %p298
    $region22: #{conv_block3d_forward.3} parent=5 // pred_check_branch
      %301 = sbr.rel (%p299) target = $region24
    $region23: #{conv_block3d_forward.3} parent=5 // pred_region
      // Predicated region
      $region25: #{conv_block3d_forward.3} parent=23 // pred_check
        %p302 = pneg %p57
      $region26: #{conv_block3d_forward.3} parent=23 // pred_check_branch
        %304 = sbr.rel (%p302) target = $region28
      $region27: #{conv_block3d_forward.3} parent=23 // pred_region
        %s305 = smul.u32 %s23, 4
        %s306 = ssub.s32 %s305, 1
        %p307 = scmp.gt.s32.totalorder %s306, 0
        %s308 = scalar_select %p307, %s306, 0
        %p309 = scmp.lt.s32.totalorder %s22, 1
        %s310 = scalar_select %p309, %s22, 1
        %p311 = scmp.lt.s32.totalorder %s308, 7
        %s312 = scalar_select %p311, %s308, 7
        %s313 = smul.addr %s310, 8
        %s314 = sadd.s32 %s312, %s313
        %s315 = smul.addr %s314, 8
        %s316 = scalar_lea.vmem %s0, %s315
        %s317 = smul.u32 %s23, 4
        %s318 = ssub.s32 %s317, 1
        %p319 = scmp.gt.s32.totalorder %s318, 0
        %s320 = scalar_select %p319, %s318, 0
      $region28: #{conv_block3d_forward.3} parent=23 // pred_fallthru
        _
      // Predicated region
      $region29: #{conv_block3d_forward.3} parent=23 // pred_check
        %p321 = pneg %p85
      $region30: #{conv_block3d_forward.3} parent=23 // pred_check_branch
        %323 = sbr.rel (%p321) target = $region32
      $region31: #{conv_block3d_forward.3} parent=23 // pred_region
        %s324 = smul.u32 4, %s23
        %p325 = scmp.lt.s32.totalorder %s22, 1
        %s326 = scalar_select %p325, %s22, 1
        %p327 = scmp.lt.s32.totalorder %s324, 7
        %s328 = scalar_select %p327, %s324, 7
        %s329 = smul.addr %s326, 8
        %s330 = sadd.s32 %s328, %s329
        %s331 = smul.addr %s330, 8
        %s332 = scalar_lea.vmem %s1, %s331
        %s333 = smul.u32 4, %s23
      $region32: #{conv_block3d_forward.3} parent=23 // pred_fallthru
        _
      // Predicated region
      $region33: #{conv_block3d_forward.3} parent=23 // pred_check
        %p334 = pneg %p121
      $region34: #{conv_block3d_forward.3} parent=23 // pred_check_branch
        %336 = sbr.rel (%p334) target = $region36
      $region35: #{conv_block3d_forward.3} parent=23 // pred_region
        %s337 = smul.u32 %s23, 4
        %s338 = sadd.s32 %s337, 4
        %p339 = scmp.lt.s32.totalorder %s338, 7
        %s340 = scalar_select %p339, %s338, 7
        %p341 = scmp.lt.s32.totalorder %s22, 1
        %s342 = scalar_select %p341, %s22, 1
        %p343 = scmp.lt.s32.totalorder %s340, 7
        %s344 = scalar_select %p343, %s340, 7
        %s345 = smul.addr %s342, 8
        %s346 = sadd.s32 %s344, %s345
        %s347 = smul.addr %s346, 8
        %s348 = scalar_lea.vmem %s2, %s347
        %s349 = smul.u32 %s23, 4
        %s350 = sadd.s32 %s349, 4
        %p351 = scmp.lt.s32.totalorder %s350, 7
        %s352 = scalar_select %p351, %s350, 7
      $region36: #{conv_block3d_forward.3} parent=23 // pred_fallthru
        _
      // Predicated region
      $region37: #{conv_block3d_forward.3} parent=23 // pred_check
        %p353 = pneg %p189
      $region38: #{conv_block3d_forward.3} parent=23 // pred_check_branch
        %355 = sbr.rel (%p353) target = $region40
      $region39: #{conv_block3d_forward.3} parent=23 // pred_region
        %p356 = scmp.lt.s32.totalorder %s22, 1
        %s357 = scalar_select %p356, %s22, 1
        %s358 = scalar_lea.vmem %s5, %s357
      $region40: #{conv_block3d_forward.3} parent=23 // pred_fallthru
        _
      // Predicated region
      $region41: #{conv_block3d_forward.3} parent=23 // pred_check
        %p359 = pneg %p215
      $region42: #{conv_block3d_forward.3} parent=23 // pred_check_branch
        %361 = sbr.rel (%p359) target = $region44
      $region43: #{conv_block3d_forward.3} parent=23 // pred_region
        %p362 = scmp.lt.s32.totalorder %s22, 1
        %s363 = scalar_select %p362, %s22, 1
        %s364 = scalar_lea.vmem %s6, %s363
      $region44: #{conv_block3d_forward.3} parent=23 // pred_fallthru
        _
    $region24: #{conv_block3d_forward.3} parent=5 // pred_fallthru
      _
    %p365 = scmp.le.s32.totalorder 1, %s15
    %p366 = scmp.lt.s32.totalorder %s15, 5
    %p367 = pnand %p365, %p366
    %p368 = pneg %p367
    // Predicated region
    $region45: #{conv_block3d_forward.3} parent=5 // pred_check
      _
    $region46: #{conv_block3d_forward.3} parent=5 // pred_check_branch
      %370 = sbr.rel (%p367) target = $region48
    $region47: #{conv_block3d_forward.3} parent=5 // pred_region
      %s371 = ssub.s32 %s15, 1
      %s372 = smul.u32 %s25, 4
      %s373 = ssub.s32 %s372, 1
      %p374 = scmp.gt.s32.totalorder %s373, 0
      %s375 = scalar_select %p374, %s373, 0
      %p376 = scmp.lt.s32.totalorder %s24, 1
      %s377 = scalar_select %p376, %s24, 1
      %p378 = scmp.lt.s32.totalorder %s375, 7
      %s379 = scalar_select %p378, %s375, 7
      %s380 = smul.addr %s377, 8
      %s381 = sadd.s32 %s379, %s380
      %s382 = smul.addr %s381, 8
      %s383 = scalar_lea.vmem %s0, %s382
      %p384 = pneg %p63
      %p385 = pneg %p60
      %s386 = smul.u32 4, %s25
      %p387 = scmp.lt.s32.totalorder %s24, 1
      %s388 = scalar_select %p387, %s24, 1
      %p389 = scmp.lt.s32.totalorder %s386, 7
      %s390 = scalar_select %p389, %s386, 7
      %s391 = smul.addr %s388, 8
      %s392 = sadd.s32 %s390, %s391
      %s393 = smul.addr %s392, 8
      %s394 = scalar_lea.vmem %s1, %s393
      %p395 = pneg %p91
      %p396 = pneg %p88
      %s397 = smul.u32 %s25, 4
      %s398 = sadd.s32 %s397, 4
      %p399 = scmp.lt.s32.totalorder %s398, 7
      %s400 = scalar_select %p399, %s398, 7
      %p401 = scmp.lt.s32.totalorder %s24, 1
      %s402 = scalar_select %p401, %s24, 1
      %p403 = scmp.lt.s32.totalorder %s400, 7
      %s404 = scalar_select %p403, %s400, 7
      %s405 = smul.addr %s402, 8
      %s406 = sadd.s32 %s404, %s405
      %s407 = smul.addr %s406, 8
      %s408 = scalar_lea.vmem %s2, %s407
      %p409 = pneg %p127
      %p410 = pneg %p124
      %p411 = pneg %p148
      %p412 = pneg %p145
      %p413 = pneg %p169
      %p414 = pneg %p166
      %p415 = scmp.lt.s32.totalorder %s24, 1
      %s416 = scalar_select %p415, %s24, 1
      %s417 = scalar_lea.vmem %s5, %s416
      %p418 = pneg %p195
      %p419 = pneg %p192
      %p420 = scmp.lt.s32.totalorder %s24, 1
      %s421 = scalar_select %p420, %s24, 1
      %s422 = scalar_lea.vmem %s6, %s421
      %p423 = pneg %p221
      %p424 = pneg %p218
      %p425 = pneg %p249
      %p426 = pneg %p246
      %s427 = smul.u32 4, %s25
      %p428 = scmp.lt.s32.totalorder %s24, 1
      %s429 = scalar_select %p428, %s24, 1
      %p430 = scmp.lt.s32.totalorder %s427, 7
      %s431 = scalar_select %p430, %s427, 7
      %s432 = smul.addr %s429, 8
      %s433 = sadd.s32 %s431, %s432
      %s434 = smul.addr %s433, 8
      %s435 = scalar_lea.vmem %s7, %s434
      %p436 = pneg %p277
      %p437 = pneg %p274
      %p438 = scmp.lt.s32.totalorder %s24, 1
      %s439 = scalar_select %p438, %s24, 1
      %p440 = scmp.lt.s32.totalorder %s25, 1
      %s441 = scalar_select %p440, %s25, 1
      %s442 = smul.addr %s439, 2
      %s443 = sadd.s32 %s441, %s442
      %s444 = smul.addr %s443, 2
      %s445 = scalar_lea.vmem %s8, %s444
      %s446 = smul.u32 %s25, 4
      %s447 = ssub.s32 %s446, 1
      %p448 = scmp.gt.s32.totalorder %s447, 0
      %s449 = scalar_select %p448, %s447, 0
      %p450 = scmp.lt.s32.totalorder %s24, 1
      %s451 = scalar_select %p450, %s24, 1
      %p452 = scmp.lt.s32.totalorder %s449, 7
      %s453 = scalar_select %p452, %s449, 7
      %s454 = smul.addr %s451, 8
      %s455 = sadd.s32 %s453, %s454
      %s456 = smul.addr %s455, 8
      %s457 = scalar_lea.vmem %s0, %s456
      %s458 = smul.u32 %s25, 4
      %s459 = ssub.s32 %s458, 1
      %p460 = scmp.gt.s32.totalorder %s459, 0
      %s461 = scalar_select %p460, %s459, 0
      %s462 = smul.u32 4, %s25
      %p463 = scmp.lt.s32.totalorder %s24, 1
      %s464 = scalar_select %p463, %s24, 1
      %p465 = scmp.lt.s32.totalorder %s462, 7
      %s466 = scalar_select %p465, %s462, 7
      %s467 = smul.addr %s464, 8
      %s468 = sadd.s32 %s466, %s467
      %s469 = smul.addr %s468, 8
      %s470 = scalar_lea.vmem %s1, %s469
      %s471 = smul.u32 4, %s25
      %s472 = smul.u32 %s25, 4
      %s473 = sadd.s32 %s472, 4
      %p474 = scmp.lt.s32.totalorder %s473, 7
      %s475 = scalar_select %p474, %s473, 7
      %p476 = scmp.lt.s32.totalorder %s24, 1
      %s477 = scalar_select %p476, %s24, 1
      %p478 = scmp.lt.s32.totalorder %s475, 7
      %s479 = scalar_select %p478, %s475, 7
      %s480 = smul.addr %s477, 8
      %s481 = sadd.s32 %s479, %s480
      %s482 = smul.addr %s481, 8
      %s483 = scalar_lea.vmem %s2, %s482
      %s484 = smul.u32 %s25, 4
      %s485 = sadd.s32 %s484, 4
      %p486 = scmp.lt.s32.totalorder %s485, 7
      %s487 = scalar_select %p486, %s485, 7
      %p488 = scmp.lt.s32.totalorder %s24, 1
      %s489 = scalar_select %p488, %s24, 1
      %s490 = scalar_lea.vmem %s5, %s489
      %p491 = scmp.lt.s32.totalorder %s24, 1
      %s492 = scalar_select %p491, %s24, 1
      %s493 = scalar_lea.vmem %s6, %s492
      %s494 = smul.u32 4, %s25
      %p495 = scmp.lt.s32.totalorder %s24, 1
      %s496 = scalar_select %p495, %s24, 1
      %p497 = scmp.lt.s32.totalorder %s494, 7
      %s498 = scalar_select %p497, %s494, 7
      %s499 = smul.addr %s496, 8
      %s500 = sadd.s32 %s498, %s499
      %s501 = smul.addr %s500, 8
      %s502 = scalar_lea.vmem %s7, %s501
      %s503 = smul.u32 4, %s25
      %p504 = scmp.lt.s32.totalorder %s24, 1
      %s505 = scalar_select %p504, %s24, 1
      %p506 = scmp.lt.s32.totalorder %s25, 1
      %s507 = scalar_select %p506, %s25, 1
      %s508 = smul.addr %s505, 2
      %s509 = sadd.s32 %s507, %s508
      %s510 = smul.addr %s509, 2
      %s511 = scalar_lea.vmem %s8, %s510
      %vm513 = vcmask 326656
      %514 = vst.msk [vmem:[#allocation2] sm:$0xff] %vm513, 0.0
      %vm515 = vcmask 320512
      %516 = vst.msk [vmem:[#allocation2 + $0x8] sm:$0x3] %vm515, 0.0
      %517 = vst.msk [vmem:[#allocation2 + $0x10] sm:$0xff] %vm513, 0.0
      %518 = vst.msk [vmem:[#allocation2 + $0x18] sm:$0x3] %vm515, 0.0
      %519 = vst.msk [vmem:[#allocation2 + $0x20] sm:$0xff] %vm513, 0.0
      %520 = vst.msk [vmem:[#allocation2 + $0x28] sm:$0x3] %vm515, 0.0
      %521 = vst.msk [vmem:[#allocation2 + $0x30] sm:$0xff] %vm513, 0.0
      %522 = vst.msk [vmem:[#allocation2 + $0x38] sm:$0x3] %vm515, 0.0
      %523 = vst.msk [vmem:[#allocation2 + $0x40] sm:$0xff] %vm513, 0.0
      %524 = vst.msk [vmem:[#allocation2 + $0x48] sm:$0x3] %vm515, 0.0
      %525 = vst.msk [vmem:[#allocation2 + $0x50] sm:$0xff] %vm513, 0.0
      %526 = vst.msk [vmem:[#allocation2 + $0x58] sm:$0x3] %vm515, 0.0
      %v527 = vld [vmem:[%s470] sm:$0xff]
      %v528 = vld [vmem:[%s470 + $0x8] sm:$0xff]
      %v529 = vld [vmem:[%s470 + $0x10] sm:$0xff]
      %v530 = vld [vmem:[%s470 + $0x18] sm:$0xff]
      %v531 = vld [vmem:[%s457] sm:$0xff]
      %p532 = scmp.gt.s32.totalorder %s25, 0
      %s533 = scalar_select %p532, 1, 0
      %s534 = scvt.s32.f32 %s533
      %v535 = vstv %s534
      %v536 = vmul.f32 %v531, %v535
      %v537 = vld [vmem:[%s483] sm:$0xff]
      %p538 = scmp.lt.s32.totalorder %s25, 1
      %s539 = scalar_select %p538, 1, 0
      %s540 = scvt.s32.f32 %s539
      %v541 = vstv %s540
      %v542 = vmul.f32 %v537, %v541
      %547 = vrot.lane.b32.xlu0 %v527, 4
      %v548 = vpop.permute.xlu0 %547
      %549 = vrot.lane.b32.xlu0 %v528, 4
      %v550 = vpop.permute.xlu0 %549
      %551 = vrot.lane.b32.xlu0 %v529, 4
      %v552 = vpop.permute.xlu0 %551
      %553 = vrot.lane.b32.xlu0 %v530, 4
      %v554 = vpop.permute.xlu0 %553
      %s559 = scalar_lea.vmem [#allocation2], 16
      %vm560 = vcmask 293920
      %561 = vst.msk [vmem:[%s559 + $0x1] sm:$0xff] %vm560, %v548
      %562 = vst.msk [vmem:[%s559 + $0x11] sm:$0xff] %vm560, %v550
      %563 = vst.msk [vmem:[%s559 + $0x21] sm:$0xff] %vm560, %v552
      %564 = vst.msk [vmem:[%s559 + $0x31] sm:$0xff] %vm560, %v554
      %566 = vrot.lane.b32.xlu0 %v536, 4
      %v567 = vpop.permute.xlu0 %566
      %569 = vst.msk [vmem:[#allocation2 + $0x1] sm:$0xff] %vm560, %v567
      %571 = vrot.lane.b32.xlu0 %v542, 4
      %v572 = vpop.permute.xlu0 %571
      %s574 = scalar_lea.vmem [#allocation2], 80
      %575 = vst.msk [vmem:[%s574 + $0x1] sm:$0xff] %vm560, %v572
      %v576 = vld [vmem:[#allocation2] sm:$0xff]
      %v577 = vld [vmem:[#allocation2 + $0x10] sm:$0xff]
      %v578 = vld [vmem:[#allocation2 + $0x20] sm:$0xff]
      %v579 = vld [vmem:[#allocation2 + $0x30] sm:$0xff]
      %v580 = vpack.c.bf16 %v577, %v576
      %v581 = vpack.c.bf16 %v579, %v578
      %v582 = vld [vmem:[%s3] sm:$0xf]
      %v583 = vld [vmem:[%s3 + $0x4] sm:$0xf]
      %v584 = vld [vmem:[%s3 + $0x8] sm:$0xf]
      %v585 = vld [vmem:[%s3 + $0xc] sm:$0xf]
      %v586 = vld [vmem:[%s3 + $0x10] sm:$0xf]
      %v587 = vld [vmem:[#allocation2 + $0x1] sm:$0xff]
      %v588 = vld [vmem:[#allocation2 + $0x11] sm:$0xff]
      %v589 = vld [vmem:[#allocation2 + $0x21] sm:$0xff]
      %v590 = vld [vmem:[#allocation2 + $0x31] sm:$0xff]
      %v591 = vpack.c.bf16 %v588, %v587
      %v592 = vpack.c.bf16 %v590, %v589
      %s593 = scalar_lea.vmem %s3, 20
      %v594 = vld [vmem:[%s593] sm:$0xf]
      %v595 = vld [vmem:[%s593 + $0x4] sm:$0xf]
      %v596 = vld [vmem:[%s593 + $0x8] sm:$0xf]
      %v597 = vld [vmem:[%s593 + $0xc] sm:$0xf]
      %v598 = vld [vmem:[%s593 + $0x10] sm:$0xf]
      %v604 = vunpack.c.l.b16 %v594
      %v605 = vunpack.c.l.b16 %v595
      %v606 = vunpack.c.l.b16 %v596
      %v607 = vunpack.c.l.b16 %v597
      %v608 = vunpack.c.l.b16 %v598
      %v609 = vpack.c.b16 %v605, %v604
      %v610 = vpack.c.b16 %v607, %v606
      %v611 = vpack.c.b16 %v608, %v608
      %v615 = vsel %vm513, %v591, 0
      %v618 = vsel %vm513, %v592, 0
      %vm620 = vcmask 1043456
      %v622 = vsel %vm620, %v611, 0
      %624 = vmatpush.bf16.msra.mxu0 0
      %625 = vmatpush.bf16.msra.mxu0 0
      %626 = vmatpush.bf16.msra.mxu0 0
      %627 = vmatpush.bf16.msra.mxu0 0
      %628 = vmatpush.bf16.msra.mxu0 0
      %629 = vmatpush.bf16.msra.mxu0 %v622
      %630 = vmatpush.bf16.msra.mxu0 %v610
      %631 = vmatpush.bf16.msra.mxu0 %v609
      %632 = vmatmul.bf16.gmra.mxu0 %v615
      %v633 = vpop.f32.mrf.mxu0
      %v634 = vadd.f32 0.0, %v633
      %v635 = vpop.f32.mrf.mxu0
      %v636 = vadd.f32 0.0, %v635
      %637 = vmatmul.bf16.gmra.mxu0 %v618
      %v638 = vpop.f32.mrf.mxu0
      %v639 = vadd.f32 0.0, %v638
      %v640 = vpop.f32.mrf.mxu0
      %v641 = vadd.f32 0.0, %v640
      %642 = vdwg.mxu0
      %v648 = vunpack.c.l.b16 %v582
      %v649 = vunpack.c.l.b16 %v583
      %v650 = vunpack.c.l.b16 %v584
      %v651 = vunpack.c.l.b16 %v585
      %v652 = vunpack.c.l.b16 %v586
      %v653 = vpack.c.b16 %v649, %v648
      %v654 = vpack.c.b16 %v651, %v650
      %v655 = vpack.c.b16 %v652, %v652
      %v659 = vsel %vm513, %v580, 0
      %v662 = vsel %vm513, %v581, 0
      %v665 = vsel %vm620, %v655, 0
      %667 = vmatpush.bf16.msra.mxu0 0
      %668 = vmatpush.bf16.msra.mxu0 0
      %669 = vmatpush.bf16.msra.mxu0 0
      %670 = vmatpush.bf16.msra.mxu0 0
      %671 = vmatpush.bf16.msra.mxu0 0
      %672 = vmatpush.bf16.msra.mxu0 %v665
      %673 = vmatpush.bf16.msra.mxu0 %v654
      %674 = vmatpush.bf16.msra.mxu0 %v653
      %675 = vmatmul.bf16.gmra.mxu0 %v659
      %v676 = vpop.f32.mrf.mxu0
      %v677 = vadd.f32 %v634, %v676
      %v678 = vpop.f32.mrf.mxu0
      %v679 = vadd.f32 %v636, %v678
      %680 = vmatmul.bf16.gmra.mxu0 %v662
      %v681 = vpop.f32.mrf.mxu0
      %v682 = vadd.f32 %v639, %v681
      %v683 = vpop.f32.mrf.mxu0
      %v684 = vadd.f32 %v641, %v683
      %685 = vdwg.mxu0
      %v686 = vld [vmem:[#allocation2 + $0x2] sm:$0xff]
      %v687 = vld [vmem:[#allocation2 + $0x12] sm:$0xff]
      %v688 = vld [vmem:[#allocation2 + $0x22] sm:$0xff]
      %v689 = vld [vmem:[#allocation2 + $0x32] sm:$0xff]
      %v690 = vpack.c.bf16 %v687, %v686
      %v691 = vpack.c.bf16 %v689, %v688
      %s692 = scalar_lea.vmem %s3, 40
      %v693 = vld [vmem:[%s692] sm:$0xf]
      %v694 = vld [vmem:[%s692 + $0x4] sm:$0xf]
      %v695 = vld [vmem:[%s692 + $0x8] sm:$0xf]
      %v696 = vld [vmem:[%s692 + $0xc] sm:$0xf]
      %v697 = vld [vmem:[%s692 + $0x10] sm:$0xf]
      %v703 = vunpack.c.l.b16 %v693
      %v704 = vunpack.c.l.b16 %v694
      %v705 = vunpack.c.l.b16 %v695
      %v706 = vunpack.c.l.b16 %v696
      %v707 = vunpack.c.l.b16 %v697
      %v708 = vpack.c.b16 %v704, %v703
      %v709 = vpack.c.b16 %v706, %v705
      %v710 = vpack.c.b16 %v707, %v707
      %v714 = vsel %vm513, %v690, 0
      %v717 = vsel %vm513, %v691, 0
      %v720 = vsel %vm620, %v710, 0
      %722 = vmatpush.bf16.msra.mxu0 0
      %723 = vmatpush.bf16.msra.mxu0 0
      %724 = vmatpush.bf16.msra.mxu0 0
      %725 = vmatpush.bf16.msra.mxu0 0
      %726 = vmatpush.bf16.msra.mxu0 0
      %727 = vmatpush.bf16.msra.mxu0 %v720
      %728 = vmatpush.bf16.msra.mxu0 %v709
      %729 = vmatpush.bf16.msra.mxu0 %v708
      %730 = vmatmul.bf16.gmra.mxu0 %v714
      %v731 = vpop.f32.mrf.mxu0
      %v732 = vadd.f32 0.0, %v731
      %v733 = vpop.f32.mrf.mxu0
      %v734 = vadd.f32 0.0, %v733
      %735 = vmatmul.bf16.gmra.mxu0 %v717
      %v736 = vpop.f32.mrf.mxu0
      %v737 = vadd.f32 0.0, %v736
      %v738 = vpop.f32.mrf.mxu0
      %v739 = vadd.f32 0.0, %v738
      %740 = vdwg.mxu0
      %v741 = vadd.f32 %v677, %v732
      %v742 = vadd.f32 %v679, %v734
      %v743 = vadd.f32 %v682, %v737
      %v744 = vadd.f32 %v684, %v739
      %v745 = vld [vmem:[%s559] sm:$0xff]
      %v746 = vld [vmem:[%s559 + $0x10] sm:$0xff]
      %v747 = vld [vmem:[%s559 + $0x20] sm:$0xff]
      %v748 = vld [vmem:[%s559 + $0x30] sm:$0xff]
      %v749 = vpack.c.bf16 %v746, %v745
      %v750 = vpack.c.bf16 %v748, %v747
      %s751 = scalar_lea.vmem %s3, 60
      %v752 = vld [vmem:[%s751] sm:$0xf]
      %v753 = vld [vmem:[%s751 + $0x4] sm:$0xf]
      %v754 = vld [vmem:[%s751 + $0x8] sm:$0xf]
      %v755 = vld [vmem:[%s751 + $0xc] sm:$0xf]
      %v756 = vld [vmem:[%s751 + $0x10] sm:$0xf]
      %v762 = vunpack.c.l.b16 %v752
      %v763 = vunpack.c.l.b16 %v753
      %v764 = vunpack.c.l.b16 %v754
      %v765 = vunpack.c.l.b16 %v755
      %v766 = vunpack.c.l.b16 %v756
      %v767 = vpack.c.b16 %v763, %v762
      %v768 = vpack.c.b16 %v765, %v764
      %v769 = vpack.c.b16 %v766, %v766
      %v773 = vsel %vm513, %v749, 0
      %v776 = vsel %vm513, %v750, 0
      %v779 = vsel %vm620, %v769, 0
      %781 = vmatpush.bf16.msra.mxu0 0
      %782 = vmatpush.bf16.msra.mxu0 0
      %783 = vmatpush.bf16.msra.mxu0 0
      %784 = vmatpush.bf16.msra.mxu0 0
      %785 = vmatpush.bf16.msra.mxu0 0
      %786 = vmatpush.bf16.msra.mxu0 %v779
      %787 = vmatpush.bf16.msra.mxu0 %v768
      %788 = vmatpush.bf16.msra.mxu0 %v767
      %789 = vmatmul.bf16.gmra.mxu0 %v773
      %v790 = vpop.f32.mrf.mxu0
      %v791 = vadd.f32 0.0, %v790
      %v792 = vpop.f32.mrf.mxu0
      %v793 = vadd.f32 0.0, %v792
      %794 = vmatmul.bf16.gmra.mxu0 %v776
      %v795 = vpop.f32.mrf.mxu0
      %v796 = vadd.f32 0.0, %v795
      %v797 = vpop.f32.mrf.mxu0
      %v798 = vadd.f32 0.0, %v797
      %799 = vdwg.mxu0
      %v800 = vadd.f32 %v741, %v791
      %v801 = vadd.f32 %v742, %v793
      %v802 = vadd.f32 %v743, %v796
      %v803 = vadd.f32 %v744, %v798
      %v804 = vld [vmem:[%s559 + $0x1] sm:$0xff]
      %v805 = vld [vmem:[%s559 + $0x11] sm:$0xff]
      %v806 = vld [vmem:[%s559 + $0x21] sm:$0xff]
      %v807 = vld [vmem:[%s559 + $0x31] sm:$0xff]
      %v808 = vpack.c.bf16 %v805, %v804
      %v809 = vpack.c.bf16 %v807, %v806
      %s810 = scalar_lea.vmem %s3, 80
      %v811 = vld [vmem:[%s810] sm:$0xf]
      %v812 = vld [vmem:[%s810 + $0x4] sm:$0xf]
      %v813 = vld [vmem:[%s810 + $0x8] sm:$0xf]
      %v814 = vld [vmem:[%s810 + $0xc] sm:$0xf]
      %v815 = vld [vmem:[%s810 + $0x10] sm:$0xf]
      %v821 = vunpack.c.l.b16 %v811
      %v822 = vunpack.c.l.b16 %v812
      %v823 = vunpack.c.l.b16 %v813
      %v824 = vunpack.c.l.b16 %v814
      %v825 = vunpack.c.l.b16 %v815
      %v826 = vpack.c.b16 %v822, %v821
      %v827 = vpack.c.b16 %v824, %v823
      %v828 = vpack.c.b16 %v825, %v825
      %v832 = vsel %vm513, %v808, 0
      %v835 = vsel %vm513, %v809, 0
      %v838 = vsel %vm620, %v828, 0
      %840 = vmatpush.bf16.msra.mxu0 0
      %841 = vmatpush.bf16.msra.mxu0 0
      %842 = vmatpush.bf16.msra.mxu0 0
      %843 = vmatpush.bf16.msra.mxu0 0
      %844 = vmatpush.bf16.msra.mxu0 0
      %845 = vmatpush.bf16.msra.mxu0 %v838
      %846 = vmatpush.bf16.msra.mxu0 %v827
      %847 = vmatpush.bf16.msra.mxu0 %v826
      %848 = vmatmul.bf16.gmra.mxu0 %v832
      %v849 = vpop.f32.mrf.mxu0
      %v850 = vadd.f32 0.0, %v849
      %v851 = vpop.f32.mrf.mxu0
      %v852 = vadd.f32 0.0, %v851
      %853 = vmatmul.bf16.gmra.mxu0 %v835
      %v854 = vpop.f32.mrf.mxu0
      %v855 = vadd.f32 0.0, %v854
      %v856 = vpop.f32.mrf.mxu0
      %v857 = vadd.f32 0.0, %v856
      %858 = vdwg.mxu0
      %v859 = vadd.f32 %v800, %v850
      %v860 = vadd.f32 %v801, %v852
      %v861 = vadd.f32 %v802, %v855
      %v862 = vadd.f32 %v803, %v857
      %v863 = vld [vmem:[%s559 + $0x2] sm:$0xff]
      %v864 = vld [vmem:[%s559 + $0x12] sm:$0xff]
      %v865 = vld [vmem:[%s559 + $0x22] sm:$0xff]
      %v866 = vld [vmem:[%s559 + $0x32] sm:$0xff]
      %v867 = vpack.c.bf16 %v864, %v863
      %v868 = vpack.c.bf16 %v866, %v865
      %s869 = scalar_lea.vmem %s3, 100
      %v870 = vld [vmem:[%s869] sm:$0xf]
      %v871 = vld [vmem:[%s869 + $0x4] sm:$0xf]
      %v872 = vld [vmem:[%s869 + $0x8] sm:$0xf]
      %v873 = vld [vmem:[%s869 + $0xc] sm:$0xf]
      %v874 = vld [vmem:[%s869 + $0x10] sm:$0xf]
      %v880 = vunpack.c.l.b16 %v870
      %v881 = vunpack.c.l.b16 %v871
      %v882 = vunpack.c.l.b16 %v872
      %v883 = vunpack.c.l.b16 %v873
      %v884 = vunpack.c.l.b16 %v874
      %v885 = vpack.c.b16 %v881, %v880
      %v886 = vpack.c.b16 %v883, %v882
      %v887 = vpack.c.b16 %v884, %v884
      %v891 = vsel %vm513, %v867, 0
      %v894 = vsel %vm513, %v868, 0
      %v897 = vsel %vm620, %v887, 0
      %899 = vmatpush.bf16.msra.mxu0 0
      %900 = vmatpush.bf16.msra.mxu0 0
      %901 = vmatpush.bf16.msra.mxu0 0
      %902 = vmatpush.bf16.msra.mxu0 0
      %903 = vmatpush.bf16.msra.mxu0 0
      %904 = vmatpush.bf16.msra.mxu0 %v897
      %905 = vmatpush.bf16.msra.mxu0 %v886
      %906 = vmatpush.bf16.msra.mxu0 %v885
      %907 = vmatmul.bf16.gmra.mxu0 %v891
      %v908 = vpop.f32.mrf.mxu0
      %v909 = vadd.f32 0.0, %v908
      %v910 = vpop.f32.mrf.mxu0
      %v911 = vadd.f32 0.0, %v910
      %912 = vmatmul.bf16.gmra.mxu0 %v894
      %v913 = vpop.f32.mrf.mxu0
      %v914 = vadd.f32 0.0, %v913
      %v915 = vpop.f32.mrf.mxu0
      %v916 = vadd.f32 0.0, %v915
      %917 = vdwg.mxu0
      %v918 = vadd.f32 %v859, %v909
      %v919 = vadd.f32 %v860, %v911
      %v920 = vadd.f32 %v861, %v914
      %v921 = vadd.f32 %v862, %v916
      %s922 = scalar_lea.vmem [#allocation2], 32
      %v923 = vld [vmem:[%s922] sm:$0xff]
      %v924 = vld [vmem:[%s922 + $0x10] sm:$0xff]
      %v925 = vld [vmem:[%s922 + $0x20] sm:$0xff]
      %v926 = vld [vmem:[%s922 + $0x30] sm:$0xff]
      %v927 = vpack.c.bf16 %v924, %v923
      %v928 = vpack.c.bf16 %v926, %v925
      %s929 = scalar_lea.vmem %s3, 120
      %v930 = vld [vmem:[%s929] sm:$0xf]
      %v931 = vld [vmem:[%s929 + $0x4] sm:$0xf]
      %v932 = vld [vmem:[%s929 + $0x8] sm:$0xf]
      %v933 = vld [vmem:[%s929 + $0xc] sm:$0xf]
      %v934 = vld [vmem:[%s929 + $0x10] sm:$0xf]
      %v940 = vunpack.c.l.b16 %v930
      %v941 = vunpack.c.l.b16 %v931
      %v942 = vunpack.c.l.b16 %v932
      %v943 = vunpack.c.l.b16 %v933
      %v944 = vunpack.c.l.b16 %v934
      %v945 = vpack.c.b16 %v941, %v940
      %v946 = vpack.c.b16 %v943, %v942
      %v947 = vpack.c.b16 %v944, %v944
      %v951 = vsel %vm513, %v927, 0
      %v954 = vsel %vm513, %v928, 0
      %v957 = vsel %vm620, %v947, 0
      %959 = vmatpush.bf16.msra.mxu0 0
      %960 = vmatpush.bf16.msra.mxu0 0
      %961 = vmatpush.bf16.msra.mxu0 0
      %962 = vmatpush.bf16.msra.mxu0 0
      %963 = vmatpush.bf16.msra.mxu0 0
      %964 = vmatpush.bf16.msra.mxu0 %v957
      %965 = vmatpush.bf16.msra.mxu0 %v946
      %966 = vmatpush.bf16.msra.mxu0 %v945
      %967 = vmatmul.bf16.gmra.mxu0 %v951
      %v968 = vpop.f32.mrf.mxu0
      %v969 = vadd.f32 0.0, %v968
      %v970 = vpop.f32.mrf.mxu0
      %v971 = vadd.f32 0.0, %v970
      %972 = vmatmul.bf16.gmra.mxu0 %v954
      %v973 = vpop.f32.mrf.mxu0
      %v974 = vadd.f32 0.0, %v973
      %v975 = vpop.f32.mrf.mxu0
      %v976 = vadd.f32 0.0, %v975
      %977 = vdwg.mxu0
      %v978 = vadd.f32 %v918, %v969
      %v979 = vadd.f32 %v919, %v971
      %v980 = vadd.f32 %v920, %v974
      %v981 = vadd.f32 %v921, %v976
      %v982 = vld [vmem:[%s922 + $0x1] sm:$0xff]
      %v983 = vld [vmem:[%s922 + $0x11] sm:$0xff]
      %v984 = vld [vmem:[%s922 + $0x21] sm:$0xff]
      %v985 = vld [vmem:[%s922 + $0x31] sm:$0xff]
      %v986 = vpack.c.bf16 %v983, %v982
      %v987 = vpack.c.bf16 %v985, %v984
      %s988 = scalar_lea.vmem %s3, 140
      %v989 = vld [vmem:[%s988] sm:$0xf]
      %v990 = vld [vmem:[%s988 + $0x4] sm:$0xf]
      %v991 = vld [vmem:[%s988 + $0x8] sm:$0xf]
      %v992 = vld [vmem:[%s988 + $0xc] sm:$0xf]
      %v993 = vld [vmem:[%s988 + $0x10] sm:$0xf]
      %v999 = vunpack.c.l.b16 %v989
      %v1000 = vunpack.c.l.b16 %v990
      %v1001 = vunpack.c.l.b16 %v991
      %v1002 = vunpack.c.l.b16 %v992
      %v1003 = vunpack.c.l.b16 %v993
      %v1004 = vpack.c.b16 %v1000, %v999
      %v1005 = vpack.c.b16 %v1002, %v1001
      %v1006 = vpack.c.b16 %v1003, %v1003
      %v1010 = vsel %vm513, %v986, 0
      %v1013 = vsel %vm513, %v987, 0
      %v1016 = vsel %vm620, %v1006, 0
      %1018 = vmatpush.bf16.msra.mxu0 0
      %1019 = vmatpush.bf16.msra.mxu0 0
      %1020 = vmatpush.bf16.msra.mxu0 0
      %1021 = vmatpush.bf16.msra.mxu0 0
      %1022 = vmatpush.bf16.msra.mxu0 0
      %1023 = vmatpush.bf16.msra.mxu0 %v1016
      %1024 = vmatpush.bf16.msra.mxu0 %v1005
      %1025 = vmatpush.bf16.msra.mxu0 %v1004
      %1026 = vmatmul.bf16.gmra.mxu0 %v1010
      %v1027 = vpop.f32.mrf.mxu0
      %v1028 = vadd.f32 0.0, %v1027
      %v1029 = vpop.f32.mrf.mxu0
      %v1030 = vadd.f32 0.0, %v1029
      %1031 = vmatmul.bf16.gmra.mxu0 %v1013
      %v1032 = vpop.f32.mrf.mxu0
      %v1033 = vadd.f32 0.0, %v1032
      %v1034 = vpop.f32.mrf.mxu0
      %v1035 = vadd.f32 0.0, %v1034
      %1036 = vdwg.mxu0
      %v1037 = vadd.f32 %v978, %v1028
      %v1038 = vadd.f32 %v979, %v1030
      %v1039 = vadd.f32 %v980, %v1033
      %v1040 = vadd.f32 %v981, %v1035
      %v1041 = vld [vmem:[%s922 + $0x2] sm:$0xff]
      %v1042 = vld [vmem:[%s922 + $0x12] sm:$0xff]
      %v1043 = vld [vmem:[%s922 + $0x22] sm:$0xff]
      %v1044 = vld [vmem:[%s922 + $0x32] sm:$0xff]
      %v1045 = vpack.c.bf16 %v1042, %v1041
      %v1046 = vpack.c.bf16 %v1044, %v1043
      %s1047 = scalar_lea.vmem %s3, 160
      %v1048 = vld [vmem:[%s1047] sm:$0xf]
      %v1049 = vld [vmem:[%s1047 + $0x4] sm:$0xf]
      %v1050 = vld [vmem:[%s1047 + $0x8] sm:$0xf]
      %v1051 = vld [vmem:[%s1047 + $0xc] sm:$0xf]
      %v1052 = vld [vmem:[%s1047 + $0x10] sm:$0xf]
      %v1058 = vunpack.c.l.b16 %v1048
      %v1059 = vunpack.c.l.b16 %v1049
      %v1060 = vunpack.c.l.b16 %v1050
      %v1061 = vunpack.c.l.b16 %v1051
      %v1062 = vunpack.c.l.b16 %v1052
      %v1063 = vpack.c.b16 %v1059, %v1058
      %v1064 = vpack.c.b16 %v1061, %v1060
      %v1065 = vpack.c.b16 %v1062, %v1062
      %v1069 = vsel %vm513, %v1045, 0
      %v1072 = vsel %vm513, %v1046, 0
      %v1075 = vsel %vm620, %v1065, 0
      %1077 = vmatpush.bf16.msra.mxu0 0
      %1078 = vmatpush.bf16.msra.mxu0 0
      %1079 = vmatpush.bf16.msra.mxu0 0
      %1080 = vmatpush.bf16.msra.mxu0 0
      %1081 = vmatpush.bf16.msra.mxu0 0
      %1082 = vmatpush.bf16.msra.mxu0 %v1075
      %1083 = vmatpush.bf16.msra.mxu0 %v1064
      %1084 = vmatpush.bf16.msra.mxu0 %v1063
      %1085 = vmatmul.bf16.gmra.mxu0 %v1069
      %v1086 = vpop.f32.mrf.mxu0
      %v1087 = vadd.f32 0.0, %v1086
      %v1088 = vpop.f32.mrf.mxu0
      %v1089 = vadd.f32 0.0, %v1088
      %1090 = vmatmul.bf16.gmra.mxu0 %v1072
      %v1091 = vpop.f32.mrf.mxu0
      %v1092 = vadd.f32 0.0, %v1091
      %v1093 = vpop.f32.mrf.mxu0
      %v1094 = vadd.f32 0.0, %v1093
      %1095 = vdwg.mxu0
      %v1096 = vadd.f32 %v1037, %v1087
      %v1097 = vadd.f32 %v1038, %v1089
      %v1098 = vadd.f32 %v1039, %v1092
      %v1099 = vadd.f32 %v1040, %v1094
      %v1100 = vld [vmem:[%s4] sm:$0x1]
      %v1102 = vperm.slane %v1100, 0
      %v1104 = vadd.f32 %v1096, %v1102
      %v1105 = vadd.f32 %v1097, %v1102
      %v1106 = vadd.f32 %v1098, %v1102
      %v1107 = vadd.f32 %v1099, %v1102
      %v1108 = vadd.f32 %v1104, %v1105
      %v1109 = vadd.f32 %v1108, %v1106
      %v1110 = vadd.f32 %v1109, %v1107
      %v1111 = vrot.slane %v1110, 4
      %v1112 = vadd.f32 %v1110, %v1111
      %v1113 = vrot.slane %v1112, 2
      %v1114 = vadd.f32 %v1112, %v1113
      %v1115 = vrot.slane %v1114, 1
      %v1116 = vadd.f32 %v1114, %v1115
      %1117 = vst [vmem:[%s511] sm:$0x1] %v1116
      %v1118 = vmul.f32 %v1104, %v1104
      %v1119 = vmul.f32 %v1105, %v1105
      %v1120 = vmul.f32 %v1106, %v1106
      %v1121 = vmul.f32 %v1107, %v1107
      %v1122 = vadd.f32 %v1118, %v1119
      %v1123 = vadd.f32 %v1122, %v1120
      %v1124 = vadd.f32 %v1123, %v1121
      %v1125 = vrot.slane %v1124, 4
      %v1126 = vadd.f32 %v1124, %v1125
      %v1127 = vrot.slane %v1126, 2
      %v1128 = vadd.f32 %v1126, %v1127
      %v1129 = vrot.slane %v1128, 1
      %v1130 = vadd.f32 %v1128, %v1129
      %1131 = vst [vmem:[%s511 + $0x1] sm:$0x1] %v1130
      %1132 = vst [vmem:[%s502] sm:$0xff] %v1104
      %1133 = vst [vmem:[%s502 + $0x8] sm:$0xff] %v1105
      %1134 = vst [vmem:[%s502 + $0x10] sm:$0xff] %v1106
      %1135 = vst [vmem:[%s502 + $0x18] sm:$0xff] %v1107
      %s1136 = smul.u32 4, %s25
      %p1137 = scmp.lt.s32.totalorder %s24, 1
      %s1138 = scalar_select %p1137, %s24, 1
      %p1139 = scmp.lt.s32.totalorder %s1136, 7
      %s1140 = scalar_select %p1139, %s1136, 7
      %s1141 = smul.addr %s1138, 8
      %s1142 = sadd.s32 %s1140, %s1141
      %s1143 = smul.addr %s1142, 8
      %s1144 = scalar_lea.vmem %s7, %s1143
      %p1145 = scmp.lt.s32.totalorder %s24, 1
      %s1146 = scalar_select %p1145, %s24, 1
      %p1147 = scmp.lt.s32.totalorder %s25, 1
      %s1148 = scalar_select %p1147, %s25, 1
      %s1149 = smul.addr %s1146, 2
      %s1150 = sadd.s32 %s1148, %s1149
      %s1151 = smul.addr %s1150, 2
      %s1152 = scalar_lea.vmem %s8, %s1151
      // Predicated region
      $region49: #{conv_block3d_forward.3} parent=47 // pred_check
        %p1153 = pneg %p246
      $region50: #{conv_block3d_forward.3} parent=47 // pred_check_branch
        %1155 = sbr.rel (%p1153) target = $region52
      $region51: #{conv_block3d_forward.3} parent=47 // pred_region
        %s1156 = smul.u32 4, %s25
      $region52: #{conv_block3d_forward.3} parent=47 // pred_fallthru
        _
      // Predicated region
      $region53: #{conv_block3d_forward.3} parent=47 // pred_check
        %p1157 = pneg %p274
      $region54: #{conv_block3d_forward.3} parent=47 // pred_check_branch
        %1159 = sbr.rel (%p1157) target = $region56
      $region55: #{conv_block3d_forward.3} parent=47 // pred_region
        _
      $region56: #{conv_block3d_forward.3} parent=47 // pred_fallthru
        _
    $region48: #{conv_block3d_forward.3} parent=5 // pred_fallthru
      _
    %p1160 = scmp.le.s32.totalorder 2, %s15
    // Predicated region
    $region57: #{conv_block3d_forward.3} parent=5 // pred_check
      %p1161 = pneg %p1160
    $region58: #{conv_block3d_forward.3} parent=5 // pred_check_branch
      %1163 = sbr.rel (%p1161) target = $region60
    $region59: #{conv_block3d_forward.3} parent=5 // pred_region
      %s1164 = ssub.s32 %s15, 2
      // Predicated region
      $region61: #{conv_block3d_forward.3} parent=59 // pred_check
        %p1165 = pneg %p252
      $region62: #{conv_block3d_forward.3} parent=59 // pred_check_branch
        %1167 = sbr.rel (%p1165) target = $region64
      $region63: #{conv_block3d_forward.3} parent=59 // pred_region
        %s1168 = smul.u32 4, %s27
        %p1169 = scmp.lt.s32.totalorder %s26, 1
        %s1170 = scalar_select %p1169, %s26, 1
        %p1171 = scmp.lt.s32.totalorder %s1168, 7
        %s1172 = scalar_select %p1171, %s1168, 7
        %s1173 = smul.addr %s1170, 8
        %s1174 = sadd.s32 %s1172, %s1173
        %s1175 = smul.addr %s1174, 8
        %s1176 = scalar_lea.vmem %s7, %s1175
      $region64: #{conv_block3d_forward.3} parent=59 // pred_fallthru
        _
      // Predicated region
      $region65: #{conv_block3d_forward.3} parent=59 // pred_check
        %p1177 = pneg %p280
      $region66: #{conv_block3d_forward.3} parent=59 // pred_check_branch
        %1179 = sbr.rel (%p1177) target = $region68
      $region67: #{conv_block3d_forward.3} parent=59 // pred_region
        %p1180 = scmp.lt.s32.totalorder %s26, 1
        %s1181 = scalar_select %p1180, %s26, 1
        %p1182 = scmp.lt.s32.totalorder %s27, 1
        %s1183 = scalar_select %p1182, %s27, 1
        %s1184 = smul.addr %s1181, 2
        %s1185 = sadd.s32 %s1183, %s1184
        %s1186 = smul.addr %s1185, 2
        %s1187 = scalar_lea.vmem %s8, %s1186
      $region68: #{conv_block3d_forward.3} parent=59 // pred_fallthru
        _
    $region60: #{conv_block3d_forward.3} parent=5 // pred_fallthru
      _
  $region6: #{conv_block3d_forward.3} parent=0 // loop_footer
    %s19 = sadd.s32 1, %s15
  $region7: #{conv_block3d_forward.3} parent=0 // loop_footer_branch
    %14 = sbr.rel target = $region3
  $region8: #{conv_block3d_forward.3} parent=0 // loop_exit
    _

// kernel: conv_block3d_forward.5
$region0: #{conv_block3d_forward.5}
  #allocation0 [shape = 'u32[]', space=smem, size = 0x4, offset = 0x4, fixed_abs, tag = 'smem constant byte address 0x4 - core index']
  #allocation1 [shape = 'u32[72,128]{1,0:T(1,128)}', space=vmem, size = 0x9000, scoped, tag = 'internal scratch']
  %s0 = inlined_call_operand.vmem [shape: f32[2,8,8,128], index: 0, kind: input, shape index: {}]
  %s1 = inlined_call_operand.vmem [shape: f32[2,1,128], index: 1, kind: input, shape index: {}]
  %s2 = inlined_call_operand.vmem [shape: f32[2,1,128], index: 2, kind: input, shape index: {}]
  %s3 = inlined_call_operand.vmem [shape: f32[2,8,8,128], index: 3, kind: output, shape index: {}]
  %s4 = sld [smem:[#allocation0]]
  $region45: #{conv_block3d_forward.5} parent=0
    _
  %s6 = ssub.s32 1, %s4
  %s7 = scalar_select 0, %s6, %s4
  loop: start=0, step=1, limit=6
  $region2: #{conv_block3d_forward.5} parent=0 // loop_pre_header
    _
  $region3: #{conv_block3d_forward.5} parent=0 // loop_header
    %s9 = sphi 0, %s13
    %p10 = scmp.ge.s32.totalorder %s9, 6
    %s16 = sphi 0, %s28
    %s17 = sphi 0, %s24
    %s18 = sphi 0, %s16
    %s19 = sphi 0, %s17
    %s20 = sphi 0, %s18
    %s21 = sphi 0, %s19
    %s33 = sphi 0, %s35
    %s36 = sphi 0, %s33
    %s37 = sphi 0, %s36
    %s53 = sphi 0, %s37
    %s59 = sphi 0, %s61
    %s62 = sphi 0, %s59
    %s63 = sphi 0, %s62
    %s79 = sphi 0, %s63
    %s85 = sphi 0, %s87
    %s88 = sphi 0, %s85
    %s89 = sphi 0, %s88
    %s105 = sphi 0, %s89
    %s113 = sphi 0, %s115
    %s116 = sphi 0, %s113
    %s117 = sphi 0, %s116
    %s133 = sphi 0, %s117
  $region4: #{conv_block3d_forward.5} parent=0 // loop_header_branch
    %12 = sbr.rel (%p10) target = $region8
  $region5: #{conv_block3d_forward.5} parent=0 // loop_body
    %s14 = ssub.s32 %s9, 1
    %s15 = ssub.s32 %s9, 2
    %s22 = sadd.s32 1, %s17
    %p23 = scmp.ge.s32.totalorder %s22, 2
    %s24 = scalar_select %p23, 0, %s22
    %s25 = sadd.s32 1, %s16
    %s26 = scalar_select %p23, %s25, %s16
    %p27 = scmp.ge.s32.totalorder %s26, 2
    %s28 = scalar_select %p27, 0, %s26
    %s29 = ssub.s32 %s16, %s28
    %s30 = ssub.s32 %s17, %s24
    %s31 = sor.u32 %s29, %s30
    %p32 = scmp.eq.s32.totalorder %s31, 0
    %s34 = sadd.s32 %s33, 1
    %s35 = scalar_select %p32, %s33, %s34
    %p38 = pneg %p32
    %p39 = scmp.eq.s32.totalorder %s9, 3
    %p40 = por %p38, %p39
    %p41 = scmp.ne.s32.totalorder %s33, %s36
    %p42 = scmp.eq.s32.totalorder %s9, 0
    %p43 = por %p41, %p42
    %p44 = scmp.ne.s32.totalorder %s33, %s36
    %p45 = scmp.eq.s32.totalorder %s14, 3
    %p46 = por %p44, %p45
    %p47 = scmp.ne.s32.totalorder %s36, %s37
    %p48 = scmp.eq.s32.totalorder %s14, 0
    %p49 = por %p47, %p48
    %p50 = scmp.ne.s32.totalorder %s36, %s37
    %p51 = scmp.eq.s32.totalorder %s15, 3
    %p52 = por %p50, %p51
    %p54 = scmp.ne.s32.totalorder %s37, %s53
    %p55 = scmp.eq.s32.totalorder %s15, 0
    %p56 = por %p54, %p55
    %s57 = ssub.s32 %s16, %s28
    %p58 = scmp.eq.s32.totalorder %s57, 0
    %s60 = sadd.s32 %s59, 1
    %s61 = scalar_select %p58, %s59, %s60
    %p64 = pneg %p58
    %p65 = scmp.eq.s32.totalorder %s9, 3
    %p66 = por %p64, %p65
    %p67 = scmp.ne.s32.totalorder %s59, %s62
    %p68 = scmp.eq.s32.totalorder %s9, 0
    %p69 = por %p67, %p68
    %p70 = scmp.ne.s32.totalorder %s59, %s62
    %p71 = scmp.eq.s32.totalorder %s14, 3
    %p72 = por %p70, %p71
    %p73 = scmp.ne.s32.totalorder %s62, %s63
    %p74 = scmp.eq.s32.totalorder %s14, 0
    %p75 = por %p73, %p74
    %p76 = scmp.ne.s32.totalorder %s62, %s63
    %p77 = scmp.eq.s32.totalorder %s15, 3
    %p78 = por %p76, %p77
    %p80 = scmp.ne.s32.totalorder %s63, %s79
    %p81 = scmp.eq.s32.totalorder %s15, 0
    %p82 = por %p80, %p81
    %s83 = ssub.s32 %s16, %s28
    %p84 = scmp.eq.s32.totalorder %s83, 0
    %s86 = sadd.s32 %s85, 1
    %s87 = scalar_select %p84, %s85, %s86
    %p90 = pneg %p84
    %p91 = scmp.eq.s32.totalorder %s9, 3
    %p92 = por %p90, %p91
    %p93 = scmp.ne.s32.totalorder %s85, %s88
    %p94 = scmp.eq.s32.totalorder %s9, 0
    %p95 = por %p93, %p94
    %p96 = scmp.ne.s32.totalorder %s85, %s88
    %p97 = scmp.eq.s32.totalorder %s14, 3
    %p98 = por %p96, %p97
    %p99 = scmp.ne.s32.totalorder %s88, %s89
    %p100 = scmp.eq.s32.totalorder %s14, 0
    %p101 = por %p99, %p100
    %p102 = scmp.ne.s32.totalorder %s88, %s89
    %p103 = scmp.eq.s32.totalorder %s15, 3
    %p104 = por %p102, %p103
    %p106 = scmp.ne.s32.totalorder %s89, %s105
    %p107 = scmp.eq.s32.totalorder %s15, 0
    %p108 = por %p106, %p107
    %s109 = ssub.s32 %s16, %s28
    %s110 = ssub.s32 %s17, %s24
    %s111 = sor.u32 %s109, %s110
    %p112 = scmp.eq.s32.totalorder %s111, 0
    %s114 = sadd.s32 %s113, 1
    %s115 = scalar_select %p112, %s113, %s114
    %p118 = pneg %p112
    %p119 = scmp.eq.s32.totalorder %s9, 3
    %p120 = por %p118, %p119
    %p121 = scmp.ne.s32.totalorder %s113, %s116
    %p122 = scmp.eq.s32.totalorder %s9, 0
    %p123 = por %p121, %p122
    %p124 = scmp.ne.s32.totalorder %s113, %s116
    %p125 = scmp.eq.s32.totalorder %s14, 3
    %p126 = por %p124, %p125
    %p127 = scmp.ne.s32.totalorder %s116, %s117
    %p128 = scmp.eq.s32.totalorder %s14, 0
    %p129 = por %p127, %p128
    %p130 = scmp.ne.s32.totalorder %s116, %s117
    %p131 = scmp.eq.s32.totalorder %s15, 3
    %p132 = por %p130, %p131
    %p134 = scmp.ne.s32.totalorder %s117, %s133
    %p135 = scmp.eq.s32.totalorder %s15, 0
    %p136 = por %p134, %p135
    %p137 = scmp.le.s32.totalorder 1, %s9
    %p138 = scmp.lt.s32.totalorder %s9, 5
    %p139 = pnand %p137, %p138
    %p140 = pneg %p139
    // Predicated region
    $region9: #{conv_block3d_forward.5} parent=5 // pred_check
      _
    $region10: #{conv_block3d_forward.5} parent=5 // pred_check_branch
      %142 = sbr.rel (%p139) target = $region12
    $region11: #{conv_block3d_forward.5} parent=5 // pred_region
      %s143 = ssub.s32 %s9, 1
    $region12: #{conv_block3d_forward.5} parent=5 // pred_fallthru
      _
    %p144 = scmp.lt.s32.totalorder %s9, 4
    // Predicated region
    $region13: #{conv_block3d_forward.5} parent=5 // pred_check
      %p145 = pneg %p144
    $region14: #{conv_block3d_forward.5} parent=5 // pred_check_branch
      %147 = sbr.rel (%p145) target = $region16
    $region15: #{conv_block3d_forward.5} parent=5 // pred_region
      // Predicated region
      $region17: #{conv_block3d_forward.5} parent=15 // pred_check
        %p148 = pneg %p43
      $region18: #{conv_block3d_forward.5} parent=15 // pred_check_branch
        %150 = sbr.rel (%p148) target = $region20
      $region19: #{conv_block3d_forward.5} parent=15 // pred_region
        %s151 = smul.u32 4, %s17
        %p152 = scmp.lt.s32.totalorder %s16, 1
        %s153 = scalar_select %p152, %s16, 1
        %p154 = scmp.lt.s32.totalorder %s151, 7
        %s155 = scalar_select %p154, %s151, 7
        %s156 = smul.addr %s153, 8
        %s157 = sadd.s32 %s155, %s156
        %s158 = smul.addr %s157, 8
        %s159 = scalar_lea.vmem %s0, %s158
        %s160 = smul.u32 4, %s17
      $region20: #{conv_block3d_forward.5} parent=15 // pred_fallthru
        _
      // Predicated region
      $region21: #{conv_block3d_forward.5} parent=15 // pred_check
        %p161 = pneg %p69
      $region22: #{conv_block3d_forward.5} parent=15 // pred_check_branch
        %163 = sbr.rel (%p161) target = $region24
      $region23: #{conv_block3d_forward.5} parent=15 // pred_region
        %p164 = scmp.lt.s32.totalorder %s16, 1
        %s165 = scalar_select %p164, %s16, 1
        %s166 = scalar_lea.vmem %s1, %s165
      $region24: #{conv_block3d_forward.5} parent=15 // pred_fallthru
        _
      // Predicated region
      $region25: #{conv_block3d_forward.5} parent=15 // pred_check
        %p167 = pneg %p95
      $region26: #{conv_block3d_forward.5} parent=15 // pred_check_branch
        %169 = sbr.rel (%p167) target = $region28
      $region27: #{conv_block3d_forward.5} parent=15 // pred_region
        %p170 = scmp.lt.s32.totalorder %s16, 1
        %s171 = scalar_select %p170, %s16, 1
        %s172 = scalar_lea.vmem %s2, %s171
      $region28: #{conv_block3d_forward.5} parent=15 // pred_fallthru
        _
    $region16: #{conv_block3d_forward.5} parent=5 // pred_fallthru
      _
    %p173 = scmp.le.s32.totalorder 1, %s9
    %p174 = scmp.lt.s32.totalorder %s9, 5
    %p175 = pnand %p173, %p174
    %p176 = pneg %p175
    // Predicated region
    $region29: #{conv_block3d_forward.5} parent=5 // pred_check
      _
    $region30: #{conv_block3d_forward.5} parent=5 // pred_check_branch
      %178 = sbr.rel (%p175) target = $region32
    $region31: #{conv_block3d_forward.5} parent=5 // pred_region
      %s179 = ssub.s32 %s9, 1
      %s180 = smul.u32 4, %s19
      %p181 = scmp.lt.s32.totalorder %s18, 1
      %s182 = scalar_select %p181, %s18, 1
      %p183 = scmp.lt.s32.totalorder %s180, 7
      %s184 = scalar_select %p183, %s180, 7
      %s185 = smul.addr %s182, 8
      %s186 = sadd.s32 %s184, %s185
      %s187 = smul.addr %s186, 8
      %s188 = scalar_lea.vmem %s0, %s187
      %p189 = pneg %p49
      %p190 = pneg %p46
      %p191 = scmp.lt.s32.totalorder %s18, 1
      %s192 = scalar_select %p191, %s18, 1
      %s193 = scalar_lea.vmem %s1, %s192
      %p194 = pneg %p75
      %p195 = pneg %p72
      %p196 = scmp.lt.s32.totalorder %s18, 1
      %s197 = scalar_select %p196, %s18, 1
      %s198 = scalar_lea.vmem %s2, %s197
      %p199 = pneg %p101
      %p200 = pneg %p98
      %p201 = pneg %p129
      %p202 = pneg %p126
      %s203 = smul.u32 4, %s19
      %p204 = scmp.lt.s32.totalorder %s18, 1
      %s205 = scalar_select %p204, %s18, 1
      %p206 = scmp.lt.s32.totalorder %s203, 7
      %s207 = scalar_select %p206, %s203, 7
      %s208 = smul.addr %s205, 8
      %s209 = sadd.s32 %s207, %s208
      %s210 = smul.addr %s209, 8
      %s211 = scalar_lea.vmem %s3, %s210
      %s212 = smul.u32 4, %s19
      %p213 = scmp.lt.s32.totalorder %s18, 1
      %s214 = scalar_select %p213, %s18, 1
      %p215 = scmp.lt.s32.totalorder %s212, 7
      %s216 = scalar_select %p215, %s212, 7
      %s217 = smul.addr %s214, 8
      %s218 = sadd.s32 %s216, %s217
      %s219 = smul.addr %s218, 8
      %s220 = scalar_lea.vmem %s0, %s219
      %s221 = smul.u32 4, %s19
      %p222 = scmp.lt.s32.totalorder %s18, 1
      %s223 = scalar_select %p222, %s18, 1
      %s224 = scalar_lea.vmem %s1, %s223
      %p225 = scmp.lt.s32.totalorder %s18, 1
      %s226 = scalar_select %p225, %s18, 1
      %s227 = scalar_lea.vmem %s2, %s226
      %s228 = smul.u32 4, %s19
      %p229 = scmp.lt.s32.totalorder %s18, 1
      %s230 = scalar_select %p229, %s18, 1
      %p231 = scmp.lt.s32.totalorder %s228, 7
      %s232 = scalar_select %p231, %s228, 7
      %s233 = smul.addr %s230, 8
      %s234 = sadd.s32 %s232, %s233
      %s235 = smul.addr %s234, 8
      %s236 = scalar_lea.vmem %s3, %s235
      %s237 = smul.u32 4, %s19
      %v238 = vld [vmem:[%s220] sm:$0xff]
      %v239 = vld [vmem:[%s220 + $0x8] sm:$0xff]
      %v240 = vld [vmem:[%s220 + $0x10] sm:$0xff]
      %v241 = vld [vmem:[%s220 + $0x18] sm:$0xff]
      %v242 = vld [vmem:[%s224] sm:$0x1]
      %v243 = vld [vmem:[%s227] sm:$0x1]
      %v245 = vperm.slane %v242, 0
      %v247 = vmul.f32 %v238, %v245
      %v248 = vmul.f32 %v239, %v245
      %v249 = vmul.f32 %v240, %v245
      %v250 = vmul.f32 %v241, %v245
      %v252 = vperm.slane %v243, 0
      %v254 = vadd.f32 %v247, %v252
      %v255 = vadd.f32 %v248, %v252
      %v256 = vadd.f32 %v249, %v252
      %v257 = vadd.f32 %v250, %v252
      %v258 = vmax.f32 %v254, 0.0
      %v259 = vmax.f32 %v255, 0.0
      %v260 = vmax.f32 %v256, 0.0
      %v261 = vmax.f32 %v257, 0.0
      %262 = vst [vmem:[%s236] sm:$0xff] %v258
      %263 = vst [vmem:[%s236 + $0x8] sm:$0xff] %v259
      %264 = vst [vmem:[%s236 + $0x10] sm:$0xff] %v260
      %265 = vst [vmem:[%s236 + $0x18] sm:$0xff] %v261
      %s266 = smul.u32 4, %s19
      %p267 = scmp.lt.s32.totalorder %s18, 1
      %s268 = scalar_select %p267, %s18, 1
      %p269 = scmp.lt.s32.totalorder %s266, 7
      %s270 = scalar_select %p269, %s266, 7
      %s271 = smul.addr %s268, 8
      %s272 = sadd.s32 %s270, %s271
      %s273 = smul.addr %s272, 8
      %s274 = scalar_lea.vmem %s3, %s273
      // Predicated region
      $region33: #{conv_block3d_forward.5} parent=31 // pred_check
        %p275 = pneg %p126
      $region34: #{conv_block3d_forward.5} parent=31 // pred_check_branch
        %277 = sbr.rel (%p275) target = $region36
      $region35: #{conv_block3d_forward.5} parent=31 // pred_region
        %s278 = smul.u32 4, %s19
      $region36: #{conv_block3d_forward.5} parent=31 // pred_fallthru
        _
    $region32: #{conv_block3d_forward.5} parent=5 // pred_fallthru
      _
    %p279 = scmp.le.s32.totalorder 2, %s9
    // Predicated region
    $region37: #{conv_block3d_forward.5} parent=5 // pred_check
      %p280 = pneg %p279
    $region38: #{conv_block3d_forward.5} parent=5 // pred_check_branch
      %282 = sbr.rel (%p280) target = $region40
    $region39: #{conv_block3d_forward.5} parent=5 // pred_region
      %s283 = ssub.s32 %s9, 2
      // Predicated region
      $region41: #{conv_block3d_forward.5} parent=39 // pred_check
        %p284 = pneg %p132
      $region42: #{conv_block3d_forward.5} parent=39 // pred_check_branch
        %286 = sbr.rel (%p284) target = $region44
      $region43: #{conv_block3d_forward.5} parent=39 // pred_region
        %s287 = smul.u32 4, %s21
        %p288 = scmp.lt.s32.totalorder %s20, 1
        %s289 = scalar_select %p288, %s20, 1
        %p290 = scmp.lt.s32.totalorder %s287, 7
        %s291 = scalar_select %p290, %s287, 7
        %s292 = smul.addr %s289, 8
        %s293 = sadd.s32 %s291, %s292
        %s294 = smul.addr %s293, 8
        %s295 = scalar_lea.vmem %s3, %s294
      $region44: #{conv_block3d_forward.5} parent=39 // pred_fallthru
        _
    $region40: #{conv_block3d_forward.5} parent=5 // pred_fallthru
      _
  $region6: #{conv_block3d_forward.5} parent=0 // loop_footer
    %s13 = sadd.s32 1, %s9
  $region7: #{conv_block3d_forward.5} parent=0 // loop_footer_branch
    %8 = sbr.rel target = $region3
  $region8: #{conv_block3d_forward.5} parent=0 // loop_exit
    _

// kernel: conv_block3d_forward.4
$region0: #{conv_block3d_forward.4}
  #allocation0 [shape = 'u32[]', space=smem, size = 0x4, offset = 0x4, fixed_abs, tag = 'smem constant byte address 0x4 - core index']
  #allocation1 [shape = 'u32[72,128]{1,0:T(1,128)}', space=vmem, size = 0x9000, scoped, tag = 'internal scratch']
  #allocation2 [shape = 'f32[6,10,160]{2,1,0:T(8,128)}', space=vmem, size = 0x18000, scoped, tag = 'scratch operand']
  %s0 = inlined_call_operand.vmem [shape: f32[2,8,8,128], index: 0, kind: input, shape index: {}, may-alias: {0,1,2}]
  %s1 = inlined_call_operand.vmem [shape: f32[2,8,8,128], index: 1, kind: input, shape index: {}, may-alias: {0,1,2}]
  %s2 = inlined_call_operand.vmem [shape: f32[2,8,8,128], index: 2, kind: input, shape index: {}, may-alias: {0,1,2}]
  %s3 = inlined_call_operand.vmem [shape: bf16[9,160,128], index: 3, kind: input, shape index: {}]
  %s4 = inlined_call_operand.vmem [shape: f32[1,128], index: 4, kind: input, shape index: {}]
  %s5 = inlined_call_operand.vmem [shape: f32[2,1,128], index: 5, kind: input, shape index: {}]
  %s6 = inlined_call_operand.vmem [shape: f32[2,1,128], index: 6, kind: input, shape index: {}]
  %s7 = inlined_call_operand.vmem [shape: f32[2,8,8,128], index: 7, kind: output, shape index: {0}]
  %s8 = inlined_call_operand.vmem [shape: f32[2,2,2,128], index: 8, kind: output, shape index: {1}]
  %9 = xla_tuple %s7, %s8
  %s10 = sld [smem:[#allocation0]]
  $region69: #{conv_block3d_forward.4} parent=0
    _
  %s12 = ssub.s32 1, %s10
  %s13 = scalar_select 0, %s12, %s10
  loop: start=0, step=1, limit=6
  $region2: #{conv_block3d_forward.4} parent=0 // loop_pre_header
    _
  $region3: #{conv_block3d_forward.4} parent=0 // loop_header
    %s15 = sphi 0, %s19
    %p16 = scmp.ge.s32.totalorder %s15, 6
    %s22 = sphi 0, %s34
    %s23 = sphi 0, %s30
    %s24 = sphi 0, %s22
    %s25 = sphi 0, %s23
    %s26 = sphi 0, %s24
    %s27 = sphi 0, %s25
    %s47 = sphi 0, %s49
    %s50 = sphi 0, %s47
    %s51 = sphi 0, %s50
    %s67 = sphi 0, %s51
    %s75 = sphi 0, %s77
    %s78 = sphi 0, %s75
    %s79 = sphi 0, %s78
    %s95 = sphi 0, %s79
    %s111 = sphi 0, %s113
    %s114 = sphi 0, %s111
    %s115 = sphi 0, %s114
    %s131 = sphi 0, %s115
    %s135 = sphi 0, %s135
    %s137 = sphi 0, %s135
    %s138 = sphi 0, %s137
    %s152 = sphi 0, %s138
    %s156 = sphi 0, %s156
    %s158 = sphi 0, %s156
    %s159 = sphi 0, %s158
    %s173 = sphi 0, %s159
    %s179 = sphi 0, %s181
    %s182 = sphi 0, %s179
    %s183 = sphi 0, %s182
    %s199 = sphi 0, %s183
    %s205 = sphi 0, %s207
    %s208 = sphi 0, %s205
    %s209 = sphi 0, %s208
    %s225 = sphi 0, %s209
    %s233 = sphi 0, %s235
    %s236 = sphi 0, %s233
    %s237 = sphi 0, %s236
    %s253 = sphi 0, %s237
    %s261 = sphi 0, %s263
    %s264 = sphi 0, %s261
    %s265 = sphi 0, %s264
    %s281 = sphi 0, %s265
  $region4: #{conv_block3d_forward.4} parent=0 // loop_header_branch
    %18 = sbr.rel (%p16) target = $region8
  $region5: #{conv_block3d_forward.4} parent=0 // loop_body
    %s20 = ssub.s32 %s15, 1
    %s21 = ssub.s32 %s15, 2
    %s28 = sadd.s32 1, %s23
    %p29 = scmp.ge.s32.totalorder %s28, 2
    %s30 = scalar_select %p29, 0, %s28
    %s31 = sadd.s32 1, %s22
    %s32 = scalar_select %p29, %s31, %s22
    %p33 = scmp.ge.s32.totalorder %s32, 2
    %s34 = scalar_select %p33, 0, %s32
    %s35 = smul.u32 %s23, 4
    %s36 = ssub.s32 %s35, 1
    %p37 = scmp.gt.s32.totalorder %s36, 0
    %s38 = scalar_select %p37, %s36, 0
    %s39 = smul.u32 %s30, 4
    %s40 = ssub.s32 %s39, 1
    %p41 = scmp.gt.s32.totalorder %s40, 0
    %s42 = scalar_select %p41, %s40, 0
    %s43 = ssub.s32 %s22, %s34
    %s44 = ssub.s32 %s38, %s42
    %s45 = sor.u32 %s43, %s44
    %p46 = scmp.eq.s32.totalorder %s45, 0
    %s48 = sadd.s32 %s47, 1
    %s49 = scalar_select %p46, %s47, %s48
    %p52 = pneg %p46
    %p53 = scmp.eq.s32.totalorder %s15, 3
    %p54 = por %p52, %p53
    %p55 = scmp.ne.s32.totalorder %s47, %s50
    %p56 = scmp.eq.s32.totalorder %s15, 0
    %p57 = por %p55, %p56
    %p58 = scmp.ne.s32.totalorder %s47, %s50
    %p59 = scmp.eq.s32.totalorder %s20, 3
    %p60 = por %p58, %p59
    %p61 = scmp.ne.s32.totalorder %s50, %s51
    %p62 = scmp.eq.s32.totalorder %s20, 0
    %p63 = por %p61, %p62
    %p64 = scmp.ne.s32.totalorder %s50, %s51
    %p65 = scmp.eq.s32.totalorder %s21, 3
    %p66 = por %p64, %p65
    %p68 = scmp.ne.s32.totalorder %s51, %s67
    %p69 = scmp.eq.s32.totalorder %s21, 0
    %p70 = por %p68, %p69
    %s71 = ssub.s32 %s22, %s34
    %s72 = ssub.s32 %s23, %s30
    %s73 = sor.u32 %s71, %s72
    %p74 = scmp.eq.s32.totalorder %s73, 0
    %s76 = sadd.s32 %s75, 1
    %s77 = scalar_select %p74, %s75, %s76
    %p80 = pneg %p74
    %p81 = scmp.eq.s32.totalorder %s15, 3
    %p82 = por %p80, %p81
    %p83 = scmp.ne.s32.totalorder %s75, %s78
    %p84 = scmp.eq.s32.totalorder %s15, 0
    %p85 = por %p83, %p84
    %p86 = scmp.ne.s32.totalorder %s75, %s78
    %p87 = scmp.eq.s32.totalorder %s20, 3
    %p88 = por %p86, %p87
    %p89 = scmp.ne.s32.totalorder %s78, %s79
    %p90 = scmp.eq.s32.totalorder %s20, 0
    %p91 = por %p89, %p90
    %p92 = scmp.ne.s32.totalorder %s78, %s79
    %p93 = scmp.eq.s32.totalorder %s21, 3
    %p94 = por %p92, %p93
    %p96 = scmp.ne.s32.totalorder %s79, %s95
    %p97 = scmp.eq.s32.totalorder %s21, 0
    %p98 = por %p96, %p97
    %s99 = smul.u32 %s23, 4
    %s100 = sadd.s32 %s99, 4
    %p101 = scmp.lt.s32.totalorder %s100, 7
    %s102 = scalar_select %p101, %s100, 7
    %s103 = smul.u32 %s30, 4
    %s104 = sadd.s32 %s103, 4
    %p105 = scmp.lt.s32.totalorder %s104, 7
    %s106 = scalar_select %p105, %s104, 7
    %s107 = ssub.s32 %s22, %s34
    %s108 = ssub.s32 %s102, %s106
    %s109 = sor.u32 %s107, %s108
    %p110 = scmp.eq.s32.totalorder %s109, 0
    %s112 = sadd.s32 %s111, 1
    %s113 = scalar_select %p110, %s111, %s112
    %p116 = pneg %p110
    %p117 = scmp.eq.s32.totalorder %s15, 3
    %p118 = por %p116, %p117
    %p119 = scmp.ne.s32.totalorder %s111, %s114
    %p120 = scmp.eq.s32.totalorder %s15, 0
    %p121 = por %p119, %p120
    %p122 = scmp.ne.s32.totalorder %s111, %s114
    %p123 = scmp.eq.s32.totalorder %s20, 3
    %p124 = por %p122, %p123
    %p125 = scmp.ne.s32.totalorder %s114, %s115
    %p126 = scmp.eq.s32.totalorder %s20, 0
    %p127 = por %p125, %p126
    %p128 = scmp.ne.s32.totalorder %s114, %s115
    %p129 = scmp.eq.s32.totalorder %s21, 3
    %p130 = por %p128, %p129
    %p132 = scmp.ne.s32.totalorder %s115, %s131
    %p133 = scmp.eq.s32.totalorder %s21, 0
    %p134 = por %p132, %p133
    %s136 = sadd.s32 %s135, 1
    %p139 = scmp.eq.s32.totalorder %s15, 3
    %p140 = scmp.ne.s32.totalorder %s135, %s137
    %p141 = scmp.eq.s32.totalorder %s15, 0
    %p142 = por %p140, %p141
    %p143 = scmp.ne.s32.totalorder %s135, %s137
    %p144 = scmp.eq.s32.totalorder %s20, 3
    %p145 = por %p143, %p144
    %p146 = scmp.ne.s32.totalorder %s137, %s138
    %p147 = scmp.eq.s32.totalorder %s20, 0
    %p148 = por %p146, %p147
    %p149 = scmp.ne.s32.totalorder %s137, %s138
    %p150 = scmp.eq.s32.totalorder %s21, 3
    %p151 = por %p149, %p150
    %p153 = scmp.ne.s32.totalorder %s138, %s152
    %p154 = scmp.eq.s32.totalorder %s21, 0
    %p155 = por %p153, %p154
    %s157 = sadd.s32 %s156, 1
    %p160 = scmp.eq.s32.totalorder %s15, 3
    %p161 = scmp.ne.s32.totalorder %s156, %s158
    %p162 = scmp.eq.s32.totalorder %s15, 0
    %p163 = por %p161, %p162
    %p164 = scmp.ne.s32.totalorder %s156, %s158
    %p165 = scmp.eq.s32.totalorder %s20, 3
    %p166 = por %p164, %p165
    %p167 = scmp.ne.s32.totalorder %s158, %s159
    %p168 = scmp.eq.s32.totalorder %s20, 0
    %p169 = por %p167, %p168
    %p170 = scmp.ne.s32.totalorder %s158, %s159
    %p171 = scmp.eq.s32.totalorder %s21, 3
    %p172 = por %p170, %p171
    %p174 = scmp.ne.s32.totalorder %s159, %s173
    %p175 = scmp.eq.s32.totalorder %s21, 0
    %p176 = por %p174, %p175
    %s177 = ssub.s32 %s22, %s34
    %p178 = scmp.eq.s32.totalorder %s177, 0
    %s180 = sadd.s32 %s179, 1
    %s181 = scalar_select %p178, %s179, %s180
    %p184 = pneg %p178
    %p185 = scmp.eq.s32.totalorder %s15, 3
    %p186 = por %p184, %p185
    %p187 = scmp.ne.s32.totalorder %s179, %s182
    %p188 = scmp.eq.s32.totalorder %s15, 0
    %p189 = por %p187, %p188
    %p190 = scmp.ne.s32.totalorder %s179, %s182
    %p191 = scmp.eq.s32.totalorder %s20, 3
    %p192 = por %p190, %p191
    %p193 = scmp.ne.s32.totalorder %s182, %s183
    %p194 = scmp.eq.s32.totalorder %s20, 0
    %p195 = por %p193, %p194
    %p196 = scmp.ne.s32.totalorder %s182, %s183
    %p197 = scmp.eq.s32.totalorder %s21, 3
    %p198 = por %p196, %p197
    %p200 = scmp.ne.s32.totalorder %s183, %s199
    %p201 = scmp.eq.s32.totalorder %s21, 0
    %p202 = por %p200, %p201
    %s203 = ssub.s32 %s22, %s34
    %p204 = scmp.eq.s32.totalorder %s203, 0
    %s206 = sadd.s32 %s205, 1
    %s207 = scalar_select %p204, %s205, %s206
    %p210 = pneg %p204
    %p211 = scmp.eq.s32.totalorder %s15, 3
    %p212 = por %p210, %p211
    %p213 = scmp.ne.s32.totalorder %s205, %s208
    %p214 = scmp.eq.s32.totalorder %s15, 0
    %p215 = por %p213, %p214
    %p216 = scmp.ne.s32.totalorder %s205, %s208
    %p217 = scmp.eq.s32.totalorder %s20, 3
    %p218 = por %p216, %p217
    %p219 = scmp.ne.s32.totalorder %s208, %s209
    %p220 = scmp.eq.s32.totalorder %s20, 0
    %p221 = por %p219, %p220
    %p222 = scmp.ne.s32.totalorder %s208, %s209
    %p223 = scmp.eq.s32.totalorder %s21, 3
    %p224 = por %p222, %p223
    %p226 = scmp.ne.s32.totalorder %s209, %s225
    %p227 = scmp.eq.s32.totalorder %s21, 0
    %p228 = por %p226, %p227
    %s229 = ssub.s32 %s22, %s34
    %s230 = ssub.s32 %s23, %s30
    %s231 = sor.u32 %s229, %s230
    %p232 = scmp.eq.s32.totalorder %s231, 0
    %s234 = sadd.s32 %s233, 1
    %s235 = scalar_select %p232, %s233, %s234
    %p238 = pneg %p232
    %p239 = scmp.eq.s32.totalorder %s15, 3
    %p240 = por %p238, %p239
    %p241 = scmp.ne.s32.totalorder %s233, %s236
    %p242 = scmp.eq.s32.totalorder %s15, 0
    %p243 = por %p241, %p242
    %p244 = scmp.ne.s32.totalorder %s233, %s236
    %p245 = scmp.eq.s32.totalorder %s20, 3
    %p246 = por %p244, %p245
    %p247 = scmp.ne.s32.totalorder %s236, %s237
    %p248 = scmp.eq.s32.totalorder %s20, 0
    %p249 = por %p247, %p248
    %p250 = scmp.ne.s32.totalorder %s236, %s237
    %p251 = scmp.eq.s32.totalorder %s21, 3
    %p252 = por %p250, %p251
    %p254 = scmp.ne.s32.totalorder %s237, %s253
    %p255 = scmp.eq.s32.totalorder %s21, 0
    %p256 = por %p254, %p255
    %s257 = ssub.s32 %s22, %s34
    %s258 = ssub.s32 %s23, %s30
    %s259 = sor.u32 %s257, %s258
    %p260 = scmp.eq.s32.totalorder %s259, 0
    %s262 = sadd.s32 %s261, 1
    %s263 = scalar_select %p260, %s261, %s262
    %p266 = pneg %p260
    %p267 = scmp.eq.s32.totalorder %s15, 3
    %p268 = por %p266, %p267
    %p269 = scmp.ne.s32.totalorder %s261, %s264
    %p270 = scmp.eq.s32.totalorder %s15, 0
    %p271 = por %p269, %p270
    %p272 = scmp.ne.s32.totalorder %s261, %s264
    %p273 = scmp.eq.s32.totalorder %s20, 3
    %p274 = por %p272, %p273
    %p275 = scmp.ne.s32.totalorder %s264, %s265
    %p276 = scmp.eq.s32.totalorder %s20, 0
    %p277 = por %p275, %p276
    %p278 = scmp.ne.s32.totalorder %s264, %s265
    %p279 = scmp.eq.s32.totalorder %s21, 3
    %p280 = por %p278, %p279
    %p282 = scmp.ne.s32.totalorder %s265, %s281
    %p283 = scmp.eq.s32.totalorder %s21, 0
    %p284 = por %p282, %p283
    %p285 = scmp.le.s32.totalorder 1, %s15
    %p286 = scmp.lt.s32.totalorder %s15, 5
    %p287 = pnand %p285, %p286
    %p288 = pneg %p287
    // Predicated region
    $region9: #{conv_block3d_forward.4} parent=5 // pred_check
      _
    $region10: #{conv_block3d_forward.4} parent=5 // pred_check_branch
      %290 = sbr.rel (%p287) target = $region12
    $region11: #{conv_block3d_forward.4} parent=5 // pred_region
      %s291 = ssub.s32 %s15, 1
      // Predicated region
      $region13: #{conv_block3d_forward.4} parent=11 // pred_check
        %p292 = pneg %p148
      $region14: #{conv_block3d_forward.4} parent=11 // pred_check_branch
        %294 = sbr.rel (%p292) target = $region16
      $region15: #{conv_block3d_forward.4} parent=11 // pred_region
        _
      $region16: #{conv_block3d_forward.4} parent=11 // pred_fallthru
        _
      // Predicated region
      $region17: #{conv_block3d_forward.4} parent=11 // pred_check
        %p295 = pneg %p169
      $region18: #{conv_block3d_forward.4} parent=11 // pred_check_branch
        %297 = sbr.rel (%p295) target = $region20
      $region19: #{conv_block3d_forward.4} parent=11 // pred_region
        _
      $region20: #{conv_block3d_forward.4} parent=11 // pred_fallthru
        _
    $region12: #{conv_block3d_forward.4} parent=5 // pred_fallthru
      _
    %p298 = scmp.lt.s32.totalorder %s15, 4
    // Predicated region
    $region21: #{conv_block3d_forward.4} parent=5 // pred_check
      %p299 = pneg %p298
    $region22: #{conv_block3d_forward.4} parent=5 // pred_check_branch
      %301 = sbr.rel (%p299) target = $region24
    $region23: #{conv_block3d_forward.4} parent=5 // pred_region
      // Predicated region
      $region25: #{conv_block3d_forward.4} parent=23 // pred_check
        %p302 = pneg %p57
      $region26: #{conv_block3d_forward.4} parent=23 // pred_check_branch
        %304 = sbr.rel (%p302) target = $region28
      $region27: #{conv_block3d_forward.4} parent=23 // pred_region
        %s305 = smul.u32 %s23, 4
        %s306 = ssub.s32 %s305, 1
        %p307 = scmp.gt.s32.totalorder %s306, 0
        %s308 = scalar_select %p307, %s306, 0
        %p309 = scmp.lt.s32.totalorder %s22, 1
        %s310 = scalar_select %p309, %s22, 1
        %p311 = scmp.lt.s32.totalorder %s308, 7
        %s312 = scalar_select %p311, %s308, 7
        %s313 = smul.addr %s310, 8
        %s314 = sadd.s32 %s312, %s313
        %s315 = smul.addr %s314, 8
        %s316 = scalar_lea.vmem %s0, %s315
        %s317 = smul.u32 %s23, 4
        %s318 = ssub.s32 %s317, 1
        %p319 = scmp.gt.s32.totalorder %s318, 0
        %s320 = scalar_select %p319, %s318, 0
      $region28: #{conv_block3d_forward.4} parent=23 // pred_fallthru
        _
      // Predicated region
      $region29: #{conv_block3d_forward.4} parent=23 // pred_check
        %p321 = pneg %p85
      $region30: #{conv_block3d_forward.4} parent=23 // pred_check_branch
        %323 = sbr.rel (%p321) target = $region32
      $region31: #{conv_block3d_forward.4} parent=23 // pred_region
        %s324 = smul.u32 4, %s23
        %p325 = scmp.lt.s32.totalorder %s22, 1
        %s326 = scalar_select %p325, %s22, 1
        %p327 = scmp.lt.s32.totalorder %s324, 7
        %s328 = scalar_select %p327, %s324, 7
        %s329 = smul.addr %s326, 8
        %s330 = sadd.s32 %s328, %s329
        %s331 = smul.addr %s330, 8
        %s332 = scalar_lea.vmem %s1, %s331
        %s333 = smul.u32 4, %s23
      $region32: #{conv_block3d_forward.4} parent=23 // pred_fallthru
        _
      // Predicated region
      $region33: #{conv_block3d_forward.4} parent=23 // pred_check
        %p334 = pneg %p121
      $region34: #{conv_block3d_forward.4} parent=23 // pred_check_branch
        %336 = sbr.rel (%p334) target = $region36
      $region35: #{conv_block3d_forward.4} parent=23 // pred_region
        %s337 = smul.u32 %s23, 4
        %s338 = sadd.s32 %s337, 4
        %p339 = scmp.lt.s32.totalorder %s338, 7
        %s340 = scalar_select %p339, %s338, 7
        %p341 = scmp.lt.s32.totalorder %s22, 1
        %s342 = scalar_select %p341, %s22, 1
        %p343 = scmp.lt.s32.totalorder %s340, 7
        %s344 = scalar_select %p343, %s340, 7
        %s345 = smul.addr %s342, 8
        %s346 = sadd.s32 %s344, %s345
        %s347 = smul.addr %s346, 8
        %s348 = scalar_lea.vmem %s2, %s347
        %s349 = smul.u32 %s23, 4
        %s350 = sadd.s32 %s349, 4
        %p351 = scmp.lt.s32.totalorder %s350, 7
        %s352 = scalar_select %p351, %s350, 7
      $region36: #{conv_block3d_forward.4} parent=23 // pred_fallthru
        _
      // Predicated region
      $region37: #{conv_block3d_forward.4} parent=23 // pred_check
        %p353 = pneg %p189
      $region38: #{conv_block3d_forward.4} parent=23 // pred_check_branch
        %355 = sbr.rel (%p353) target = $region40
      $region39: #{conv_block3d_forward.4} parent=23 // pred_region
        %p356 = scmp.lt.s32.totalorder %s22, 1
        %s357 = scalar_select %p356, %s22, 1
        %s358 = scalar_lea.vmem %s5, %s357
      $region40: #{conv_block3d_forward.4} parent=23 // pred_fallthru
        _
      // Predicated region
      $region41: #{conv_block3d_forward.4} parent=23 // pred_check
        %p359 = pneg %p215
      $region42: #{conv_block3d_forward.4} parent=23 // pred_check_branch
        %361 = sbr.rel (%p359) target = $region44
      $region43: #{conv_block3d_forward.4} parent=23 // pred_region
        %p362 = scmp.lt.s32.totalorder %s22, 1
        %s363 = scalar_select %p362, %s22, 1
        %s364 = scalar_lea.vmem %s6, %s363
      $region44: #{conv_block3d_forward.4} parent=23 // pred_fallthru
        _
    $region24: #{conv_block3d_forward.4} parent=5 // pred_fallthru
      _
    %p365 = scmp.le.s32.totalorder 1, %s15
    %p366 = scmp.lt.s32.totalorder %s15, 5
    %p367 = pnand %p365, %p366
    %p368 = pneg %p367
    // Predicated region
    $region45: #{conv_block3d_forward.4} parent=5 // pred_check
      _
    $region46: #{conv_block3d_forward.4} parent=5 // pred_check_branch
      %370 = sbr.rel (%p367) target = $region48
    $region47: #{conv_block3d_forward.4} parent=5 // pred_region
      %s371 = ssub.s32 %s15, 1
      %s372 = smul.u32 %s25, 4
      %s373 = ssub.s32 %s372, 1
      %p374 = scmp.gt.s32.totalorder %s373, 0
      %s375 = scalar_select %p374, %s373, 0
      %p376 = scmp.lt.s32.totalorder %s24, 1
      %s377 = scalar_select %p376, %s24, 1
      %p378 = scmp.lt.s32.totalorder %s375, 7
      %s379 = scalar_select %p378, %s375, 7
      %s380 = smul.addr %s377, 8
      %s381 = sadd.s32 %s379, %s380
      %s382 = smul.addr %s381, 8
      %s383 = scalar_lea.vmem %s0, %s382
      %p384 = pneg %p63
      %p385 = pneg %p60
      %s386 = smul.u32 4, %s25
      %p387 = scmp.lt.s32.totalorder %s24, 1
      %s388 = scalar_select %p387, %s24, 1
      %p389 = scmp.lt.s32.totalorder %s386, 7
      %s390 = scalar_select %p389, %s386, 7
      %s391 = smul.addr %s388, 8
      %s392 = sadd.s32 %s390, %s391
      %s393 = smul.addr %s392, 8
      %s394 = scalar_lea.vmem %s1, %s393
      %p395 = pneg %p91
      %p396 = pneg %p88
      %s397 = smul.u32 %s25, 4
      %s398 = sadd.s32 %s397, 4
      %p399 = scmp.lt.s32.totalorder %s398, 7
      %s400 = scalar_select %p399, %s398, 7
      %p401 = scmp.lt.s32.totalorder %s24, 1
      %s402 = scalar_select %p401, %s24, 1
      %p403 = scmp.lt.s32.totalorder %s400, 7
      %s404 = scalar_select %p403, %s400, 7
      %s405 = smul.addr %s402, 8
      %s406 = sadd.s32 %s404, %s405
      %s407 = smul.addr %s406, 8
      %s408 = scalar_lea.vmem %s2, %s407
      %p409 = pneg %p127
      %p410 = pneg %p124
      %p411 = pneg %p148
      %p412 = pneg %p145
      %p413 = pneg %p169
      %p414 = pneg %p166
      %p415 = scmp.lt.s32.totalorder %s24, 1
      %s416 = scalar_select %p415, %s24, 1
      %s417 = scalar_lea.vmem %s5, %s416
      %p418 = pneg %p195
      %p419 = pneg %p192
      %p420 = scmp.lt.s32.totalorder %s24, 1
      %s421 = scalar_select %p420, %s24, 1
      %s422 = scalar_lea.vmem %s6, %s421
      %p423 = pneg %p221
      %p424 = pneg %p218
      %p425 = pneg %p249
      %p426 = pneg %p246
      %s427 = smul.u32 4, %s25
      %p428 = scmp.lt.s32.totalorder %s24, 1
      %s429 = scalar_select %p428, %s24, 1
      %p430 = scmp.lt.s32.totalorder %s427, 7
      %s431 = scalar_select %p430, %s427, 7
      %s432 = smul.addr %s429, 8
      %s433 = sadd.s32 %s431, %s432
      %s434 = smul.addr %s433, 8
      %s435 = scalar_lea.vmem %s7, %s434
      %p436 = pneg %p277
      %p437 = pneg %p274
      %p438 = scmp.lt.s32.totalorder %s24, 1
      %s439 = scalar_select %p438, %s24, 1
      %p440 = scmp.lt.s32.totalorder %s25, 1
      %s441 = scalar_select %p440, %s25, 1
      %s442 = smul.addr %s439, 2
      %s443 = sadd.s32 %s441, %s442
      %s444 = smul.addr %s443, 2
      %s445 = scalar_lea.vmem %s8, %s444
      %s446 = smul.u32 %s25, 4
      %s447 = ssub.s32 %s446, 1
      %p448 = scmp.gt.s32.totalorder %s447, 0
      %s449 = scalar_select %p448, %s447, 0
      %p450 = scmp.lt.s32.totalorder %s24, 1
      %s451 = scalar_select %p450, %s24, 1
      %p452 = scmp.lt.s32.totalorder %s449, 7
      %s453 = scalar_select %p452, %s449, 7
      %s454 = smul.addr %s451, 8
      %s455 = sadd.s32 %s453, %s454
      %s456 = smul.addr %s455, 8
      %s457 = scalar_lea.vmem %s0, %s456
      %s458 = smul.u32 %s25, 4
      %s459 = ssub.s32 %s458, 1
      %p460 = scmp.gt.s32.totalorder %s459, 0
      %s461 = scalar_select %p460, %s459, 0
      %s462 = smul.u32 4, %s25
      %p463 = scmp.lt.s32.totalorder %s24, 1
      %s464 = scalar_select %p463, %s24, 1
      %p465 = scmp.lt.s32.totalorder %s462, 7
      %s466 = scalar_select %p465, %s462, 7
      %s467 = smul.addr %s464, 8
      %s468 = sadd.s32 %s466, %s467
      %s469 = smul.addr %s468, 8
      %s470 = scalar_lea.vmem %s1, %s469
      %s471 = smul.u32 4, %s25
      %s472 = smul.u32 %s25, 4
      %s473 = sadd.s32 %s472, 4
      %p474 = scmp.lt.s32.totalorder %s473, 7
      %s475 = scalar_select %p474, %s473, 7
      %p476 = scmp.lt.s32.totalorder %s24, 1
      %s477 = scalar_select %p476, %s24, 1
      %p478 = scmp.lt.s32.totalorder %s475, 7
      %s479 = scalar_select %p478, %s475, 7
      %s480 = smul.addr %s477, 8
      %s481 = sadd.s32 %s479, %s480
      %s482 = smul.addr %s481, 8
      %s483 = scalar_lea.vmem %s2, %s482
      %s484 = smul.u32 %s25, 4
      %s485 = sadd.s32 %s484, 4
      %p486 = scmp.lt.s32.totalorder %s485, 7
      %s487 = scalar_select %p486, %s485, 7
      %p488 = scmp.lt.s32.totalorder %s24, 1
      %s489 = scalar_select %p488, %s24, 1
      %s490 = scalar_lea.vmem %s5, %s489
      %p491 = scmp.lt.s32.totalorder %s24, 1
      %s492 = scalar_select %p491, %s24, 1
      %s493 = scalar_lea.vmem %s6, %s492
      %s494 = smul.u32 4, %s25
      %p495 = scmp.lt.s32.totalorder %s24, 1
      %s496 = scalar_select %p495, %s24, 1
      %p497 = scmp.lt.s32.totalorder %s494, 7
      %s498 = scalar_select %p497, %s494, 7
      %s499 = smul.addr %s496, 8
      %s500 = sadd.s32 %s498, %s499
      %s501 = smul.addr %s500, 8
      %s502 = scalar_lea.vmem %s7, %s501
      %s503 = smul.u32 4, %s25
      %p504 = scmp.lt.s32.totalorder %s24, 1
      %s505 = scalar_select %p504, %s24, 1
      %p506 = scmp.lt.s32.totalorder %s25, 1
      %s507 = scalar_select %p506, %s25, 1
      %s508 = smul.addr %s505, 2
      %s509 = sadd.s32 %s507, %s508
      %s510 = smul.addr %s509, 2
      %s511 = scalar_lea.vmem %s8, %s510
      %513 = vst [vmem:[#allocation2] sm:$0xff] 0.0
      %vm514 = vcmask 261120
      %515 = vst.msk [vmem:[#allocation2 + $0x8] sm:$0xff] %vm514, 0.0
      %516 = vst [vmem:[#allocation2 + $0x10] sm:$0x3] 0.0
      %vm517 = vcmask 254976
      %518 = vst.msk [vmem:[#allocation2 + $0x18] sm:$0x3] %vm517, 0.0
      %519 = vst [vmem:[#allocation2 + $0x20] sm:$0xff] 0.0
      %520 = vst.msk [vmem:[#allocation2 + $0x28] sm:$0xff] %vm514, 0.0
      %521 = vst [vmem:[#allocation2 + $0x30] sm:$0x3] 0.0
      %522 = vst.msk [vmem:[#allocation2 + $0x38] sm:$0x3] %vm517, 0.0
      %523 = vst [vmem:[#allocation2 + $0x40] sm:$0xff] 0.0
      %524 = vst.msk [vmem:[#allocation2 + $0x48] sm:$0xff] %vm514, 0.0
      %525 = vst [vmem:[#allocation2 + $0x50] sm:$0x3] 0.0
      %526 = vst.msk [vmem:[#allocation2 + $0x58] sm:$0x3] %vm517, 0.0
      %527 = vst [vmem:[#allocation2 + $0x60] sm:$0xff] 0.0
      %528 = vst.msk [vmem:[#allocation2 + $0x68] sm:$0xff] %vm514, 0.0
      %529 = vst [vmem:[#allocation2 + $0x70] sm:$0x3] 0.0
      %530 = vst.msk [vmem:[#allocation2 + $0x78] sm:$0x3] %vm517, 0.0
      %531 = vst [vmem:[#allocation2 + $0x80] sm:$0xff] 0.0
      %532 = vst.msk [vmem:[#allocation2 + $0x88] sm:$0xff] %vm514, 0.0
      %533 = vst [vmem:[#allocation2 + $0x90] sm:$0x3] 0.0
      %534 = vst.msk [vmem:[#allocation2 + $0x98] sm:$0x3] %vm517, 0.0
      %535 = vst [vmem:[#allocation2 + $0xa0] sm:$0xff] 0.0
      %536 = vst.msk [vmem:[#allocation2 + $0xa8] sm:$0xff] %vm514, 0.0
      %537 = vst [vmem:[#allocation2 + $0xb0] sm:$0x3] 0.0
      %538 = vst.msk [vmem:[#allocation2 + $0xb8] sm:$0x3] %vm517, 0.0
      %v539 = vld [vmem:[%s470] sm:$0xff]
      %v540 = vld [vmem:[%s470 + $0x8] sm:$0xff]
      %v541 = vld [vmem:[%s470 + $0x10] sm:$0xff]
      %v542 = vld [vmem:[%s470 + $0x18] sm:$0xff]
      %v543 = vld [vmem:[%s490] sm:$0x1]
      %v545 = vperm.slane %v543, 0
      %v547 = vmul.f32 %v539, %v545
      %v548 = vmul.f32 %v540, %v545
      %v549 = vmul.f32 %v541, %v545
      %v550 = vmul.f32 %v542, %v545
      %v551 = vld [vmem:[%s493] sm:$0x1]
      %v553 = vperm.slane %v551, 0
      %v555 = vadd.f32 %v547, %v553
      %v556 = vadd.f32 %v548, %v553
      %v557 = vadd.f32 %v549, %v553
      %v558 = vadd.f32 %v550, %v553
      %v559 = vmax.f32 %v555, 0.0
      %v560 = vmax.f32 %v556, 0.0
      %v561 = vmax.f32 %v557, 0.0
      %v562 = vmax.f32 %v558, 0.0
      %v563 = vld [vmem:[%s457] sm:$0xff]
      %v564 = vmul.f32 %v563, %v545
      %v565 = vadd.f32 %v564, %v553
      %v566 = vmax.f32 %v565, 0.0
      %p567 = scmp.gt.s32.totalorder %s25, 0
      %s568 = scalar_select %p567, 1, 0
      %s569 = scvt.s32.f32 %s568
      %v570 = vstv %s569
      %v571 = vmul.f32 %v566, %v570
      %v572 = vld [vmem:[%s483] sm:$0xff]
      %v573 = vmul.f32 %v572, %v545
      %v574 = vadd.f32 %v573, %v553
      %v575 = vmax.f32 %v574, 0.0
      %p576 = scmp.lt.s32.totalorder %s25, 1
      %s577 = scalar_select %p576, 1, 0
      %s578 = scvt.s32.f32 %s577
      %v579 = vstv %s578
      %v580 = vmul.f32 %v575, %v579
      %v585 = vrot.slane %v559, 7
      %v586 = vrot.slane %v560, 7
      %v587 = vrot.slane %v561, 7
      %v588 = vrot.slane %v562, 7
      %589 = vrot.lane.b32.xlu0 %v585, 16
      %v590 = vpop.permute.xlu0 %589
      %591 = vrot.lane.b32.xlu0 %v586, 16
      %v592 = vpop.permute.xlu0 %591
      %593 = vrot.lane.b32.xlu0 %v587, 16
      %v594 = vpop.permute.xlu0 %593
      %595 = vrot.lane.b32.xlu0 %v588, 16
      %v596 = vpop.permute.xlu0 %595
      %s601 = scalar_lea.vmem [#allocation2], 32
      %vm602 = vcmask 1047681
      %603 = vst.msk [vmem:[%s601] sm:$0xfe] %vm602, %v590
      %vm604 = vcmask 130049
      %605 = vst.msk [vmem:[%s601 + $0x8] sm:$0xfe] %vm604, %v590
      %vm606 = vcmask 1040512
      %607 = vst.msk [vmem:[%s601 + $0x10] sm:$0x1] %vm606, %v590
      %vm608 = vcmask 122880
      %609 = vst.msk [vmem:[%s601 + $0x18] sm:$0x1] %vm608, %v590
      %610 = vst.msk [vmem:[%s601 + $0x20] sm:$0xfe] %vm602, %v592
      %611 = vst.msk [vmem:[%s601 + $0x28] sm:$0xfe] %vm604, %v592
      %612 = vst.msk [vmem:[%s601 + $0x30] sm:$0x1] %vm606, %v592
      %613 = vst.msk [vmem:[%s601 + $0x38] sm:$0x1] %vm608, %v592
      %614 = vst.msk [vmem:[%s601 + $0x40] sm:$0xfe] %vm602, %v594
      %615 = vst.msk [vmem:[%s601 + $0x48] sm:$0xfe] %vm604, %v594
      %616 = vst.msk [vmem:[%s601 + $0x50] sm:$0x1] %vm606, %v594
      %617 = vst.msk [vmem:[%s601 + $0x58] sm:$0x1] %vm608, %v594
      %618 = vst.msk [vmem:[%s601 + $0x60] sm:$0xfe] %vm602, %v596
      %619 = vst.msk [vmem:[%s601 + $0x68] sm:$0xfe] %vm604, %v596
      %620 = vst.msk [vmem:[%s601 + $0x70] sm:$0x1] %vm606, %v596
      %621 = vst.msk [vmem:[%s601 + $0x78] sm:$0x1] %vm608, %v596
      %v623 = vrot.slane %v571, 7
      %624 = vrot.lane.b32.xlu0 %v623, 16
      %v625 = vpop.permute.xlu0 %624
      %627 = vst.msk [vmem:[#allocation2] sm:$0xfe] %vm602, %v625
      %628 = vst.msk [vmem:[#allocation2 + $0x8] sm:$0xfe] %vm604, %v625
      %629 = vst.msk [vmem:[#allocation2 + $0x10] sm:$0x1] %vm606, %v625
      %630 = vst.msk [vmem:[#allocation2 + $0x18] sm:$0x1] %vm608, %v625
      %v632 = vrot.slane %v580, 7
      %633 = vrot.lane.b32.xlu0 %v632, 16
      %v634 = vpop.permute.xlu0 %633
      %s636 = scalar_lea.vmem [#allocation2], 160
      %637 = vst.msk [vmem:[%s636] sm:$0xfe] %vm602, %v634
      %638 = vst.msk [vmem:[%s636 + $0x8] sm:$0xfe] %vm604, %v634
      %639 = vst.msk [vmem:[%s636 + $0x10] sm:$0x1] %vm606, %v634
      %640 = vst.msk [vmem:[%s636 + $0x18] sm:$0x1] %vm608, %v634
      %v641 = vld [vmem:[#allocation2] sm:$0xff]
      %v642 = vld [vmem:[#allocation2 + $0x8] sm:$0xff]
      %v643 = vld [vmem:[#allocation2 + $0x20] sm:$0xff]
      %v644 = vld [vmem:[#allocation2 + $0x28] sm:$0xff]
      %v645 = vld [vmem:[#allocation2 + $0x40] sm:$0xff]
      %v646 = vld [vmem:[#allocation2 + $0x48] sm:$0xff]
      %v647 = vld [vmem:[#allocation2 + $0x60] sm:$0xff]
      %v648 = vld [vmem:[#allocation2 + $0x68] sm:$0xff]
      %v649 = vpack.c.bf16 %v643, %v641
      %v650 = vpack.c.bf16 %v644, %v642
      %v651 = vpack.c.bf16 %v647, %v645
      %v652 = vpack.c.bf16 %v648, %v646
      %v653 = vld [vmem:[%s3] sm:$0xf]
      %v654 = vld [vmem:[%s3 + $0x4] sm:$0xf]
      %v655 = vld [vmem:[%s3 + $0x8] sm:$0xf]
      %v656 = vld [vmem:[%s3 + $0xc] sm:$0xf]
      %v657 = vld [vmem:[%s3 + $0x10] sm:$0xf]
      %v658 = vld [vmem:[%s3 + $0x14] sm:$0xf]
      %v659 = vld [vmem:[%s3 + $0x18] sm:$0xf]
      %v660 = vld [vmem:[%s3 + $0x1c] sm:$0xf]
      %v661 = vld [vmem:[%s3 + $0x20] sm:$0xf]
      %v662 = vld [vmem:[%s3 + $0x24] sm:$0xf]
      %v663 = vld [vmem:[%s3 + $0x28] sm:$0xf]
      %v664 = vld [vmem:[%s3 + $0x2c] sm:$0xf]
      %v665 = vld [vmem:[%s3 + $0x30] sm:$0xf]
      %v666 = vld [vmem:[%s3 + $0x34] sm:$0xf]
      %v667 = vld [vmem:[%s3 + $0x38] sm:$0xf]
      %v668 = vld [vmem:[%s3 + $0x3c] sm:$0xf]
      %v669 = vld [vmem:[%s3 + $0x40] sm:$0xf]
      %v670 = vld [vmem:[%s3 + $0x44] sm:$0xf]
      %v671 = vld [vmem:[%s3 + $0x48] sm:$0xf]
      %v672 = vld [vmem:[%s3 + $0x4c] sm:$0xf]
      %v673 = vld [vmem:[#allocation2] sm:$0xfe]
      %v674 = vld [vmem:[#allocation2 + $0x8] sm:$0xfe]
      %v675 = vld [vmem:[#allocation2 + $0x10] sm:$0x1]
      %v676 = vld [vmem:[#allocation2 + $0x18] sm:$0x1]
      %v677 = vld [vmem:[#allocation2 + $0x20] sm:$0xfe]
      %v678 = vld [vmem:[#allocation2 + $0x28] sm:$0xfe]
      %v679 = vld [vmem:[#allocation2 + $0x30] sm:$0x1]
      %v680 = vld [vmem:[#allocation2 + $0x38] sm:$0x1]
      %v681 = vld [vmem:[#allocation2 + $0x40] sm:$0xfe]
      %v682 = vld [vmem:[#allocation2 + $0x48] sm:$0xfe]
      %v683 = vld [vmem:[#allocation2 + $0x50] sm:$0x1]
      %v684 = vld [vmem:[#allocation2 + $0x58] sm:$0x1]
      %v685 = vld [vmem:[#allocation2 + $0x60] sm:$0xfe]
      %v686 = vld [vmem:[#allocation2 + $0x68] sm:$0xfe]
      %v687 = vld [vmem:[#allocation2 + $0x70] sm:$0x1]
      %v688 = vld [vmem:[#allocation2 + $0x78] sm:$0x1]
      %vm705 = vcmask 1046528
      %v706 = vrot.slane %v673, 1
      %v707 = vrot.slane %v675, 1
      %v708 = vsel %vm705, %v706, %v707
      %v709 = vrot.slane %v674, 1
      %v710 = vrot.slane %v676, 1
      %v711 = vsel %vm705, %v709, %v710
      %v712 = vrot.slane %v677, 1
      %v713 = vrot.slane %v679, 1
      %v714 = vsel %vm705, %v712, %v713
      %v715 = vrot.slane %v678, 1
      %v716 = vrot.slane %v680, 1
      %v717 = vsel %vm705, %v715, %v716
      %v718 = vrot.slane %v681, 1
      %v719 = vrot.slane %v683, 1
      %v720 = vsel %vm705, %v718, %v719
      %v721 = vrot.slane %v682, 1
      %v722 = vrot.slane %v684, 1
      %v723 = vsel %vm705, %v721, %v722
      %v724 = vrot.slane %v685, 1
      %v725 = vrot.slane %v687, 1
      %v726 = vsel %vm705, %v724, %v725
      %v727 = vrot.slane %v686, 1
      %v728 = vrot.slane %v688, 1
      %v729 = vsel %vm705, %v727, %v728
      %v738 = vpack.c.bf16 %v714, %v708
      %v739 = vpack.c.bf16 %v717, %v711
      %v740 = vpack.c.bf16 %v726, %v720
      %v741 = vpack.c.bf16 %v729, %v723
      %s742 = scalar_lea.vmem %s3, 80
      %v743 = vld [vmem:[%s742] sm:$0xf]
      %v744 = vld [vmem:[%s742 + $0x4] sm:$0xf]
      %v745 = vld [vmem:[%s742 + $0x8] sm:$0xf]
      %v746 = vld [vmem:[%s742 + $0xc] sm:$0xf]
      %v747 = vld [vmem:[%s742 + $0x10] sm:$0xf]
      %v748 = vld [vmem:[%s742 + $0x14] sm:$0xf]
      %v749 = vld [vmem:[%s742 + $0x18] sm:$0xf]
      %v750 = vld [vmem:[%s742 + $0x1c] sm:$0xf]
      %v751 = vld [vmem:[%s742 + $0x20] sm:$0xf]
      %v752 = vld [vmem:[%s742 + $0x24] sm:$0xf]
      %v753 = vld [vmem:[%s742 + $0x28] sm:$0xf]
      %v754 = vld [vmem:[%s742 + $0x2c] sm:$0xf]
      %v755 = vld [vmem:[%s742 + $0x30] sm:$0xf]
      %v756 = vld [vmem:[%s742 + $0x34] sm:$0xf]
      %v757 = vld [vmem:[%s742 + $0x38] sm:$0xf]
      %v758 = vld [vmem:[%s742 + $0x3c] sm:$0xf]
      %v759 = vld [vmem:[%s742 + $0x40] sm:$0xf]
      %v760 = vld [vmem:[%s742 + $0x44] sm:$0xf]
      %v761 = vld [vmem:[%s742 + $0x48] sm:$0xf]
      %v762 = vld [vmem:[%s742 + $0x4c] sm:$0xf]
      %v783 = vunpack.c.l.b16 %v743
      %v784 = vunpack.c.l.b16 %v744
      %v785 = vunpack.c.l.b16 %v745
      %v786 = vunpack.c.l.b16 %v746
      %v787 = vunpack.c.l.b16 %v747
      %v788 = vunpack.c.l.b16 %v748
      %v789 = vunpack.c.l.b16 %v749
      %v790 = vunpack.c.l.b16 %v750
      %v791 = vunpack.c.l.b16 %v751
      %v792 = vunpack.c.l.b16 %v752
      %v793 = vunpack.c.l.b16 %v753
      %v794 = vunpack.c.l.b16 %v754
      %v795 = vunpack.c.l.b16 %v755
      %v796 = vunpack.c.l.b16 %v756
      %v797 = vunpack.c.l.b16 %v757
      %v798 = vunpack.c.l.b16 %v758
      %v799 = vunpack.c.l.b16 %v759
      %v800 = vunpack.c.l.b16 %v760
      %v801 = vunpack.c.l.b16 %v761
      %v802 = vunpack.c.l.b16 %v762
      %v803 = vpack.c.b16 %v784, %v783
      %v804 = vpack.c.b16 %v786, %v785
      %v805 = vpack.c.b16 %v788, %v787
      %v806 = vpack.c.b16 %v790, %v789
      %v807 = vpack.c.b16 %v792, %v791
      %v808 = vpack.c.b16 %v794, %v793
      %v809 = vpack.c.b16 %v796, %v795
      %v810 = vpack.c.b16 %v798, %v797
      %v811 = vpack.c.b16 %v800, %v799
      %v812 = vpack.c.b16 %v802, %v801
      %v824 = vsel %vm514, %v739, 0
      %v827 = vsel %vm514, %v741, 0
      %829 = vmatpush.bf16.msra.mxu0 %v810
      %830 = vmatpush.bf16.msra.mxu0 %v809
      %831 = vmatpush.bf16.msra.mxu0 %v808
      %832 = vmatpush.bf16.msra.mxu0 %v807
      %833 = vmatpush.bf16.msra.mxu0 %v806
      %834 = vmatpush.bf16.msra.mxu0 %v805
      %835 = vmatpush.bf16.msra.mxu0 %v804
      %836 = vmatpush.bf16.msra.mxu0 %v803
      %837 = vmatmul.bf16.gmra.mxu0 %v738
      %v838 = vpop.f32.mrf.mxu0
      %v839 = vadd.f32 0.0, %v838
      %v840 = vpop.f32.mrf.mxu0
      %v841 = vadd.f32 0.0, %v840
      %842 = vmatmul.bf16.gmra.mxu0 %v740
      %v843 = vpop.f32.mrf.mxu0
      %v844 = vadd.f32 0.0, %v843
      %v845 = vpop.f32.mrf.mxu0
      %v846 = vadd.f32 0.0, %v845
      %847 = vdwg.mxu0
      %848 = vmatpush.bf16.msra.mxu0 0
      %849 = vmatpush.bf16.msra.mxu0 0
      %850 = vmatpush.bf16.msra.mxu0 0
      %851 = vmatpush.bf16.msra.mxu0 0
      %852 = vmatpush.bf16.msra.mxu0 0
      %853 = vmatpush.bf16.msra.mxu0 0
      %854 = vmatpush.bf16.msra.mxu0 %v812
      %855 = vmatpush.bf16.msra.mxu0 %v811
      %856 = vmatmul.bf16.gmra.mxu0 %v824
      %v857 = vpop.f32.mrf.mxu0
      %v858 = vadd.f32 %v839, %v857
      %v859 = vpop.f32.mrf.mxu0
      %v860 = vadd.f32 %v841, %v859
      %861 = vmatmul.bf16.gmra.mxu0 %v827
      %v862 = vpop.f32.mrf.mxu0
      %v863 = vadd.f32 %v844, %v862
      %v864 = vpop.f32.mrf.mxu0
      %v865 = vadd.f32 %v846, %v864
      %866 = vdwg.mxu0
      %v887 = vunpack.c.l.b16 %v653
      %v888 = vunpack.c.l.b16 %v654
      %v889 = vunpack.c.l.b16 %v655
      %v890 = vunpack.c.l.b16 %v656
      %v891 = vunpack.c.l.b16 %v657
      %v892 = vunpack.c.l.b16 %v658
      %v893 = vunpack.c.l.b16 %v659
      %v894 = vunpack.c.l.b16 %v660
      %v895 = vunpack.c.l.b16 %v661
      %v896 = vunpack.c.l.b16 %v662
      %v897 = vunpack.c.l.b16 %v663
      %v898 = vunpack.c.l.b16 %v664
      %v899 = vunpack.c.l.b16 %v665
      %v900 = vunpack.c.l.b16 %v666
      %v901 = vunpack.c.l.b16 %v667
      %v902 = vunpack.c.l.b16 %v668
      %v903 = vunpack.c.l.b16 %v669
      %v904 = vunpack.c.l.b16 %v670
      %v905 = vunpack.c.l.b16 %v671
      %v906 = vunpack.c.l.b16 %v672
      %v907 = vpack.c.b16 %v888, %v887
      %v908 = vpack.c.b16 %v890, %v889
      %v909 = vpack.c.b16 %v892, %v891
      %v910 = vpack.c.b16 %v894, %v893
      %v911 = vpack.c.b16 %v896, %v895
      %v912 = vpack.c.b16 %v898, %v897
      %v913 = vpack.c.b16 %v900, %v899
      %v914 = vpack.c.b16 %v902, %v901
      %v915 = vpack.c.b16 %v904, %v903
      %v916 = vpack.c.b16 %v906, %v905
      %v928 = vsel %vm514, %v650, 0
      %v931 = vsel %vm514, %v652, 0
      %933 = vmatpush.bf16.msra.mxu0 %v914
      %934 = vmatpush.bf16.msra.mxu0 %v913
      %935 = vmatpush.bf16.msra.mxu0 %v912
      %936 = vmatpush.bf16.msra.mxu0 %v911
      %937 = vmatpush.bf16.msra.mxu0 %v910
      %938 = vmatpush.bf16.msra.mxu0 %v909
      %939 = vmatpush.bf16.msra.mxu0 %v908
      %940 = vmatpush.bf16.msra.mxu0 %v907
      %941 = vmatmul.bf16.gmra.mxu0 %v649
      %v942 = vpop.f32.mrf.mxu0
      %v943 = vadd.f32 %v858, %v942
      %v944 = vpop.f32.mrf.mxu0
      %v945 = vadd.f32 %v860, %v944
      %946 = vmatmul.bf16.gmra.mxu0 %v651
      %v947 = vpop.f32.mrf.mxu0
      %v948 = vadd.f32 %v863, %v947
      %v949 = vpop.f32.mrf.mxu0
      %v950 = vadd.f32 %v865, %v949
      %951 = vdwg.mxu0
      %952 = vmatpush.bf16.msra.mxu0 0
      %953 = vmatpush.bf16.msra.mxu0 0
      %954 = vmatpush.bf16.msra.mxu0 0
      %955 = vmatpush.bf16.msra.mxu0 0
      %956 = vmatpush.bf16.msra.mxu0 0
      %957 = vmatpush.bf16.msra.mxu0 0
      %958 = vmatpush.bf16.msra.mxu0 %v916
      %959 = vmatpush.bf16.msra.mxu0 %v915
      %960 = vmatmul.bf16.gmra.mxu0 %v928
      %v961 = vpop.f32.mrf.mxu0
      %v962 = vadd.f32 %v943, %v961
      %v963 = vpop.f32.mrf.mxu0
      %v964 = vadd.f32 %v945, %v963
      %965 = vmatmul.bf16.gmra.mxu0 %v931
      %v966 = vpop.f32.mrf.mxu0
      %v967 = vadd.f32 %v948, %v966
      %v968 = vpop.f32.mrf.mxu0
      %v969 = vadd.f32 %v950, %v968
      %970 = vdwg.mxu0
      %v971 = vld [vmem:[#allocation2] sm:$0xfc]
      %v972 = vld [vmem:[#allocation2 + $0x8] sm:$0xfc]
      %v973 = vld [vmem:[#allocation2 + $0x10] sm:$0x3]
      %v974 = vld [vmem:[#allocation2 + $0x18] sm:$0x3]
      %v975 = vld [vmem:[#allocation2 + $0x20] sm:$0xfc]
      %v976 = vld [vmem:[#allocation2 + $0x28] sm:$0xfc]
      %v977 = vld [vmem:[#allocation2 + $0x30] sm:$0x3]
      %v978 = vld [vmem:[#allocation2 + $0x38] sm:$0x3]
      %v979 = vld [vmem:[#allocation2 + $0x40] sm:$0xfc]
      %v980 = vld [vmem:[#allocation2 + $0x48] sm:$0xfc]
      %v981 = vld [vmem:[#allocation2 + $0x50] sm:$0x3]
      %v982 = vld [vmem:[#allocation2 + $0x58] sm:$0x3]
      %v983 = vld [vmem:[#allocation2 + $0x60] sm:$0xfc]
      %v984 = vld [vmem:[#allocation2 + $0x68] sm:$0xfc]
      %v985 = vld [vmem:[#allocation2 + $0x70] sm:$0x3]
      %v986 = vld [vmem:[#allocation2 + $0x78] sm:$0x3]
      %vm1003 = vcmask 1045504
      %v1004 = vrot.slane %v971, 2
      %v1005 = vrot.slane %v973, 2
      %v1006 = vsel %vm1003, %v1004, %v1005
      %v1007 = vrot.slane %v972, 2
      %v1008 = vrot.slane %v974, 2
      %v1009 = vsel %vm1003, %v1007, %v1008
      %v1010 = vrot.slane %v975, 2
      %v1011 = vrot.slane %v977, 2
      %v1012 = vsel %vm1003, %v1010, %v1011
      %v1013 = vrot.slane %v976, 2
      %v1014 = vrot.slane %v978, 2
      %v1015 = vsel %vm1003, %v1013, %v1014
      %v1016 = vrot.slane %v979, 2
      %v1017 = vrot.slane %v981, 2
      %v1018 = vsel %vm1003, %v1016, %v1017
      %v1019 = vrot.slane %v980, 2
      %v1020 = vrot.slane %v982, 2
      %v1021 = vsel %vm1003, %v1019, %v1020
      %v1022 = vrot.slane %v983, 2
      %v1023 = vrot.slane %v985, 2
      %v1024 = vsel %vm1003, %v1022, %v1023
      %v1025 = vrot.slane %v984, 2
      %v1026 = vrot.slane %v986, 2
      %v1027 = vsel %vm1003, %v1025, %v1026
      %v1036 = vpack.c.bf16 %v1012, %v1006
      %v1037 = vpack.c.bf16 %v1015, %v1009
      %v1038 = vpack.c.bf16 %v1024, %v1018
      %v1039 = vpack.c.bf16 %v1027, %v1021
      %s1040 = scalar_lea.vmem %s3, 160
      %v1041 = vld [vmem:[%s1040] sm:$0xf]
      %v1042 = vld [vmem:[%s1040 + $0x4] sm:$0xf]
      %v1043 = vld [vmem:[%s1040 + $0x8] sm:$0xf]
      %v1044 = vld [vmem:[%s1040 + $0xc] sm:$0xf]
      %v1045 = vld [vmem:[%s1040 + $0x10] sm:$0xf]
      %v1046 = vld [vmem:[%s1040 + $0x14] sm:$0xf]
      %v1047 = vld [vmem:[%s1040 + $0x18] sm:$0xf]
      %v1048 = vld [vmem:[%s1040 + $0x1c] sm:$0xf]
      %v1049 = vld [vmem:[%s1040 + $0x20] sm:$0xf]
      %v1050 = vld [vmem:[%s1040 + $0x24] sm:$0xf]
      %v1051 = vld [vmem:[%s1040 + $0x28] sm:$0xf]
      %v1052 = vld [vmem:[%s1040 + $0x2c] sm:$0xf]
      %v1053 = vld [vmem:[%s1040 + $0x30] sm:$0xf]
      %v1054 = vld [vmem:[%s1040 + $0x34] sm:$0xf]
      %v1055 = vld [vmem:[%s1040 + $0x38] sm:$0xf]
      %v1056 = vld [vmem:[%s1040 + $0x3c] sm:$0xf]
      %v1057 = vld [vmem:[%s1040 + $0x40] sm:$0xf]
      %v1058 = vld [vmem:[%s1040 + $0x44] sm:$0xf]
      %v1059 = vld [vmem:[%s1040 + $0x48] sm:$0xf]
      %v1060 = vld [vmem:[%s1040 + $0x4c] sm:$0xf]
      %v1081 = vunpack.c.l.b16 %v1041
      %v1082 = vunpack.c.l.b16 %v1042
      %v1083 = vunpack.c.l.b16 %v1043
      %v1084 = vunpack.c.l.b16 %v1044
      %v1085 = vunpack.c.l.b16 %v1045
      %v1086 = vunpack.c.l.b16 %v1046
      %v1087 = vunpack.c.l.b16 %v1047
      %v1088 = vunpack.c.l.b16 %v1048
      %v1089 = vunpack.c.l.b16 %v1049
      %v1090 = vunpack.c.l.b16 %v1050
      %v1091 = vunpack.c.l.b16 %v1051
      %v1092 = vunpack.c.l.b16 %v1052
      %v1093 = vunpack.c.l.b16 %v1053
      %v1094 = vunpack.c.l.b16 %v1054
      %v1095 = vunpack.c.l.b16 %v1055
      %v1096 = vunpack.c.l.b16 %v1056
      %v1097 = vunpack.c.l.b16 %v1057
      %v1098 = vunpack.c.l.b16 %v1058
      %v1099 = vunpack.c.l.b16 %v1059
      %v1100 = vunpack.c.l.b16 %v1060
      %v1101 = vpack.c.b16 %v1082, %v1081
      %v1102 = vpack.c.b16 %v1084, %v1083
      %v1103 = vpack.c.b16 %v1086, %v1085
      %v1104 = vpack.c.b16 %v1088, %v1087
      %v1105 = vpack.c.b16 %v1090, %v1089
      %v1106 = vpack.c.b16 %v1092, %v1091
      %v1107 = vpack.c.b16 %v1094, %v1093
      %v1108 = vpack.c.b16 %v1096, %v1095
      %v1109 = vpack.c.b16 %v1098, %v1097
      %v1110 = vpack.c.b16 %v1100, %v1099
      %v1122 = vsel %vm514, %v1037, 0
      %v1125 = vsel %vm514, %v1039, 0
      %1127 = vmatpush.bf16.msra.mxu0 %v1108
      %1128 = vmatpush.bf16.msra.mxu0 %v1107
      %1129 = vmatpush.bf16.msra.mxu0 %v1106
      %1130 = vmatpush.bf16.msra.mxu0 %v1105
      %1131 = vmatpush.bf16.msra.mxu0 %v1104
      %1132 = vmatpush.bf16.msra.mxu0 %v1103
      %1133 = vmatpush.bf16.msra.mxu0 %v1102
      %1134 = vmatpush.bf16.msra.mxu0 %v1101
      %1135 = vmatmul.bf16.gmra.mxu0 %v1036
      %v1136 = vpop.f32.mrf.mxu0
      %v1137 = vadd.f32 0.0, %v1136
      %v1138 = vpop.f32.mrf.mxu0
      %v1139 = vadd.f32 0.0, %v1138
      %1140 = vmatmul.bf16.gmra.mxu0 %v1038
      %v1141 = vpop.f32.mrf.mxu0
      %v1142 = vadd.f32 0.0, %v1141
      %v1143 = vpop.f32.mrf.mxu0
      %v1144 = vadd.f32 0.0, %v1143
      %1145 = vdwg.mxu0
      %1146 = vmatpush.bf16.msra.mxu0 0
      %1147 = vmatpush.bf16.msra.mxu0 0
      %1148 = vmatpush.bf16.msra.mxu0 0
      %1149 = vmatpush.bf16.msra.mxu0 0
      %1150 = vmatpush.bf16.msra.mxu0 0
      %1151 = vmatpush.bf16.msra.mxu0 0
      %1152 = vmatpush.bf16.msra.mxu0 %v1110
      %1153 = vmatpush.bf16.msra.mxu0 %v1109
      %1154 = vmatmul.bf16.gmra.mxu0 %v1122
      %v1155 = vpop.f32.mrf.mxu0
      %v1156 = vadd.f32 %v1137, %v1155
      %v1157 = vpop.f32.mrf.mxu0
      %v1158 = vadd.f32 %v1139, %v1157
      %1159 = vmatmul.bf16.gmra.mxu0 %v1125
      %v1160 = vpop.f32.mrf.mxu0
      %v1161 = vadd.f32 %v1142, %v1160
      %v1162 = vpop.f32.mrf.mxu0
      %v1163 = vadd.f32 %v1144, %v1162
      %1164 = vdwg.mxu0
      %v1165 = vadd.f32 %v962, %v1156
      %v1166 = vadd.f32 %v964, %v1158
      %v1167 = vadd.f32 %v967, %v1161
      %v1168 = vadd.f32 %v969, %v1163
      %v1169 = vld [vmem:[%s601] sm:$0xff]
      %v1170 = vld [vmem:[%s601 + $0x8] sm:$0xff]
      %v1171 = vld [vmem:[%s601 + $0x20] sm:$0xff]
      %v1172 = vld [vmem:[%s601 + $0x28] sm:$0xff]
      %v1173 = vld [vmem:[%s601 + $0x40] sm:$0xff]
      %v1174 = vld [vmem:[%s601 + $0x48] sm:$0xff]
      %v1175 = vld [vmem:[%s601 + $0x60] sm:$0xff]
      %v1176 = vld [vmem:[%s601 + $0x68] sm:$0xff]
      %v1177 = vpack.c.bf16 %v1171, %v1169
      %v1178 = vpack.c.bf16 %v1172, %v1170
      %v1179 = vpack.c.bf16 %v1175, %v1173
      %v1180 = vpack.c.bf16 %v1176, %v1174
      %s1181 = scalar_lea.vmem %s3, 240
      %v1182 = vld [vmem:[%s1181] sm:$0xf]
      %v1183 = vld [vmem:[%s1181 + $0x4] sm:$0xf]
      %v1184 = vld [vmem:[%s1181 + $0x8] sm:$0xf]
      %v1185 = vld [vmem:[%s1181 + $0xc] sm:$0xf]
      %v1186 = vld [vmem:[%s1181 + $0x10] sm:$0xf]
      %v1187 = vld [vmem:[%s1181 + $0x14] sm:$0xf]
      %v1188 = vld [vmem:[%s1181 + $0x18] sm:$0xf]
      %v1189 = vld [vmem:[%s1181 + $0x1c] sm:$0xf]
      %v1190 = vld [vmem:[%s1181 + $0x20] sm:$0xf]
      %v1191 = vld [vmem:[%s1181 + $0x24] sm:$0xf]
      %v1192 = vld [vmem:[%s1181 + $0x28] sm:$0xf]
      %v1193 = vld [vmem:[%s1181 + $0x2c] sm:$0xf]
      %v1194 = vld [vmem:[%s1181 + $0x30] sm:$0xf]
      %v1195 = vld [vmem:[%s1181 + $0x34] sm:$0xf]
      %v1196 = vld [vmem:[%s1181 + $0x38] sm:$0xf]
      %v1197 = vld [vmem:[%s1181 + $0x3c] sm:$0xf]
      %v1198 = vld [vmem:[%s1181 + $0x40] sm:$0xf]
      %v1199 = vld [vmem:[%s1181 + $0x44] sm:$0xf]
      %v1200 = vld [vmem:[%s1181 + $0x48] sm:$0xf]
      %v1201 = vld [vmem:[%s1181 + $0x4c] sm:$0xf]
      %v1222 = vunpack.c.l.b16 %v1182
      %v1223 = vunpack.c.l.b16 %v1183
      %v1224 = vunpack.c.l.b16 %v1184
      %v1225 = vunpack.c.l.b16 %v1185
      %v1226 = vunpack.c.l.b16 %v1186
      %v1227 = vunpack.c.l.b16 %v1187
      %v1228 = vunpack.c.l.b16 %v1188
      %v1229 = vunpack.c.l.b16 %v1189
      %v1230 = vunpack.c.l.b16 %v1190
      %v1231 = vunpack.c.l.b16 %v1191
      %v1232 = vunpack.c.l.b16 %v1192
      %v1233 = vunpack.c.l.b16 %v1193
      %v1234 = vunpack.c.l.b16 %v1194
      %v1235 = vunpack.c.l.b16 %v1195
      %v1236 = vunpack.c.l.b16 %v1196
      %v1237 = vunpack.c.l.b16 %v1197
      %v1238 = vunpack.c.l.b16 %v1198
      %v1239 = vunpack.c.l.b16 %v1199
      %v1240 = vunpack.c.l.b16 %v1200
      %v1241 = vunpack.c.l.b16 %v1201
      %v1242 = vpack.c.b16 %v1223, %v1222
      %v1243 = vpack.c.b16 %v1225, %v1224
      %v1244 = vpack.c.b16 %v1227, %v1226
      %v1245 = vpack.c.b16 %v1229, %v1228
      %v1246 = vpack.c.b16 %v1231, %v1230
      %v1247 = vpack.c.b16 %v1233, %v1232
      %v1248 = vpack.c.b16 %v1235, %v1234
      %v1249 = vpack.c.b16 %v1237, %v1236
      %v1250 = vpack.c.b16 %v1239, %v1238
      %v1251 = vpack.c.b16 %v1241, %v1240
      %v1263 = vsel %vm514, %v1178, 0
      %v1266 = vsel %vm514, %v1180, 0
      %1268 = vmatpush.bf16.msra.mxu0 %v1249
      %1269 = vmatpush.bf16.msra.mxu0 %v1248
      %1270 = vmatpush.bf16.msra.mxu0 %v1247
      %1271 = vmatpush.bf16.msra.mxu0 %v1246
      %1272 = vmatpush.bf16.msra.mxu0 %v1245
      %1273 = vmatpush.bf16.msra.mxu0 %v1244
      %1274 = vmatpush.bf16.msra.mxu0 %v1243
      %1275 = vmatpush.bf16.msra.mxu0 %v1242
      %1276 = vmatmul.bf16.gmra.mxu0 %v1177
      %v1277 = vpop.f32.mrf.mxu0
      %v1278 = vadd.f32 0.0, %v1277
      %v1279 = vpop.f32.mrf.mxu0
      %v1280 = vadd.f32 0.0, %v1279
      %1281 = vmatmul.bf16.gmra.mxu0 %v1179
      %v1282 = vpop.f32.mrf.mxu0
      %v1283 = vadd.f32 0.0, %v1282
      %v1284 = vpop.f32.mrf.mxu0
      %v1285 = vadd.f32 0.0, %v1284
      %1286 = vdwg.mxu0
      %1287 = vmatpush.bf16.msra.mxu0 0
      %1288 = vmatpush.bf16.msra.mxu0 0
      %1289 = vmatpush.bf16.msra.mxu0 0
      %1290 = vmatpush.bf16.msra.mxu0 0
      %1291 = vmatpush.bf16.msra.mxu0 0
      %1292 = vmatpush.bf16.msra.mxu0 0
      %1293 = vmatpush.bf16.msra.mxu0 %v1251
      %1294 = vmatpush.bf16.msra.mxu0 %v1250
      %1295 = vmatmul.bf16.gmra.mxu0 %v1263
      %v1296 = vpop.f32.mrf.mxu0
      %v1297 = vadd.f32 %v1278, %v1296
      %v1298 = vpop.f32.mrf.mxu0
      %v1299 = vadd.f32 %v1280, %v1298
      %1300 = vmatmul.bf16.gmra.mxu0 %v1266
      %v1301 = vpop.f32.mrf.mxu0
      %v1302 = vadd.f32 %v1283, %v1301
      %v1303 = vpop.f32.mrf.mxu0
      %v1304 = vadd.f32 %v1285, %v1303
      %1305 = vdwg.mxu0
      %v1306 = vadd.f32 %v1165, %v1297
      %v1307 = vadd.f32 %v1166, %v1299
      %v1308 = vadd.f32 %v1167, %v1302
      %v1309 = vadd.f32 %v1168, %v1304
      %v1310 = vld [vmem:[%s601] sm:$0xfe]
      %v1311 = vld [vmem:[%s601 + $0x8] sm:$0xfe]
      %v1312 = vld [vmem:[%s601 + $0x10] sm:$0x1]
      %v1313 = vld [vmem:[%s601 + $0x18] sm:$0x1]
      %v1314 = vld [vmem:[%s601 + $0x20] sm:$0xfe]
      %v1315 = vld [vmem:[%s601 + $0x28] sm:$0xfe]
      %v1316 = vld [vmem:[%s601 + $0x30] sm:$0x1]
      %v1317 = vld [vmem:[%s601 + $0x38] sm:$0x1]
      %v1318 = vld [vmem:[%s601 + $0x40] sm:$0xfe]
      %v1319 = vld [vmem:[%s601 + $0x48] sm:$0xfe]
      %v1320 = vld [vmem:[%s601 + $0x50] sm:$0x1]
      %v1321 = vld [vmem:[%s601 + $0x58] sm:$0x1]
      %v1322 = vld [vmem:[%s601 + $0x60] sm:$0xfe]
      %v1323 = vld [vmem:[%s601 + $0x68] sm:$0xfe]
      %v1324 = vld [vmem:[%s601 + $0x70] sm:$0x1]
      %v1325 = vld [vmem:[%s601 + $0x78] sm:$0x1]
      %v1342 = vrot.slane %v1310, 1
      %v1343 = vrot.slane %v1312, 1
      %v1344 = vsel %vm705, %v1342, %v1343
      %v1345 = vrot.slane %v1311, 1
      %v1346 = vrot.slane %v1313, 1
      %v1347 = vsel %vm705, %v1345, %v1346
      %v1348 = vrot.slane %v1314, 1
      %v1349 = vrot.slane %v1316, 1
      %v1350 = vsel %vm705, %v1348, %v1349
      %v1351 = vrot.slane %v1315, 1
      %v1352 = vrot.slane %v1317, 1
      %v1353 = vsel %vm705, %v1351, %v1352
      %v1354 = vrot.slane %v1318, 1
      %v1355 = vrot.slane %v1320, 1
      %v1356 = vsel %vm705, %v1354, %v1355
      %v1357 = vrot.slane %v1319, 1
      %v1358 = vrot.slane %v1321, 1
      %v1359 = vsel %vm705, %v1357, %v1358
      %v1360 = vrot.slane %v1322, 1
      %v1361 = vrot.slane %v1324, 1
      %v1362 = vsel %vm705, %v1360, %v1361
      %v1363 = vrot.slane %v1323, 1
      %v1364 = vrot.slane %v1325, 1
      %v1365 = vsel %vm705, %v1363, %v1364
      %v1374 = vpack.c.bf16 %v1350, %v1344
      %v1375 = vpack.c.bf16 %v1353, %v1347
      %v1376 = vpack.c.bf16 %v1362, %v1356
      %v1377 = vpack.c.bf16 %v1365, %v1359
      %s1378 = scalar_lea.vmem %s3, 320
      %v1379 = vld [vmem:[%s1378] sm:$0xf]
      %v1380 = vld [vmem:[%s1378 + $0x4] sm:$0xf]
      %v1381 = vld [vmem:[%s1378 + $0x8] sm:$0xf]
      %v1382 = vld [vmem:[%s1378 + $0xc] sm:$0xf]
      %v1383 = vld [vmem:[%s1378 + $0x10] sm:$0xf]
      %v1384 = vld [vmem:[%s1378 + $0x14] sm:$0xf]
      %v1385 = vld [vmem:[%s1378 + $0x18] sm:$0xf]
      %v1386 = vld [vmem:[%s1378 + $0x1c] sm:$0xf]
      %v1387 = vld [vmem:[%s1378 + $0x20] sm:$0xf]
      %v1388 = vld [vmem:[%s1378 + $0x24] sm:$0xf]
      %v1389 = vld [vmem:[%s1378 + $0x28] sm:$0xf]
      %v1390 = vld [vmem:[%s1378 + $0x2c] sm:$0xf]
      %v1391 = vld [vmem:[%s1378 + $0x30] sm:$0xf]
      %v1392 = vld [vmem:[%s1378 + $0x34] sm:$0xf]
      %v1393 = vld [vmem:[%s1378 + $0x38] sm:$0xf]
      %v1394 = vld [vmem:[%s1378 + $0x3c] sm:$0xf]
      %v1395 = vld [vmem:[%s1378 + $0x40] sm:$0xf]
      %v1396 = vld [vmem:[%s1378 + $0x44] sm:$0xf]
      %v1397 = vld [vmem:[%s1378 + $0x48] sm:$0xf]
      %v1398 = vld [vmem:[%s1378 + $0x4c] sm:$0xf]
      %v1419 = vunpack.c.l.b16 %v1379
      %v1420 = vunpack.c.l.b16 %v1380
      %v1421 = vunpack.c.l.b16 %v1381
      %v1422 = vunpack.c.l.b16 %v1382
      %v1423 = vunpack.c.l.b16 %v1383
      %v1424 = vunpack.c.l.b16 %v1384
      %v1425 = vunpack.c.l.b16 %v1385
      %v1426 = vunpack.c.l.b16 %v1386
      %v1427 = vunpack.c.l.b16 %v1387
      %v1428 = vunpack.c.l.b16 %v1388
      %v1429 = vunpack.c.l.b16 %v1389
      %v1430 = vunpack.c.l.b16 %v1390
      %v1431 = vunpack.c.l.b16 %v1391
      %v1432 = vunpack.c.l.b16 %v1392
      %v1433 = vunpack.c.l.b16 %v1393
      %v1434 = vunpack.c.l.b16 %v1394
      %v1435 = vunpack.c.l.b16 %v1395
      %v1436 = vunpack.c.l.b16 %v1396
      %v1437 = vunpack.c.l.b16 %v1397
      %v1438 = vunpack.c.l.b16 %v1398
      %v1439 = vpack.c.b16 %v1420, %v1419
      %v1440 = vpack.c.b16 %v1422, %v1421
      %v1441 = vpack.c.b16 %v1424, %v1423
      %v1442 = vpack.c.b16 %v1426, %v1425
      %v1443 = vpack.c.b16 %v1428, %v1427
      %v1444 = vpack.c.b16 %v1430, %v1429
      %v1445 = vpack.c.b16 %v1432, %v1431
      %v1446 = vpack.c.b16 %v1434, %v1433
      %v1447 = vpack.c.b16 %v1436, %v1435
      %v1448 = vpack.c.b16 %v1438, %v1437
      %v1460 = vsel %vm514, %v1375, 0
      %v1463 = vsel %vm514, %v1377, 0
      %1465 = vmatpush.bf16.msra.mxu0 %v1446
      %1466 = vmatpush.bf16.msra.mxu0 %v1445
      %1467 = vmatpush.bf16.msra.mxu0 %v1444
      %1468 = vmatpush.bf16.msra.mxu0 %v1443
      %1469 = vmatpush.bf16.msra.mxu0 %v1442
      %1470 = vmatpush.bf16.msra.mxu0 %v1441
      %1471 = vmatpush.bf16.msra.mxu0 %v1440
      %1472 = vmatpush.bf16.msra.mxu0 %v1439
      %1473 = vmatmul.bf16.gmra.mxu0 %v1374
      %v1474 = vpop.f32.mrf.mxu0
      %v1475 = vadd.f32 0.0, %v1474
      %v1476 = vpop.f32.mrf.mxu0
      %v1477 = vadd.f32 0.0, %v1476
      %1478 = vmatmul.bf16.gmra.mxu0 %v1376
      %v1479 = vpop.f32.mrf.mxu0
      %v1480 = vadd.f32 0.0, %v1479
      %v1481 = vpop.f32.mrf.mxu0
      %v1482 = vadd.f32 0.0, %v1481
      %1483 = vdwg.mxu0
      %1484 = vmatpush.bf16.msra.mxu0 0
      %1485 = vmatpush.bf16.msra.mxu0 0
      %1486 = vmatpush.bf16.msra.mxu0 0
      %1487 = vmatpush.bf16.msra.mxu0 0
      %1488 = vmatpush.bf16.msra.mxu0 0
      %1489 = vmatpush.bf16.msra.mxu0 0
      %1490 = vmatpush.bf16.msra.mxu0 %v1448
      %1491 = vmatpush.bf16.msra.mxu0 %v1447
      %1492 = vmatmul.bf16.gmra.mxu0 %v1460
      %v1493 = vpop.f32.mrf.mxu0
      %v1494 = vadd.f32 %v1475, %v1493
      %v1495 = vpop.f32.mrf.mxu0
      %v1496 = vadd.f32 %v1477, %v1495
      %1497 = vmatmul.bf16.gmra.mxu0 %v1463
      %v1498 = vpop.f32.mrf.mxu0
      %v1499 = vadd.f32 %v1480, %v1498
      %v1500 = vpop.f32.mrf.mxu0
      %v1501 = vadd.f32 %v1482, %v1500
      %1502 = vdwg.mxu0
      %v1503 = vadd.f32 %v1306, %v1494
      %v1504 = vadd.f32 %v1307, %v1496
      %v1505 = vadd.f32 %v1308, %v1499
      %v1506 = vadd.f32 %v1309, %v1501
      %v1507 = vld [vmem:[%s601] sm:$0xfc]
      %v1508 = vld [vmem:[%s601 + $0x8] sm:$0xfc]
      %v1509 = vld [vmem:[%s601 + $0x10] sm:$0x3]
      %v1510 = vld [vmem:[%s601 + $0x18] sm:$0x3]
      %v1511 = vld [vmem:[%s601 + $0x20] sm:$0xfc]
      %v1512 = vld [vmem:[%s601 + $0x28] sm:$0xfc]
      %v1513 = vld [vmem:[%s601 + $0x30] sm:$0x3]
      %v1514 = vld [vmem:[%s601 + $0x38] sm:$0x3]
      %v1515 = vld [vmem:[%s601 + $0x40] sm:$0xfc]
      %v1516 = vld [vmem:[%s601 + $0x48] sm:$0xfc]
      %v1517 = vld [vmem:[%s601 + $0x50] sm:$0x3]
      %v1518 = vld [vmem:[%s601 + $0x58] sm:$0x3]
      %v1519 = vld [vmem:[%s601 + $0x60] sm:$0xfc]
      %v1520 = vld [vmem:[%s601 + $0x68] sm:$0xfc]
      %v1521 = vld [vmem:[%s601 + $0x70] sm:$0x3]
      %v1522 = vld [vmem:[%s601 + $0x78] sm:$0x3]
      %v1539 = vrot.slane %v1507, 2
      %v1540 = vrot.slane %v1509, 2
      %v1541 = vsel %vm1003, %v1539, %v1540
      %v1542 = vrot.slane %v1508, 2
      %v1543 = vrot.slane %v1510, 2
      %v1544 = vsel %vm1003, %v1542, %v1543
      %v1545 = vrot.slane %v1511, 2
      %v1546 = vrot.slane %v1513, 2
      %v1547 = vsel %vm1003, %v1545, %v1546
      %v1548 = vrot.slane %v1512, 2
      %v1549 = vrot.slane %v1514, 2
      %v1550 = vsel %vm1003, %v1548, %v1549
      %v1551 = vrot.slane %v1515, 2
      %v1552 = vrot.slane %v1517, 2
      %v1553 = vsel %vm1003, %v1551, %v1552
      %v1554 = vrot.slane %v1516, 2
      %v1555 = vrot.slane %v1518, 2
      %v1556 = vsel %vm1003, %v1554, %v1555
      %v1557 = vrot.slane %v1519, 2
      %v1558 = vrot.slane %v1521, 2
      %v1559 = vsel %vm1003, %v1557, %v1558
      %v1560 = vrot.slane %v1520, 2
      %v1561 = vrot.slane %v1522, 2
      %v1562 = vsel %vm1003, %v1560, %v1561
      %v1571 = vpack.c.bf16 %v1547, %v1541
      %v1572 = vpack.c.bf16 %v1550, %v1544
      %v1573 = vpack.c.bf16 %v1559, %v1553
      %v1574 = vpack.c.bf16 %v1562, %v1556
      %s1575 = scalar_lea.vmem %s3, 400
      %v1576 = vld [vmem:[%s1575] sm:$0xf]
      %v1577 = vld [vmem:[%s1575 + $0x4] sm:$0xf]
      %v1578 = vld [vmem:[%s1575 + $0x8] sm:$0xf]
      %v1579 = vld [vmem:[%s1575 + $0xc] sm:$0xf]
      %v1580 = vld [vmem:[%s1575 + $0x10] sm:$0xf]
      %v1581 = vld [vmem:[%s1575 + $0x14] sm:$0xf]
      %v1582 = vld [vmem:[%s1575 + $0x18] sm:$0xf]
      %v1583 = vld [vmem:[%s1575 + $0x1c] sm:$0xf]
      %v1584 = vld [vmem:[%s1575 + $0x20] sm:$0xf]
      %v1585 = vld [vmem:[%s1575 + $0x24] sm:$0xf]
      %v1586 = vld [vmem:[%s1575 + $0x28] sm:$0xf]
      %v1587 = vld [vmem:[%s1575 + $0x2c] sm:$0xf]
      %v1588 = vld [vmem:[%s1575 + $0x30] sm:$0xf]
      %v1589 = vld [vmem:[%s1575 + $0x34] sm:$0xf]
      %v1590 = vld [vmem:[%s1575 + $0x38] sm:$0xf]
      %v1591 = vld [vmem:[%s1575 + $0x3c] sm:$0xf]
      %v1592 = vld [vmem:[%s1575 + $0x40] sm:$0xf]
      %v1593 = vld [vmem:[%s1575 + $0x44] sm:$0xf]
      %v1594 = vld [vmem:[%s1575 + $0x48] sm:$0xf]
      %v1595 = vld [vmem:[%s1575 + $0x4c] sm:$0xf]
      %v1616 = vunpack.c.l.b16 %v1576
      %v1617 = vunpack.c.l.b16 %v1577
      %v1618 = vunpack.c.l.b16 %v1578
      %v1619 = vunpack.c.l.b16 %v1579
      %v1620 = vunpack.c.l.b16 %v1580
      %v1621 = vunpack.c.l.b16 %v1581
      %v1622 = vunpack.c.l.b16 %v1582
      %v1623 = vunpack.c.l.b16 %v1583
      %v1624 = vunpack.c.l.b16 %v1584
      %v1625 = vunpack.c.l.b16 %v1585
      %v1626 = vunpack.c.l.b16 %v1586
      %v1627 = vunpack.c.l.b16 %v1587
      %v1628 = vunpack.c.l.b16 %v1588
      %v1629 = vunpack.c.l.b16 %v1589
      %v1630 = vunpack.c.l.b16 %v1590
      %v1631 = vunpack.c.l.b16 %v1591
      %v1632 = vunpack.c.l.b16 %v1592
      %v1633 = vunpack.c.l.b16 %v1593
      %v1634 = vunpack.c.l.b16 %v1594
      %v1635 = vunpack.c.l.b16 %v1595
      %v1636 = vpack.c.b16 %v1617, %v1616
      %v1637 = vpack.c.b16 %v1619, %v1618
      %v1638 = vpack.c.b16 %v1621, %v1620
      %v1639 = vpack.c.b16 %v1623, %v1622
      %v1640 = vpack.c.b16 %v1625, %v1624
      %v1641 = vpack.c.b16 %v1627, %v1626
      %v1642 = vpack.c.b16 %v1629, %v1628
      %v1643 = vpack.c.b16 %v1631, %v1630
      %v1644 = vpack.c.b16 %v1633, %v1632
      %v1645 = vpack.c.b16 %v1635, %v1634
      %v1657 = vsel %vm514, %v1572, 0
      %v1660 = vsel %vm514, %v1574, 0
      %1662 = vmatpush.bf16.msra.mxu0 %v1643
      %1663 = vmatpush.bf16.msra.mxu0 %v1642
      %1664 = vmatpush.bf16.msra.mxu0 %v1641
      %1665 = vmatpush.bf16.msra.mxu0 %v1640
      %1666 = vmatpush.bf16.msra.mxu0 %v1639
      %1667 = vmatpush.bf16.msra.mxu0 %v1638
      %1668 = vmatpush.bf16.msra.mxu0 %v1637
      %1669 = vmatpush.bf16.msra.mxu0 %v1636
      %1670 = vmatmul.bf16.gmra.mxu0 %v1571
      %v1671 = vpop.f32.mrf.mxu0
      %v1672 = vadd.f32 0.0, %v1671
      %v1673 = vpop.f32.mrf.mxu0
      %v1674 = vadd.f32 0.0, %v1673
      %1675 = vmatmul.bf16.gmra.mxu0 %v1573
      %v1676 = vpop.f32.mrf.mxu0
      %v1677 = vadd.f32 0.0, %v1676
      %v1678 = vpop.f32.mrf.mxu0
      %v1679 = vadd.f32 0.0, %v1678
      %1680 = vdwg.mxu0
      %1681 = vmatpush.bf16.msra.mxu0 0
      %1682 = vmatpush.bf16.msra.mxu0 0
      %1683 = vmatpush.bf16.msra.mxu0 0
      %1684 = vmatpush.bf16.msra.mxu0 0
      %1685 = vmatpush.bf16.msra.mxu0 0
      %1686 = vmatpush.bf16.msra.mxu0 0
      %1687 = vmatpush.bf16.msra.mxu0 %v1645
      %1688 = vmatpush.bf16.msra.mxu0 %v1644
      %1689 = vmatmul.bf16.gmra.mxu0 %v1657
      %v1690 = vpop.f32.mrf.mxu0
      %v1691 = vadd.f32 %v1672, %v1690
      %v1692 = vpop.f32.mrf.mxu0
      %v1693 = vadd.f32 %v1674, %v1692
      %1694 = vmatmul.bf16.gmra.mxu0 %v1660
      %v1695 = vpop.f32.mrf.mxu0
      %v1696 = vadd.f32 %v1677, %v1695
      %v1697 = vpop.f32.mrf.mxu0
      %v1698 = vadd.f32 %v1679, %v1697
      %1699 = vdwg.mxu0
      %v1700 = vadd.f32 %v1503, %v1691
      %v1701 = vadd.f32 %v1504, %v1693
      %v1702 = vadd.f32 %v1505, %v1696
      %v1703 = vadd.f32 %v1506, %v1698
      %s1704 = scalar_lea.vmem [#allocation2], 64
      %v1705 = vld [vmem:[%s1704] sm:$0xff]
      %v1706 = vld [vmem:[%s1704 + $0x8] sm:$0xff]
      %v1707 = vld [vmem:[%s1704 + $0x20] sm:$0xff]
      %v1708 = vld [vmem:[%s1704 + $0x28] sm:$0xff]
      %v1709 = vld [vmem:[%s1704 + $0x40] sm:$0xff]
      %v1710 = vld [vmem:[%s1704 + $0x48] sm:$0xff]
      %v1711 = vld [vmem:[%s1704 + $0x60] sm:$0xff]
      %v1712 = vld [vmem:[%s1704 + $0x68] sm:$0xff]
      %v1713 = vpack.c.bf16 %v1707, %v1705
      %v1714 = vpack.c.bf16 %v1708, %v1706
      %v1715 = vpack.c.bf16 %v1711, %v1709
      %v1716 = vpack.c.bf16 %v1712, %v1710
      %s1717 = scalar_lea.vmem %s3, 480
      %v1718 = vld [vmem:[%s1717] sm:$0xf]
      %v1719 = vld [vmem:[%s1717 + $0x4] sm:$0xf]
      %v1720 = vld [vmem:[%s1717 + $0x8] sm:$0xf]
      %v1721 = vld [vmem:[%s1717 + $0xc] sm:$0xf]
      %v1722 = vld [vmem:[%s1717 + $0x10] sm:$0xf]
      %v1723 = vld [vmem:[%s1717 + $0x14] sm:$0xf]
      %v1724 = vld [vmem:[%s1717 + $0x18] sm:$0xf]
      %v1725 = vld [vmem:[%s1717 + $0x1c] sm:$0xf]
      %v1726 = vld [vmem:[%s1717 + $0x20] sm:$0xf]
      %v1727 = vld [vmem:[%s1717 + $0x24] sm:$0xf]
      %v1728 = vld [vmem:[%s1717 + $0x28] sm:$0xf]
      %v1729 = vld [vmem:[%s1717 + $0x2c] sm:$0xf]
      %v1730 = vld [vmem:[%s1717 + $0x30] sm:$0xf]
      %v1731 = vld [vmem:[%s1717 + $0x34] sm:$0xf]
      %v1732 = vld [vmem:[%s1717 + $0x38] sm:$0xf]
      %v1733 = vld [vmem:[%s1717 + $0x3c] sm:$0xf]
      %v1734 = vld [vmem:[%s1717 + $0x40] sm:$0xf]
      %v1735 = vld [vmem:[%s1717 + $0x44] sm:$0xf]
      %v1736 = vld [vmem:[%s1717 + $0x48] sm:$0xf]
      %v1737 = vld [vmem:[%s1717 + $0x4c] sm:$0xf]
      %v1758 = vunpack.c.l.b16 %v1718
      %v1759 = vunpack.c.l.b16 %v1719
      %v1760 = vunpack.c.l.b16 %v1720
      %v1761 = vunpack.c.l.b16 %v1721
      %v1762 = vunpack.c.l.b16 %v1722
      %v1763 = vunpack.c.l.b16 %v1723
      %v1764 = vunpack.c.l.b16 %v1724
      %v1765 = vunpack.c.l.b16 %v1725
      %v1766 = vunpack.c.l.b16 %v1726
      %v1767 = vunpack.c.l.b16 %v1727
      %v1768 = vunpack.c.l.b16 %v1728
      %v1769 = vunpack.c.l.b16 %v1729
      %v1770 = vunpack.c.l.b16 %v1730
      %v1771 = vunpack.c.l.b16 %v1731
      %v1772 = vunpack.c.l.b16 %v1732
      %v1773 = vunpack.c.l.b16 %v1733
      %v1774 = vunpack.c.l.b16 %v1734
      %v1775 = vunpack.c.l.b16 %v1735
      %v1776 = vunpack.c.l.b16 %v1736
      %v1777 = vunpack.c.l.b16 %v1737
      %v1778 = vpack.c.b16 %v1759, %v1758
      %v1779 = vpack.c.b16 %v1761, %v1760
      %v1780 = vpack.c.b16 %v1763, %v1762
      %v1781 = vpack.c.b16 %v1765, %v1764
      %v1782 = vpack.c.b16 %v1767, %v1766
      %v1783 = vpack.c.b16 %v1769, %v1768
      %v1784 = vpack.c.b16 %v1771, %v1770
      %v1785 = vpack.c.b16 %v1773, %v1772
      %v1786 = vpack.c.b16 %v1775, %v1774
      %v1787 = vpack.c.b16 %v1777, %v1776
      %v1799 = vsel %vm514, %v1714, 0
      %v1802 = vsel %vm514, %v1716, 0
      %1804 = vmatpush.bf16.msra.mxu0 %v1785
      %1805 = vmatpush.bf16.msra.mxu0 %v1784
      %1806 = vmatpush.bf16.msra.mxu0 %v1783
      %1807 = vmatpush.bf16.msra.mxu0 %v1782
      %1808 = vmatpush.bf16.msra.mxu0 %v1781
      %1809 = vmatpush.bf16.msra.mxu0 %v1780
      %1810 = vmatpush.bf16.msra.mxu0 %v1779
      %1811 = vmatpush.bf16.msra.mxu0 %v1778
      %1812 = vmatmul.bf16.gmra.mxu0 %v1713
      %v1813 = vpop.f32.mrf.mxu0
      %v1814 = vadd.f32 0.0, %v1813
      %v1815 = vpop.f32.mrf.mxu0
      %v1816 = vadd.f32 0.0, %v1815
      %1817 = vmatmul.bf16.gmra.mxu0 %v1715
      %v1818 = vpop.f32.mrf.mxu0
      %v1819 = vadd.f32 0.0, %v1818
      %v1820 = vpop.f32.mrf.mxu0
      %v1821 = vadd.f32 0.0, %v1820
      %1822 = vdwg.mxu0
      %1823 = vmatpush.bf16.msra.mxu0 0
      %1824 = vmatpush.bf16.msra.mxu0 0
      %1825 = vmatpush.bf16.msra.mxu0 0
      %1826 = vmatpush.bf16.msra.mxu0 0
      %1827 = vmatpush.bf16.msra.mxu0 0
      %1828 = vmatpush.bf16.msra.mxu0 0
      %1829 = vmatpush.bf16.msra.mxu0 %v1787
      %1830 = vmatpush.bf16.msra.mxu0 %v1786
      %1831 = vmatmul.bf16.gmra.mxu0 %v1799
      %v1832 = vpop.f32.mrf.mxu0
      %v1833 = vadd.f32 %v1814, %v1832
      %v1834 = vpop.f32.mrf.mxu0
      %v1835 = vadd.f32 %v1816, %v1834
      %1836 = vmatmul.bf16.gmra.mxu0 %v1802
      %v1837 = vpop.f32.mrf.mxu0
      %v1838 = vadd.f32 %v1819, %v1837
      %v1839 = vpop.f32.mrf.mxu0
      %v1840 = vadd.f32 %v1821, %v1839
      %1841 = vdwg.mxu0
      %v1842 = vadd.f32 %v1700, %v1833
      %v1843 = vadd.f32 %v1701, %v1835
      %v1844 = vadd.f32 %v1702, %v1838
      %v1845 = vadd.f32 %v1703, %v1840
      %v1846 = vld [vmem:[%s1704] sm:$0xfe]
      %v1847 = vld [vmem:[%s1704 + $0x8] sm:$0xfe]
      %v1848 = vld [vmem:[%s1704 + $0x10] sm:$0x1]
      %v1849 = vld [vmem:[%s1704 + $0x18] sm:$0x1]
      %v1850 = vld [vmem:[%s1704 + $0x20] sm:$0xfe]
      %v1851 = vld [vmem:[%s1704 + $0x28] sm:$0xfe]
      %v1852 = vld [vmem:[%s1704 + $0x30] sm:$0x1]
      %v1853 = vld [vmem:[%s1704 + $0x38] sm:$0x1]
      %v1854 = vld [vmem:[%s1704 + $0x40] sm:$0xfe]
      %v1855 = vld [vmem:[%s1704 + $0x48] sm:$0xfe]
      %v1856 = vld [vmem:[%s1704 + $0x50] sm:$0x1]
      %v1857 = vld [vmem:[%s1704 + $0x58] sm:$0x1]
      %v1858 = vld [vmem:[%s1704 + $0x60] sm:$0xfe]
      %v1859 = vld [vmem:[%s1704 + $0x68] sm:$0xfe]
      %v1860 = vld [vmem:[%s1704 + $0x70] sm:$0x1]
      %v1861 = vld [vmem:[%s1704 + $0x78] sm:$0x1]
      %v1878 = vrot.slane %v1846, 1
      %v1879 = vrot.slane %v1848, 1
      %v1880 = vsel %vm705, %v1878, %v1879
      %v1881 = vrot.slane %v1847, 1
      %v1882 = vrot.slane %v1849, 1
      %v1883 = vsel %vm705, %v1881, %v1882
      %v1884 = vrot.slane %v1850, 1
      %v1885 = vrot.slane %v1852, 1
      %v1886 = vsel %vm705, %v1884, %v1885
      %v1887 = vrot.slane %v1851, 1
      %v1888 = vrot.slane %v1853, 1
      %v1889 = vsel %vm705, %v1887, %v1888
      %v1890 = vrot.slane %v1854, 1
      %v1891 = vrot.slane %v1856, 1
      %v1892 = vsel %vm705, %v1890, %v1891
      %v1893 = vrot.slane %v1855, 1
      %v1894 = vrot.slane %v1857, 1
      %v1895 = vsel %vm705, %v1893, %v1894
      %v1896 = vrot.slane %v1858, 1
      %v1897 = vrot.slane %v1860, 1
      %v1898 = vsel %vm705, %v1896, %v1897
      %v1899 = vrot.slane %v1859, 1
      %v1900 = vrot.slane %v1861, 1
      %v1901 = vsel %vm705, %v1899, %v1900
      %v1910 = vpack.c.bf16 %v1886, %v1880
      %v1911 = vpack.c.bf16 %v1889, %v1883
      %v1912 = vpack.c.bf16 %v1898, %v1892
      %v1913 = vpack.c.bf16 %v1901, %v1895
      %s1914 = scalar_lea.vmem %s3, 560
      %v1915 = vld [vmem:[%s1914] sm:$0xf]
      %v1916 = vld [vmem:[%s1914 + $0x4] sm:$0xf]
      %v1917 = vld [vmem:[%s1914 + $0x8] sm:$0xf]
      %v1918 = vld [vmem:[%s1914 + $0xc] sm:$0xf]
      %v1919 = vld [vmem:[%s1914 + $0x10] sm:$0xf]
      %v1920 = vld [vmem:[%s1914 + $0x14] sm:$0xf]
      %v1921 = vld [vmem:[%s1914 + $0x18] sm:$0xf]
      %v1922 = vld [vmem:[%s1914 + $0x1c] sm:$0xf]
      %v1923 = vld [vmem:[%s1914 + $0x20] sm:$0xf]
      %v1924 = vld [vmem:[%s1914 + $0x24] sm:$0xf]
      %v1925 = vld [vmem:[%s1914 + $0x28] sm:$0xf]
      %v1926 = vld [vmem:[%s1914 + $0x2c] sm:$0xf]
      %v1927 = vld [vmem:[%s1914 + $0x30] sm:$0xf]
      %v1928 = vld [vmem:[%s1914 + $0x34] sm:$0xf]
      %v1929 = vld [vmem:[%s1914 + $0x38] sm:$0xf]
      %v1930 = vld [vmem:[%s1914 + $0x3c] sm:$0xf]
      %v1931 = vld [vmem:[%s1914 + $0x40] sm:$0xf]
      %v1932 = vld [vmem:[%s1914 + $0x44] sm:$0xf]
      %v1933 = vld [vmem:[%s1914 + $0x48] sm:$0xf]
      %v1934 = vld [vmem:[%s1914 + $0x4c] sm:$0xf]
      %v1955 = vunpack.c.l.b16 %v1915
      %v1956 = vunpack.c.l.b16 %v1916
      %v1957 = vunpack.c.l.b16 %v1917
      %v1958 = vunpack.c.l.b16 %v1918
      %v1959 = vunpack.c.l.b16 %v1919
      %v1960 = vunpack.c.l.b16 %v1920
      %v1961 = vunpack.c.l.b16 %v1921
      %v1962 = vunpack.c.l.b16 %v1922
      %v1963 = vunpack.c.l.b16 %v1923
      %v1964 = vunpack.c.l.b16 %v1924
      %v1965 = vunpack.c.l.b16 %v1925
      %v1966 = vunpack.c.l.b16 %v1926
      %v1967 = vunpack.c.l.b16 %v1927
      %v1968 = vunpack.c.l.b16 %v1928
      %v1969 = vunpack.c.l.b16 %v1929
      %v1970 = vunpack.c.l.b16 %v1930
      %v1971 = vunpack.c.l.b16 %v1931
      %v1972 = vunpack.c.l.b16 %v1932
      %v1973 = vunpack.c.l.b16 %v1933
      %v1974 = vunpack.c.l.b16 %v1934
      %v1975 = vpack.c.b16 %v1956, %v1955
      %v1976 = vpack.c.b16 %v1958, %v1957
      %v1977 = vpack.c.b16 %v1960, %v1959
      %v1978 = vpack.c.b16 %v1962, %v1961
      %v1979 = vpack.c.b16 %v1964, %v1963
      %v1980 = vpack.c.b16 %v1966, %v1965
      %v1981 = vpack.c.b16 %v1968, %v1967
      %v1982 = vpack.c.b16 %v1970, %v1969
      %v1983 = vpack.c.b16 %v1972, %v1971
      %v1984 = vpack.c.b16 %v1974, %v1973
      %v1996 = vsel %vm514, %v1911, 0
      %v1999 = vsel %vm514, %v1913, 0
      %2001 = vmatpush.bf16.msra.mxu0 %v1982
      %2002 = vmatpush.bf16.msra.mxu0 %v1981
      %2003 = vmatpush.bf16.msra.mxu0 %v1980
      %2004 = vmatpush.bf16.msra.mxu0 %v1979
      %2005 = vmatpush.bf16.msra.mxu0 %v1978
      %2006 = vmatpush.bf16.msra.mxu0 %v1977
      %2007 = vmatpush.bf16.msra.mxu0 %v1976
      %2008 = vmatpush.bf16.msra.mxu0 %v1975
      %2009 = vmatmul.bf16.gmra.mxu0 %v1910
      %v2010 = vpop.f32.mrf.mxu0
      %v2011 = vadd.f32 0.0, %v2010
      %v2012 = vpop.f32.mrf.mxu0
      %v2013 = vadd.f32 0.0, %v2012
      %2014 = vmatmul.bf16.gmra.mxu0 %v1912
      %v2015 = vpop.f32.mrf.mxu0
      %v2016 = vadd.f32 0.0, %v2015
      %v2017 = vpop.f32.mrf.mxu0
      %v2018 = vadd.f32 0.0, %v2017
      %2019 = vdwg.mxu0
      %2020 = vmatpush.bf16.msra.mxu0 0
      %2021 = vmatpush.bf16.msra.mxu0 0
      %2022 = vmatpush.bf16.msra.mxu0 0
      %2023 = vmatpush.bf16.msra.mxu0 0
      %2024 = vmatpush.bf16.msra.mxu0 0
      %2025 = vmatpush.bf16.msra.mxu0 0
      %2026 = vmatpush.bf16.msra.mxu0 %v1984
      %2027 = vmatpush.bf16.msra.mxu0 %v1983
      %2028 = vmatmul.bf16.gmra.mxu0 %v1996
      %v2029 = vpop.f32.mrf.mxu0
      %v2030 = vadd.f32 %v2011, %v2029
      %v2031 = vpop.f32.mrf.mxu0
      %v2032 = vadd.f32 %v2013, %v2031
      %2033 = vmatmul.bf16.gmra.mxu0 %v1999
      %v2034 = vpop.f32.mrf.mxu0
      %v2035 = vadd.f32 %v2016, %v2034
      %v2036 = vpop.f32.mrf.mxu0
      %v2037 = vadd.f32 %v2018, %v2036
      %2038 = vdwg.mxu0
      %v2039 = vadd.f32 %v1842, %v2030
      %v2040 = vadd.f32 %v1843, %v2032
      %v2041 = vadd.f32 %v1844, %v2035
      %v2042 = vadd.f32 %v1845, %v2037
      %v2043 = vld [vmem:[%s1704] sm:$0xfc]
      %v2044 = vld [vmem:[%s1704 + $0x8] sm:$0xfc]
      %v2045 = vld [vmem:[%s1704 + $0x10] sm:$0x3]
      %v2046 = vld [vmem:[%s1704 + $0x18] sm:$0x3]
      %v2047 = vld [vmem:[%s1704 + $0x20] sm:$0xfc]
      %v2048 = vld [vmem:[%s1704 + $0x28] sm:$0xfc]
      %v2049 = vld [vmem:[%s1704 + $0x30] sm:$0x3]
      %v2050 = vld [vmem:[%s1704 + $0x38] sm:$0x3]
      %v2051 = vld [vmem:[%s1704 + $0x40] sm:$0xfc]
      %v2052 = vld [vmem:[%s1704 + $0x48] sm:$0xfc]
      %v2053 = vld [vmem:[%s1704 + $0x50] sm:$0x3]
      %v2054 = vld [vmem:[%s1704 + $0x58] sm:$0x3]
      %v2055 = vld [vmem:[%s1704 + $0x60] sm:$0xfc]
      %v2056 = vld [vmem:[%s1704 + $0x68] sm:$0xfc]
      %v2057 = vld [vmem:[%s1704 + $0x70] sm:$0x3]
      %v2058 = vld [vmem:[%s1704 + $0x78] sm:$0x3]
      %v2075 = vrot.slane %v2043, 2
      %v2076 = vrot.slane %v2045, 2
      %v2077 = vsel %vm1003, %v2075, %v2076
      %v2078 = vrot.slane %v2044, 2
      %v2079 = vrot.slane %v2046, 2
      %v2080 = vsel %vm1003, %v2078, %v2079
      %v2081 = vrot.slane %v2047, 2
      %v2082 = vrot.slane %v2049, 2
      %v2083 = vsel %vm1003, %v2081, %v2082
      %v2084 = vrot.slane %v2048, 2
      %v2085 = vrot.slane %v2050, 2
      %v2086 = vsel %vm1003, %v2084, %v2085
      %v2087 = vrot.slane %v2051, 2
      %v2088 = vrot.slane %v2053, 2
      %v2089 = vsel %vm1003, %v2087, %v2088
      %v2090 = vrot.slane %v2052, 2
      %v2091 = vrot.slane %v2054, 2
      %v2092 = vsel %vm1003, %v2090, %v2091
      %v2093 = vrot.slane %v2055, 2
      %v2094 = vrot.slane %v2057, 2
      %v2095 = vsel %vm1003, %v2093, %v2094
      %v2096 = vrot.slane %v2056, 2
      %v2097 = vrot.slane %v2058, 2
      %v2098 = vsel %vm1003, %v2096, %v2097
      %v2107 = vpack.c.bf16 %v2083, %v2077
      %v2108 = vpack.c.bf16 %v2086, %v2080
      %v2109 = vpack.c.bf16 %v2095, %v2089
      %v2110 = vpack.c.bf16 %v2098, %v2092
      %s2111 = scalar_lea.vmem %s3, 640
      %v2112 = vld [vmem:[%s2111] sm:$0xf]
      %v2113 = vld [vmem:[%s2111 + $0x4] sm:$0xf]
      %v2114 = vld [vmem:[%s2111 + $0x8] sm:$0xf]
      %v2115 = vld [vmem:[%s2111 + $0xc] sm:$0xf]
      %v2116 = vld [vmem:[%s2111 + $0x10] sm:$0xf]
      %v2117 = vld [vmem:[%s2111 + $0x14] sm:$0xf]
      %v2118 = vld [vmem:[%s2111 + $0x18] sm:$0xf]
      %v2119 = vld [vmem:[%s2111 + $0x1c] sm:$0xf]
      %v2120 = vld [vmem:[%s2111 + $0x20] sm:$0xf]
      %v2121 = vld [vmem:[%s2111 + $0x24] sm:$0xf]
      %v2122 = vld [vmem:[%s2111 + $0x28] sm:$0xf]
      %v2123 = vld [vmem:[%s2111 + $0x2c] sm:$0xf]
      %v2124 = vld [vmem:[%s2111 + $0x30] sm:$0xf]
      %v2125 = vld [vmem:[%s2111 + $0x34] sm:$0xf]
      %v2126 = vld [vmem:[%s2111 + $0x38] sm:$0xf]
      %v2127 = vld [vmem:[%s2111 + $0x3c] sm:$0xf]
      %v2128 = vld [vmem:[%s2111 + $0x40] sm:$0xf]
      %v2129 = vld [vmem:[%s2111 + $0x44] sm:$0xf]
      %v2130 = vld [vmem:[%s2111 + $0x48] sm:$0xf]
      %v2131 = vld [vmem:[%s2111 + $0x4c] sm:$0xf]
      %v2152 = vunpack.c.l.b16 %v2112
      %v2153 = vunpack.c.l.b16 %v2113
      %v2154 = vunpack.c.l.b16 %v2114
      %v2155 = vunpack.c.l.b16 %v2115
      %v2156 = vunpack.c.l.b16 %v2116
      %v2157 = vunpack.c.l.b16 %v2117
      %v2158 = vunpack.c.l.b16 %v2118
      %v2159 = vunpack.c.l.b16 %v2119
      %v2160 = vunpack.c.l.b16 %v2120
      %v2161 = vunpack.c.l.b16 %v2121
      %v2162 = vunpack.c.l.b16 %v2122
      %v2163 = vunpack.c.l.b16 %v2123
      %v2164 = vunpack.c.l.b16 %v2124
      %v2165 = vunpack.c.l.b16 %v2125
      %v2166 = vunpack.c.l.b16 %v2126
      %v2167 = vunpack.c.l.b16 %v2127
      %v2168 = vunpack.c.l.b16 %v2128
      %v2169 = vunpack.c.l.b16 %v2129
      %v2170 = vunpack.c.l.b16 %v2130
      %v2171 = vunpack.c.l.b16 %v2131
      %v2172 = vpack.c.b16 %v2153, %v2152
      %v2173 = vpack.c.b16 %v2155, %v2154
      %v2174 = vpack.c.b16 %v2157, %v2156
      %v2175 = vpack.c.b16 %v2159, %v2158
      %v2176 = vpack.c.b16 %v2161, %v2160
      %v2177 = vpack.c.b16 %v2163, %v2162
      %v2178 = vpack.c.b16 %v2165, %v2164
      %v2179 = vpack.c.b16 %v2167, %v2166
      %v2180 = vpack.c.b16 %v2169, %v2168
      %v2181 = vpack.c.b16 %v2171, %v2170
      %v2193 = vsel %vm514, %v2108, 0
      %v2196 = vsel %vm514, %v2110, 0
      %2198 = vmatpush.bf16.msra.mxu0 %v2179
      %2199 = vmatpush.bf16.msra.mxu0 %v2178
      %2200 = vmatpush.bf16.msra.mxu0 %v2177
      %2201 = vmatpush.bf16.msra.mxu0 %v2176
      %2202 = vmatpush.bf16.msra.mxu0 %v2175
      %2203 = vmatpush.bf16.msra.mxu0 %v2174
      %2204 = vmatpush.bf16.msra.mxu0 %v2173
      %2205 = vmatpush.bf16.msra.mxu0 %v2172
      %2206 = vmatmul.bf16.gmra.mxu0 %v2107
      %v2207 = vpop.f32.mrf.mxu0
      %v2208 = vadd.f32 0.0, %v2207
      %v2209 = vpop.f32.mrf.mxu0
      %v2210 = vadd.f32 0.0, %v2209
      %2211 = vmatmul.bf16.gmra.mxu0 %v2109
      %v2212 = vpop.f32.mrf.mxu0
      %v2213 = vadd.f32 0.0, %v2212
      %v2214 = vpop.f32.mrf.mxu0
      %v2215 = vadd.f32 0.0, %v2214
      %2216 = vdwg.mxu0
      %2217 = vmatpush.bf16.msra.mxu0 0
      %2218 = vmatpush.bf16.msra.mxu0 0
      %2219 = vmatpush.bf16.msra.mxu0 0
      %2220 = vmatpush.bf16.msra.mxu0 0
      %2221 = vmatpush.bf16.msra.mxu0 0
      %2222 = vmatpush.bf16.msra.mxu0 0
      %2223 = vmatpush.bf16.msra.mxu0 %v2181
      %2224 = vmatpush.bf16.msra.mxu0 %v2180
      %2225 = vmatmul.bf16.gmra.mxu0 %v2193
      %v2226 = vpop.f32.mrf.mxu0
      %v2227 = vadd.f32 %v2208, %v2226
      %v2228 = vpop.f32.mrf.mxu0
      %v2229 = vadd.f32 %v2210, %v2228
      %2230 = vmatmul.bf16.gmra.mxu0 %v2196
      %v2231 = vpop.f32.mrf.mxu0
      %v2232 = vadd.f32 %v2213, %v2231
      %v2233 = vpop.f32.mrf.mxu0
      %v2234 = vadd.f32 %v2215, %v2233
      %2235 = vdwg.mxu0
      %v2236 = vadd.f32 %v2039, %v2227
      %v2237 = vadd.f32 %v2040, %v2229
      %v2238 = vadd.f32 %v2041, %v2232
      %v2239 = vadd.f32 %v2042, %v2234
      %v2240 = vld [vmem:[%s4] sm:$0x1]
      %v2242 = vperm.slane %v2240, 0
      %v2244 = vadd.f32 %v2236, %v2242
      %v2245 = vadd.f32 %v2237, %v2242
      %v2246 = vadd.f32 %v2238, %v2242
      %v2247 = vadd.f32 %v2239, %v2242
      %v2248 = vadd.f32 %v2244, %v2245
      %v2249 = vadd.f32 %v2248, %v2246
      %v2250 = vadd.f32 %v2249, %v2247
      %v2251 = vrot.slane %v2250, 4
      %v2252 = vadd.f32 %v2250, %v2251
      %v2253 = vrot.slane %v2252, 2
      %v2254 = vadd.f32 %v2252, %v2253
      %v2255 = vrot.slane %v2254, 1
      %v2256 = vadd.f32 %v2254, %v2255
      %2257 = vst [vmem:[%s511] sm:$0x1] %v2256
      %v2258 = vmul.f32 %v2244, %v2244
      %v2259 = vmul.f32 %v2245, %v2245
      %v2260 = vmul.f32 %v2246, %v2246
      %v2261 = vmul.f32 %v2247, %v2247
      %v2262 = vadd.f32 %v2258, %v2259
      %v2263 = vadd.f32 %v2262, %v2260
      %v2264 = vadd.f32 %v2263, %v2261
      %v2265 = vrot.slane %v2264, 4
      %v2266 = vadd.f32 %v2264, %v2265
      %v2267 = vrot.slane %v2266, 2
      %v2268 = vadd.f32 %v2266, %v2267
      %v2269 = vrot.slane %v2268, 1
      %v2270 = vadd.f32 %v2268, %v2269
      %2271 = vst [vmem:[%s511 + $0x1] sm:$0x1] %v2270
      %2272 = vst [vmem:[%s502] sm:$0xff] %v2244
      %2273 = vst [vmem:[%s502 + $0x8] sm:$0xff] %v2245
      %2274 = vst [vmem:[%s502 + $0x10] sm:$0xff] %v2246
      %2275 = vst [vmem:[%s502 + $0x18] sm:$0xff] %v2247
      %s2276 = smul.u32 4, %s25
      %p2277 = scmp.lt.s32.totalorder %s24, 1
      %s2278 = scalar_select %p2277, %s24, 1
      %p2279 = scmp.lt.s32.totalorder %s2276, 7
      %s2280 = scalar_select %p2279, %s2276, 7
      %s2281 = smul.addr %s2278, 8
      %s2282 = sadd.s32 %s2280, %s2281
      %s2283 = smul.addr %s2282, 8
      %s2284 = scalar_lea.vmem %s7, %s2283
      %p2285 = scmp.lt.s32.totalorder %s24, 1
      %s2286 = scalar_select %p2285, %s24, 1
      %p2287 = scmp.lt.s32.totalorder %s25, 1
      %s2288 = scalar_select %p2287, %s25, 1
      %s2289 = smul.addr %s2286, 2
      %s2290 = sadd.s32 %s2288, %s2289
      %s2291 = smul.addr %s2290, 2
      %s2292 = scalar_lea.vmem %s8, %s2291
      // Predicated region
      $region49: #{conv_block3d_forward.4} parent=47 // pred_check
        %p2293 = pneg %p246
      $region50: #{conv_block3d_forward.4} parent=47 // pred_check_branch
        %2295 = sbr.rel (%p2293) target = $region52
      $region51: #{conv_block3d_forward.4} parent=47 // pred_region
        %s2296 = smul.u32 4, %s25
      $region52: #{conv_block3d_forward.4} parent=47 // pred_fallthru
        _
      // Predicated region
      $region53: #{conv_block3d_forward.4} parent=47 // pred_check
        %p2297 = pneg %p274
      $region54: #{conv_block3d_forward.4} parent=47 // pred_check_branch
        %2299 = sbr.rel (%p2297) target = $region56
      $region55: #{conv_block3d_forward.4} parent=47 // pred_region
        _
      $region56: #{conv_block3d_forward.4} parent=47 // pred_fallthru
        _
    $region48: #{conv_block3d_forward.4} parent=5 // pred_fallthru
      _
    %p2300 = scmp.le.s32.totalorder 2, %s15
    // Predicated region
    $region57: #{conv_block3d_forward.4} parent=5 // pred_check
      %p2301 = pneg %p2300
    $region58: #{conv_block3d_forward.4} parent=5 // pred_check_branch
      %2303 = sbr.rel (%p2301) target = $region60
    $region59: #{conv_block3d_forward.4} parent=5 // pred_region
      %s2304 = ssub.s32 %s15, 2
      // Predicated region
      $region61: #{conv_block3d_forward.4} parent=59 // pred_check
        %p2305 = pneg %p252
      $region62: #{conv_block3d_forward.4} parent=59 // pred_check_branch
        %2307 = sbr.rel (%p2305) target = $region64
      $region63: #{conv_block3d_forward.4} parent=59 // pred_region
        %s2308 = smul.u32 4, %s27
        %p2309 = scmp.lt.s32.totalorder %s26, 1
        %s2310 = scalar_select %p2309, %s26, 1
        %p2311 = scmp.lt.s32.totalorder %s2308, 7
        %s2312 = scalar_select %p2311, %s2308, 7
        %s2313 = smul.addr %s2310, 8
        %s2314 = sadd.s32 %s2312, %s2313
        %s2315 = smul.addr %s2314, 8
        %s2316 = scalar_lea.vmem %s7, %s2315
      $region64: #{conv_block3d_forward.4} parent=59 // pred_fallthru
        _
      // Predicated region
      $region65: #{conv_block3d_forward.4} parent=59 // pred_check
        %p2317 = pneg %p280
      $region66: #{conv_block3d_forward.4} parent=59 // pred_check_branch
        %2319 = sbr.rel (%p2317) target = $region68
      $region67: #{conv_block3d_forward.4} parent=59 // pred_region
        %p2320 = scmp.lt.s32.totalorder %s26, 1
        %s2321 = scalar_select %p2320, %s26, 1
        %p2322 = scmp.lt.s32.totalorder %s27, 1
        %s2323 = scalar_select %p2322, %s27, 1
        %s2324 = smul.addr %s2321, 2
        %s2325 = sadd.s32 %s2323, %s2324
        %s2326 = smul.addr %s2325, 2
        %s2327 = scalar_lea.vmem %s8, %s2326
      $region68: #{conv_block3d_forward.4} parent=59 // pred_fallthru
        _
    $region60: #{conv_block3d_forward.4} parent=5 // pred_fallthru
      _
  $region6: #{conv_block3d_forward.4} parent=0 // loop_footer
    %s19 = sadd.s32 1, %s15
  $region7: #{conv_block3d_forward.4} parent=0 // loop_footer_branch
    %14 = sbr.rel target = $region3
  $region8: #{conv_block3d_forward.4} parent=0 // loop_exit
    _

</llo_original>
